<compile_context>
chip_gen: v6e
topology: v6e:2x2x1
jax: 0.10.0
libtpu: 0.0.40
codegen_flags: <defaults>
</compile_context>

<pallas_src>
import functools

import jax
import jax.numpy as jnp
from jax.experimental import pallas as pl
from jax.experimental.pallas import tpu as pltpu


def _round_up(x, m):
    return ((x + m - 1) // m) * m


def _pad2(x, rows, cols):
    return jnp.pad(x, ((0, rows - x.shape[0]), (0, cols - x.shape[1])))


# -----------------------------------------------------------------------------
# Kernel 1: embedding DMA gather + LSTM cell + attention + concat projection.
# Gridless (small tensors only); the big output GEMM is kernel 2.
# -----------------------------------------------------------------------------
def state_kernel(
    ids_ref,       # (Bp,)       int32  SMEM  token ids
    emb_ref,       # (V, Ep)     f32    HBM   embedding table (padding_idx 0 row = 0)
    h0_ref,        # (Bp, Hp)    f32    VMEM  previous hidden state
    c0_ref,        # (Bp, Hp)    f32    VMEM  previous cell state
    encproj_ref,   # (Bp, S, Hp) bf16   VMEM  precomputed enc @ W_enc.T
    enc_ref,       # (Bp, S, Hp) bf16   VMEM  encoder outputs
    mask_ref,      # (Bp, S)     f32    VMEM  input mask
    wxh_ref,       # (Ep+Hp,4Hp) bf16   stacked [W_ih.T ; W_hh.T], per-gate padded
    blstm_ref,     # (1, 4Hp)    f32    b_ih + b_hh (per-gate padded)
    wdec_cat_ref,  # (Hp, 2Hp)   bf16   [W_attn_dec.T | W_concat_h.T]
    v_ref,         # (1, Hp)     f32    attention v
    wcat_c_ref,    # (Hp, Hp)    bf16   W_concat_context.T
    bcat_ref,      # (1, Hp)     f32    concat bias
    hnew_ref,      # (Bp, Hp)    f32    out: new hidden state
    cnew_ref,      # (Bp, Hp)    f32    out: new cell state
    concat_ref,    # (Bp, Hp)    bf16   out: concat_output (input of logits GEMM)
    x_buf,         # (Bp, Ep)    f32    VMEM scratch: gathered embedding rows
    dma_sem,       # (Bp,)       DMA semaphores
):
    Bp, _ = x_buf.shape
    Hp = h0_ref.shape[-1]

    # ---- embedding gather: DMA only the needed rows from the HBM table ----
    copies = []
    for row in range(Bp):
        tok = ids_ref[row]
        cp = pltpu.make_async_copy(
            emb_ref.at[pl.ds(tok, 1), :],
            x_buf.at[pl.ds(row, 1), :],
            dma_sem.at[row],
        )
        cp.start()
        copies.append(cp)
    for cp in copies:
        cp.wait()
    # dropout: identity in eval mode

    h0 = h0_ref[...]
    c0 = c0_ref[...]

    # ---- LSTM cell: single fused (B, E+H) x (E+H, 4H) MXU dot ----
    xh = jnp.concatenate([x_buf[...], h0], axis=1).astype(jnp.bfloat16)
    gates = (
        jnp.dot(xh, wxh_ref[...], preferred_element_type=jnp.float32)
        + blstm_ref[...]
    )  # (Bp, 4Hp), PyTorch gate order i, f, g, o (per-gate Hp blocks)
    i_g = jax.nn.sigmoid(gates[:, 0 * Hp:1 * Hp])
    f_g = jax.nn.sigmoid(gates[:, 1 * Hp:2 * Hp])
    g_g = jnp.tanh(gates[:, 2 * Hp:3 * Hp])
    o_g = jax.nn.sigmoid(gates[:, 3 * Hp:4 * Hp])
    c_new = f_g * c0 + i_g * g_g
    h_new = o_g * jnp.tanh(c_new)        # == rnn_output.squeeze(0) == hidden[0][-1]

    # ---- fused h_new @ [W_attn_dec.T | W_concat_h.T] ----
    part = jnp.dot(h_new.astype(jnp.bfloat16), wdec_cat_ref[...],
                   preferred_element_type=jnp.float32)            # (Bp, 2Hp)
    part_dec = part[:, :Hp]
    part_cat = part[:, Hp:]

    # ---- Luong attention (encoder projection precomputed per sequence) ----
    energy = jnp.tanh(part_dec[:, None, :]
                      + encproj_ref[...].astype(jnp.float32))     # (Bp, S, Hp)
    scores = jnp.sum(energy * v_ref[...][None, :, :], axis=-1)    # (Bp, S)

    # masked softmax (mask folded in: masked max, masked exp, one reciprocal)
    mask = mask_ref[...]
    s = scores + (mask - 1.0) * 1e9
    s = s - jnp.max(s, axis=-1, keepdims=True)
    p = jnp.exp(s) * mask
    denom = jnp.sum(p, axis=-1, keepdims=True) + 1e-10
    a = p * pl.reciprocal(denom, approx=True)                     # (Bp, S)

    # batched MXU contraction: (Bp,1,S) x (Bp,S,Hp) -> (Bp,Hp)
    ctx = jnp.einsum("bqs,bsh->bqh",
                     a[:, None, :].astype(jnp.bfloat16), enc_ref[...],
                     preferred_element_type=jnp.float32)[:, 0, :]

    # ---- concat projection ----
    concat_out = jnp.tanh(
        part_cat
        + jnp.dot(ctx.astype(jnp.bfloat16), wcat_c_ref[...],
                  preferred_element_type=jnp.float32)
        + bcat_ref[...]
    )                                                             # (Bp, Hp)

    hnew_ref[...] = h_new
    cnew_ref[...] = c_new
    concat_ref[...] = concat_out.astype(jnp.bfloat16)


# -----------------------------------------------------------------------------
# Kernel 2: output projection, tiled over the vocab ("parallel" grid axis).
# -----------------------------------------------------------------------------
def logits_kernel(concat_ref, wout_ref, bout_ref, logits_ref):
    logits_ref[...] = (
        jnp.dot(concat_ref[...], wout_ref[...],
                preferred_element_type=jnp.float32)
        + bout_ref[...]
    )


# -----------------------------------------------------------------------------
# One-time preparation (per model / per sequence) -- hoisted out of the step.
# -----------------------------------------------------------------------------
def init_params(key, hidden_size, emb_dim, vocab_size):
    ks = jax.random.split(key, 12)
    H, E, V = hidden_size, emb_dim, vocab_size

    def xavier(k, shape):
        fan_out, fan_in = shape
        std = (2.0 / (fan_in + fan_out)) ** 0.5
        return std * jax.random.normal(k, shape, dtype=jnp.float32)

    def uniform(k, shape, bound):
        return jax.random.uniform(k, shape, jnp.float32, -bound, bound)

    emb = 0.02 * jax.random.normal(ks[0], (V, E), dtype=jnp.float32)
    emb = emb.at[0].set(0.0)  # padding_idx=0

    lstm_bound = 1.0 / (H ** 0.5)
    return {
        "embedding": emb,
        "w_ih": uniform(ks[1], (4 * H, E), lstm_bound),
        "w_hh": uniform(ks[2], (4 * H, H), lstm_bound),
        "b_ih": uniform(ks[3], (4 * H,), lstm_bound),
        "b_hh": uniform(ks[4], (4 * H,), lstm_bound),
        "w_attn": xavier(ks[5], (H, 2 * H)),                 # Attention.W_h (no bias)
        "v": (1.0 / (H ** 0.5)) * jax.random.normal(ks[6], (H,), dtype=jnp.float32),
        "w_concat": xavier(ks[7], (H, 2 * H)),
        "b_concat": uniform(ks[8], (H,), 1.0 / ((2 * H) ** 0.5)),
        "w_out": xavier(ks[9], (V, H)),
        "b_out": uniform(ks[10], (V,), 1.0 / (H ** 0.5)),
    }


def prepare_weights(params):
    """Run ONCE per model: all transposes / pads / casts / bias merges."""
    V, E = params["embedding"].shape
    H = params["w_hh"].shape[1]
    Hp = _round_up(H, 128)
    Ep = _round_up(E, 128)
    Vp = _round_up(V, 128)
    wdt = jnp.bfloat16

    # LSTM: stacked [W_ih.T ; W_hh.T] with per-gate column padding to Hp.
    w_ih, w_hh = params["w_ih"], params["w_hh"]
    b = params["b_ih"] + params["b_hh"]
    gate_blocks, bias_blocks = [], []
    for g in range(4):
        wi = w_ih[g * H:(g + 1) * H, :].T                     # (E, H)
        wh = w_hh[g * H:(g + 1) * H, :].T                     # (H, H)
        gate_blocks.append(jnp.concatenate(
            [_pad2(wi, Ep, Hp), _pad2(wh, Hp, Hp)], axis=0))  # (Ep+Hp, Hp)
        bias_blocks.append(jnp.pad(b[g * H:(g + 1) * H], (0, Hp - H)))
    w_xh = jnp.concatenate(gate_blocks, axis=1).astype(wdt)   # (Ep+Hp, 4Hp)
    b_lstm = jnp.concatenate(bias_blocks).reshape(1, -1)      # (1, 4Hp)

    # Attention / concat halves (cat([dec_hidden, enc]) / cat([rnn_out, ctx])).
    w_attn, w_concat = params["w_attn"], params["w_concat"]
    w_dec_cat = jnp.concatenate(
        [_pad2(w_attn[:, :H].T, Hp, Hp), _pad2(w_concat[:, :H].T, Hp, Hp)],
        axis=1).astype(wdt)                                    # (Hp, 2Hp)
    wcat_c = _pad2(w_concat[:, H:].T, Hp, Hp).astype(wdt)      # (Hp, Hp)
    bcat = jnp.pad(params["b_concat"], (0, Hp - H)).reshape(1, -1)
    v = jnp.pad(params["v"], (0, Hp - H)).reshape(1, -1)

    # Output projection (lane-dense, padded vocab).
    w_out_t = _pad2(params["w_out"].T, Hp, Vp).astype(wdt)     # (Hp, Vp)
    b_out = jnp.pad(params["b_out"], (0, Vp - V)).reshape(1, -1)

    # Embedding table stays in HBM; only pad the feature dim.
    emb = jnp.pad(params["embedding"], ((0, 0), (0, Ep - E)))  # (V, Ep) f32

    return {
        "emb": emb, "w_xh": w_xh, "b_lstm": b_lstm,
        "w_dec_cat": w_dec_cat, "v": v, "wcat_c": wcat_c, "bcat": bcat,
        "w_out_t": w_out_t, "b_out": b_out,
    }


def prepare_encoder(encoder_outputs, inp_mask, params):
    """Run ONCE per sequence: step-invariant attention projection + padding."""
    B, S, H = encoder_outputs.shape
    Hp = _round_up(H, 128)
    Bp = _round_up(max(B, 8), 8)

    enc = encoder_outputs.astype(jnp.float32)
    w_enc = params["w_attn"][:, H:]                            # (H, H) encoder half
    enc_proj = jnp.einsum("bsh,gh->bsg", enc, w_enc,
                          precision=jax.lax.Precision.HIGHEST)  # (B, S, H)

    pad3 = ((0, Bp - B), (0, 0), (0, Hp - H))
    return {
        "enc": jnp.pad(enc, pad3).astype(jnp.bfloat16),
        "enc_proj": jnp.pad(enc_proj, pad3).astype(jnp.bfloat16),
        "mask": jnp.pad(inp_mask.astype(jnp.float32),
                        ((0, Bp - B), (0, 0)), constant_values=1.0),
    }


# -----------------------------------------------------------------------------
# Per-step forward (jitted); only tiny per-step tensors are touched here.
# -----------------------------------------------------------------------------
@functools.partial(jax.jit, static_argnames=("vocab_size",))
def decoder_step(input_q, last_hidden, enc_prep, weights, *, vocab_size):
    h0, c0 = last_hidden                       # each (n_layers=1, B, H)
    B = input_q.shape[0]
    H = h0.shape[-1]
    Bp, S, Hp = enc_prep["enc"].shape
    Ep = weights["emb"].shape[1]
    Vp = weights["w_out_t"].shape[1]
    TILE_V = 1024 if Vp % 1024 == 0 else 128

    ids = jnp.zeros((Bp,), jnp.int32).at[:B].set(input_q.astype(jnp.int32))
    h0p = jnp.zeros((Bp, Hp), jnp.float32).at[:B, :H].set(h0[0].astype(jnp.float32))
    c0p = jnp.zeros((Bp, Hp), jnp.float32).at[:B, :H].set(c0[0].astype(jnp.float32))

    vmem = pl.BlockSpec(memory_space=pltpu.MemorySpace.VMEM)
    smem = pl.BlockSpec(memory_space=pltpu.MemorySpace.SMEM)
    hbm = pl.BlockSpec(memory_space=pl.ANY)

    h_new, c_new, concat_out = pl.pallas_call(
        state_kernel,
        out_shape=(
            jax.ShapeDtypeStruct((Bp, Hp), jnp.float32),
            jax.ShapeDtypeStruct((Bp, Hp), jnp.float32),
            jax.ShapeDtypeStruct((Bp, Hp), jnp.bfloat16),
        ),
        in_specs=[smem, hbm] + [vmem] * 11,
        out_specs=(vmem, vmem, vmem),
        scratch_shapes=[
            pltpu.VMEM((Bp, Ep), jnp.float32),
            pltpu.SemaphoreType.DMA((Bp,)),
        ],
        # in-place state update so a scan decode loop keeps buffers resident
        input_output_aliases={2: 0, 3: 1},
    )(
        ids, weights["emb"], h0p, c0p,
        enc_prep["enc_proj"], enc_prep["enc"], enc_prep["mask"],
        weights["w_xh"], weights["b_lstm"],
        weights["w_dec_cat"], weights["v"],
        weights["wcat_c"], weights["bcat"],
    )

    logits_pad = pl.pallas_call(
        logits_kernel,
        out_shape=jax.ShapeDtypeStruct((Bp, Vp), jnp.float32),
        grid=(Vp // TILE_V,),
        in_specs=[
            pl.BlockSpec((Bp, Hp), lambda j: (0, 0)),
            pl.BlockSpec((Hp, TILE_V), lambda j: (0, j)),
            pl.BlockSpec((1, TILE_V), lambda j: (0, j)),
        ],
        out_specs=pl.BlockSpec((Bp, TILE_V), lambda j: (0, j)),
        compiler_params=pltpu.CompilerParams(
            dimension_semantics=("parallel",)),
    )(concat_out, weights["w_out_t"], weights["b_out"])

    logits = logits_pad[:B, :vocab_size]
    return logits, (h_new[:B, :H][None], c_new[:B, :H][None])


# -----------------------------------------------------------------------------
# Pure-JAX reference (mirrors the PyTorch module exactly).
# -----------------------------------------------------------------------------
def decoder_reference(input_q, last_hidden, encoder_outputs, inp_mask, params):
    h0, c0 = last_hidden
    H = h0.shape[-1]
    emb = params["embedding"][input_q]
    gates = (emb @ params["w_ih"].T + h0[0] @ params["w_hh"].T
             + params["b_ih"] + params["b_hh"])
    i_g = jax.nn.sigmoid(gates[:, :H])
    f_g = jax.nn.sigmoid(gates[:, H:2 * H])
    g_g = jnp.tanh(gates[:, 2 * H:3 * H])
    o_g = jax.nn.sigmoid(gates[:, 3 * H:])
    c_new = f_g * c0[0] + i_g * g_g
    h_new = o_g * jnp.tanh(c_new)
    B, S, _ = encoder_outputs.shape
    h_rep = jnp.broadcast_to(h_new[:, None, :], (B, S, H))
    energy = jnp.tanh(
        jnp.concatenate([h_rep, encoder_outputs], axis=-1) @ params["w_attn"].T)
    scores = jnp.einsum("bsh,h->bs", energy, params["v"])
    a = jax.nn.softmax(scores, axis=-1) * inp_mask
    a = a / (a.sum(-1, keepdims=True) + 1e-10)
    context = jnp.einsum("bs,bsh->bh", a, encoder_outputs)
    concat_out = jnp.tanh(
        jnp.concatenate([h_new, context], axis=-1) @ params["w_concat"].T
        + params["b_concat"])
    logits = concat_out @ params["w_out"].T + params["b_out"]
    return logits, (h_new[None], c_new[None])


if __name__ == "__main__":
    # Small, module-consistent shapes (V > 128 so the V-tiled grid has >1 step).
    B, S, H, E, V = 2, 8, 32, 32, 300

    key = jax.random.PRNGKey(0)
    k_par, k_inp, k_h, k_c, k_enc, k_msk = jax.random.split(key, 6)

    params = init_params(k_par, hidden_size=H, emb_dim=E, vocab_size=V)

    input_q = jax.random.randint(k_inp, (B,), 1, V, dtype=jnp.int32)      # token ids
    h0 = 0.1 * jax.random.normal(k_h, (1, B, H), dtype=jnp.float32)
    c0 = 0.1 * jax.random.normal(k_c, (1, B, H), dtype=jnp.float32)
    encoder_outputs = jax.random.normal(k_enc, (B, S, H), dtype=jnp.float32)
    inp_mask = (jax.random.uniform(k_msk, (B, S)) > 0.3).astype(jnp.float32)
    inp_mask = inp_mask.at[:, 0].set(1.0)   # ensure at least one valid position

    # One-time preparation (per model / per sequence), outside the decode step.
    weights = prepare_weights(params)
    enc_prep = prepare_encoder(encoder_outputs, inp_mask, params)

    logits, (h_new, c_new) = decoder_step(
        input_q, (h0, c0), enc_prep, weights, vocab_size=V)
    jax.block_until_ready((logits, h_new, c_new))

    assert logits.shape == (B, V)
    assert h_new.shape == (1, B, H) and c_new.shape == (1, B, H)
    assert bool(jnp.all(jnp.isfinite(logits)))

    # Numerics vs. pure-JAX f32 reference (bf16 weights/activations + approx
    # reciprocal introduce small deviations -> loose tolerance).
    ref_logits, (ref_h, ref_c) = decoder_reference(
        input_q, (h0, c0), encoder_outputs, inp_mask, params)
    assert bool(jnp.allclose(logits, ref_logits, atol=5e-2, rtol=5e-2))
    assert bool(jnp.allclose(h_new, ref_h, atol=1e-2, rtol=1e-2))
    assert bool(jnp.allclose(c_new, ref_c, atol=1e-2, rtol=1e-2))

    print("KERNEL_OK")
</pallas_src>

<mosaic_0001>
module attributes {stable_mosaic.version = 11 : i64} {
  func.func @state_kernel(%arg0: memref<8xi32, #tpu.memory_space<smem>>, %arg1: memref<300x128xf32, #tpu.memory_space<any>>, %arg2: memref<8x128xf32, #tpu.memory_space<vmem>>, %arg3: memref<8x128xf32, #tpu.memory_space<vmem>>, %arg4: memref<8x8x128xbf16, #tpu.memory_space<vmem>>, %arg5: memref<8x8x128xbf16, #tpu.memory_space<vmem>>, %arg6: memref<8x8xf32, #tpu.memory_space<vmem>>, %arg7: memref<256x512xbf16, #tpu.memory_space<vmem>>, %arg8: memref<1x512xf32, #tpu.memory_space<vmem>>, %arg9: memref<128x256xbf16, #tpu.memory_space<vmem>>, %arg10: memref<1x128xf32, #tpu.memory_space<vmem>>, %arg11: memref<128x128xbf16, #tpu.memory_space<vmem>>, %arg12: memref<1x128xf32, #tpu.memory_space<vmem>>, %arg13: memref<8x128xf32, #tpu.memory_space<vmem>>, %arg14: memref<8x128xf32, #tpu.memory_space<vmem>>, %arg15: memref<8x128xbf16, #tpu.memory_space<vmem>>, %arg16: memref<8x128xf32, #tpu.memory_space<vmem>>, %arg17: memref<8x!tpu.dma_semaphore, #tpu.memory_space<semaphore_mem>>) attributes {dimension_semantics = [], scalar_prefetch = 0 : i64, scratch_operands = 2 : i64, tpu.core_type = #tpu.core_type<tc>} {
    %c0 = arith.constant 0 : index
    %0 = memref.load %arg0[%c0] : memref<8xi32, #tpu.memory_space<smem>>
    %c0_i32 = arith.constant 0 : i32
    %c0_i32_0 = arith.constant 0 : i32
    %1 = tpu.memref_slice %arg1[%0, %c0_i32_0] : memref<300x128xf32, #tpu.memory_space<any>> -> memref<1x128xf32, #tpu.memory_space<any>>
    %c0_i32_1 = arith.constant 0 : i32
    %c0_i32_2 = arith.constant 0 : i32
    %2 = tpu.memref_slice %arg16[%c0_i32_1, %c0_i32_2] : memref<8x128xf32, #tpu.memory_space<vmem>> -> memref<1x128xf32, #tpu.memory_space<vmem>>
    %3 = tpu.memref_slice %arg17[%c0_i32] : memref<8x!tpu.dma_semaphore, #tpu.memory_space<semaphore_mem>> -> memref<1x!tpu.dma_semaphore, #tpu.memory_space<semaphore_mem>>
    %4 = tpu.memref_squeeze %3 : memref<1x!tpu.dma_semaphore, #tpu.memory_space<semaphore_mem>> -> memref<!tpu.dma_semaphore, #tpu.memory_space<semaphore_mem>>
    tpu.enqueue_dma source(%1 : memref<1x128xf32, #tpu.memory_space<any>>) target(%2 : memref<1x128xf32, #tpu.memory_space<vmem>>) target_semaphore(%4 : memref<!tpu.dma_semaphore, #tpu.memory_space<semaphore_mem>>)
    %c1 = arith.constant 1 : index
    %5 = memref.load %arg0[%c1] : memref<8xi32, #tpu.memory_space<smem>>
    %c1_i32 = arith.constant 1 : i32
    %c0_i32_3 = arith.constant 0 : i32
    %6 = tpu.memref_slice %arg1[%5, %c0_i32_3] : memref<300x128xf32, #tpu.memory_space<any>> -> memref<1x128xf32, #tpu.memory_space<any>>
    %c1_i32_4 = arith.constant 1 : i32
    %c0_i32_5 = arith.constant 0 : i32
    %7 = tpu.memref_slice %arg16[%c1_i32_4, %c0_i32_5] : memref<8x128xf32, #tpu.memory_space<vmem>> -> memref<1x128xf32, #tpu.memory_space<vmem>>
    %8 = tpu.memref_slice %arg17[%c1_i32] : memref<8x!tpu.dma_semaphore, #tpu.memory_space<semaphore_mem>> -> memref<1x!tpu.dma_semaphore, #tpu.memory_space<semaphore_mem>>
    %9 = tpu.memref_squeeze %8 : memref<1x!tpu.dma_semaphore, #tpu.memory_space<semaphore_mem>> -> memref<!tpu.dma_semaphore, #tpu.memory_space<semaphore_mem>>
    tpu.enqueue_dma source(%6 : memref<1x128xf32, #tpu.memory_space<any>>) target(%7 : memref<1x128xf32, #tpu.memory_space<vmem>>) target_semaphore(%9 : memref<!tpu.dma_semaphore, #tpu.memory_space<semaphore_mem>>)
    %c2 = arith.constant 2 : index
    %10 = memref.load %arg0[%c2] : memref<8xi32, #tpu.memory_space<smem>>
    %c2_i32 = arith.constant 2 : i32
    %c0_i32_6 = arith.constant 0 : i32
    %11 = tpu.memref_slice %arg1[%10, %c0_i32_6] : memref<300x128xf32, #tpu.memory_space<any>> -> memref<1x128xf32, #tpu.memory_space<any>>
    %c2_i32_7 = arith.constant 2 : i32
    %c0_i32_8 = arith.constant 0 : i32
    %12 = tpu.memref_slice %arg16[%c2_i32_7, %c0_i32_8] : memref<8x128xf32, #tpu.memory_space<vmem>> -> memref<1x128xf32, #tpu.memory_space<vmem>>
    %13 = tpu.memref_slice %arg17[%c2_i32] : memref<8x!tpu.dma_semaphore, #tpu.memory_space<semaphore_mem>> -> memref<1x!tpu.dma_semaphore, #tpu.memory_space<semaphore_mem>>
    %14 = tpu.memref_squeeze %13 : memref<1x!tpu.dma_semaphore, #tpu.memory_space<semaphore_mem>> -> memref<!tpu.dma_semaphore, #tpu.memory_space<semaphore_mem>>
    tpu.enqueue_dma source(%11 : memref<1x128xf32, #tpu.memory_space<any>>) target(%12 : memref<1x128xf32, #tpu.memory_space<vmem>>) target_semaphore(%14 : memref<!tpu.dma_semaphore, #tpu.memory_space<semaphore_mem>>)
    %c3 = arith.constant 3 : index
    %15 = memref.load %arg0[%c3] : memref<8xi32, #tpu.memory_space<smem>>
    %c3_i32 = arith.constant 3 : i32
    %c0_i32_9 = arith.constant 0 : i32
    %16 = tpu.memref_slice %arg1[%15, %c0_i32_9] : memref<300x128xf32, #tpu.memory_space<any>> -> memref<1x128xf32, #tpu.memory_space<any>>
    %c3_i32_10 = arith.constant 3 : i32
    %c0_i32_11 = arith.constant 0 : i32
    %17 = tpu.memref_slice %arg16[%c3_i32_10, %c0_i32_11] : memref<8x128xf32, #tpu.memory_space<vmem>> -> memref<1x128xf32, #tpu.memory_space<vmem>>
    %18 = tpu.memref_slice %arg17[%c3_i32] : memref<8x!tpu.dma_semaphore, #tpu.memory_space<semaphore_mem>> -> memref<1x!tpu.dma_semaphore, #tpu.memory_space<semaphore_mem>>
    %19 = tpu.memref_squeeze %18 : memref<1x!tpu.dma_semaphore, #tpu.memory_space<semaphore_mem>> -> memref<!tpu.dma_semaphore, #tpu.memory_space<semaphore_mem>>
    tpu.enqueue_dma source(%16 : memref<1x128xf32, #tpu.memory_space<any>>) target(%17 : memref<1x128xf32, #tpu.memory_space<vmem>>) target_semaphore(%19 : memref<!tpu.dma_semaphore, #tpu.memory_space<semaphore_mem>>)
    %c4 = arith.constant 4 : index
    %20 = memref.load %arg0[%c4] : memref<8xi32, #tpu.memory_space<smem>>
    %c4_i32 = arith.constant 4 : i32
    %c0_i32_12 = arith.constant 0 : i32
    %21 = tpu.memref_slice %arg1[%20, %c0_i32_12] : memref<300x128xf32, #tpu.memory_space<any>> -> memref<1x128xf32, #tpu.memory_space<any>>
    %c4_i32_13 = arith.constant 4 : i32
    %c0_i32_14 = arith.constant 0 : i32
    %22 = tpu.memref_slice %arg16[%c4_i32_13, %c0_i32_14] : memref<8x128xf32, #tpu.memory_space<vmem>> -> memref<1x128xf32, #tpu.memory_space<vmem>>
    %23 = tpu.memref_slice %arg17[%c4_i32] : memref<8x!tpu.dma_semaphore, #tpu.memory_space<semaphore_mem>> -> memref<1x!tpu.dma_semaphore, #tpu.memory_space<semaphore_mem>>
    %24 = tpu.memref_squeeze %23 : memref<1x!tpu.dma_semaphore, #tpu.memory_space<semaphore_mem>> -> memref<!tpu.dma_semaphore, #tpu.memory_space<semaphore_mem>>
    tpu.enqueue_dma source(%21 : memref<1x128xf32, #tpu.memory_space<any>>) target(%22 : memref<1x128xf32, #tpu.memory_space<vmem>>) target_semaphore(%24 : memref<!tpu.dma_semaphore, #tpu.memory_space<semaphore_mem>>)
    %c5 = arith.constant 5 : index
    %25 = memref.load %arg0[%c5] : memref<8xi32, #tpu.memory_space<smem>>
    %c5_i32 = arith.constant 5 : i32
    %c0_i32_15 = arith.constant 0 : i32
    %26 = tpu.memref_slice %arg1[%25, %c0_i32_15] : memref<300x128xf32, #tpu.memory_space<any>> -> memref<1x128xf32, #tpu.memory_space<any>>
    %c5_i32_16 = arith.constant 5 : i32
    %c0_i32_17 = arith.constant 0 : i32
    %27 = tpu.memref_slice %arg16[%c5_i32_16, %c0_i32_17] : memref<8x128xf32, #tpu.memory_space<vmem>> -> memref<1x128xf32, #tpu.memory_space<vmem>>
    %28 = tpu.memref_slice %arg17[%c5_i32] : memref<8x!tpu.dma_semaphore, #tpu.memory_space<semaphore_mem>> -> memref<1x!tpu.dma_semaphore, #tpu.memory_space<semaphore_mem>>
    %29 = tpu.memref_squeeze %28 : memref<1x!tpu.dma_semaphore, #tpu.memory_space<semaphore_mem>> -> memref<!tpu.dma_semaphore, #tpu.memory_space<semaphore_mem>>
    tpu.enqueue_dma source(%26 : memref<1x128xf32, #tpu.memory_space<any>>) target(%27 : memref<1x128xf32, #tpu.memory_space<vmem>>) target_semaphore(%29 : memref<!tpu.dma_semaphore, #tpu.memory_space<semaphore_mem>>)
    %c6 = arith.constant 6 : index
    %30 = memref.load %arg0[%c6] : memref<8xi32, #tpu.memory_space<smem>>
    %c6_i32 = arith.constant 6 : i32
    %c0_i32_18 = arith.constant 0 : i32
    %31 = tpu.memref_slice %arg1[%30, %c0_i32_18] : memref<300x128xf32, #tpu.memory_space<any>> -> memref<1x128xf32, #tpu.memory_space<any>>
    %c6_i32_19 = arith.constant 6 : i32
    %c0_i32_20 = arith.constant 0 : i32
    %32 = tpu.memref_slice %arg16[%c6_i32_19, %c0_i32_20] : memref<8x128xf32, #tpu.memory_space<vmem>> -> memref<1x128xf32, #tpu.memory_space<vmem>>
    %33 = tpu.memref_slice %arg17[%c6_i32] : memref<8x!tpu.dma_semaphore, #tpu.memory_space<semaphore_mem>> -> memref<1x!tpu.dma_semaphore, #tpu.memory_space<semaphore_mem>>
    %34 = tpu.memref_squeeze %33 : memref<1x!tpu.dma_semaphore, #tpu.memory_space<semaphore_mem>> -> memref<!tpu.dma_semaphore, #tpu.memory_space<semaphore_mem>>
    tpu.enqueue_dma source(%31 : memref<1x128xf32, #tpu.memory_space<any>>) target(%32 : memref<1x128xf32, #tpu.memory_space<vmem>>) target_semaphore(%34 : memref<!tpu.dma_semaphore, #tpu.memory_space<semaphore_mem>>)
    %c7 = arith.constant 7 : index
    %35 = memref.load %arg0[%c7] : memref<8xi32, #tpu.memory_space<smem>>
    %c7_i32 = arith.constant 7 : i32
    %c0_i32_21 = arith.constant 0 : i32
    %36 = tpu.memref_slice %arg1[%35, %c0_i32_21] : memref<300x128xf32, #tpu.memory_space<any>> -> memref<1x128xf32, #tpu.memory_space<any>>
    %c7_i32_22 = arith.constant 7 : i32
    %c0_i32_23 = arith.constant 0 : i32
    %37 = tpu.memref_slice %arg16[%c7_i32_22, %c0_i32_23] : memref<8x128xf32, #tpu.memory_space<vmem>> -> memref<1x128xf32, #tpu.memory_space<vmem>>
    %38 = tpu.memref_slice %arg17[%c7_i32] : memref<8x!tpu.dma_semaphore, #tpu.memory_space<semaphore_mem>> -> memref<1x!tpu.dma_semaphore, #tpu.memory_space<semaphore_mem>>
    %39 = tpu.memref_squeeze %38 : memref<1x!tpu.dma_semaphore, #tpu.memory_space<semaphore_mem>> -> memref<!tpu.dma_semaphore, #tpu.memory_space<semaphore_mem>>
    tpu.enqueue_dma source(%36 : memref<1x128xf32, #tpu.memory_space<any>>) target(%37 : memref<1x128xf32, #tpu.memory_space<vmem>>) target_semaphore(%39 : memref<!tpu.dma_semaphore, #tpu.memory_space<semaphore_mem>>)
    %c0_i32_24 = arith.constant 0 : i32
    %c0_i32_25 = arith.constant 0 : i32
    %40 = tpu.memref_slice %arg1[%0, %c0_i32_25] : memref<300x128xf32, #tpu.memory_space<any>> -> memref<1x128xf32, #tpu.memory_space<any>>
    %c0_i32_26 = arith.constant 0 : i32
    %c0_i32_27 = arith.constant 0 : i32
    %41 = tpu.memref_slice %arg16[%c0_i32_26, %c0_i32_27] : memref<8x128xf32, #tpu.memory_space<vmem>> -> memref<1x128xf32, #tpu.memory_space<vmem>>
    %42 = tpu.memref_slice %arg17[%c0_i32_24] : memref<8x!tpu.dma_semaphore, #tpu.memory_space<semaphore_mem>> -> memref<1x!tpu.dma_semaphore, #tpu.memory_space<semaphore_mem>>
    %43 = tpu.memref_squeeze %42 : memref<1x!tpu.dma_semaphore, #tpu.memory_space<semaphore_mem>> -> memref<!tpu.dma_semaphore, #tpu.memory_space<semaphore_mem>>
    tpu.wait_dma2 semaphore(%43 : memref<!tpu.dma_semaphore, #tpu.memory_space<semaphore_mem>>) src(%40 : memref<1x128xf32, #tpu.memory_space<any>>) dst(%41 : memref<1x128xf32, #tpu.memory_space<vmem>>)
    %c1_i32_28 = arith.constant 1 : i32
    %c0_i32_29 = arith.constant 0 : i32
    %44 = tpu.memref_slice %arg1[%5, %c0_i32_29] : memref<300x128xf32, #tpu.memory_space<any>> -> memref<1x128xf32, #tpu.memory_space<any>>
    %c1_i32_30 = arith.constant 1 : i32
    %c0_i32_31 = arith.constant 0 : i32
    %45 = tpu.memref_slice %arg16[%c1_i32_30, %c0_i32_31] : memref<8x128xf32, #tpu.memory_space<vmem>> -> memref<1x128xf32, #tpu.memory_space<vmem>>
    %46 = tpu.memref_slice %arg17[%c1_i32_28] : memref<8x!tpu.dma_semaphore, #tpu.memory_space<semaphore_mem>> -> memref<1x!tpu.dma_semaphore, #tpu.memory_space<semaphore_mem>>
    %47 = tpu.memref_squeeze %46 : memref<1x!tpu.dma_semaphore, #tpu.memory_space<semaphore_mem>> -> memref<!tpu.dma_semaphore, #tpu.memory_space<semaphore_mem>>
    tpu.wait_dma2 semaphore(%47 : memref<!tpu.dma_semaphore, #tpu.memory_space<semaphore_mem>>) src(%44 : memref<1x128xf32, #tpu.memory_space<any>>) dst(%45 : memref<1x128xf32, #tpu.memory_space<vmem>>)
    %c2_i32_32 = arith.constant 2 : i32
    %c0_i32_33 = arith.constant 0 : i32
    %48 = tpu.memref_slice %arg1[%10, %c0_i32_33] : memref<300x128xf32, #tpu.memory_space<any>> -> memref<1x128xf32, #tpu.memory_space<any>>
    %c2_i32_34 = arith.constant 2 : i32
    %c0_i32_35 = arith.constant 0 : i32
    %49 = tpu.memref_slice %arg16[%c2_i32_34, %c0_i32_35] : memref<8x128xf32, #tpu.memory_space<vmem>> -> memref<1x128xf32, #tpu.memory_space<vmem>>
    %50 = tpu.memref_slice %arg17[%c2_i32_32] : memref<8x!tpu.dma_semaphore, #tpu.memory_space<semaphore_mem>> -> memref<1x!tpu.dma_semaphore, #tpu.memory_space<semaphore_mem>>
    %51 = tpu.memref_squeeze %50 : memref<1x!tpu.dma_semaphore, #tpu.memory_space<semaphore_mem>> -> memref<!tpu.dma_semaphore, #tpu.memory_space<semaphore_mem>>
    tpu.wait_dma2 semaphore(%51 : memref<!tpu.dma_semaphore, #tpu.memory_space<semaphore_mem>>) src(%48 : memref<1x128xf32, #tpu.memory_space<any>>) dst(%49 : memref<1x128xf32, #tpu.memory_space<vmem>>)
    %c3_i32_36 = arith.constant 3 : i32
    %c0_i32_37 = arith.constant 0 : i32
    %52 = tpu.memref_slice %arg1[%15, %c0_i32_37] : memref<300x128xf32, #tpu.memory_space<any>> -> memref<1x128xf32, #tpu.memory_space<any>>
    %c3_i32_38 = arith.constant 3 : i32
    %c0_i32_39 = arith.constant 0 : i32
    %53 = tpu.memref_slice %arg16[%c3_i32_38, %c0_i32_39] : memref<8x128xf32, #tpu.memory_space<vmem>> -> memref<1x128xf32, #tpu.memory_space<vmem>>
    %54 = tpu.memref_slice %arg17[%c3_i32_36] : memref<8x!tpu.dma_semaphore, #tpu.memory_space<semaphore_mem>> -> memref<1x!tpu.dma_semaphore, #tpu.memory_space<semaphore_mem>>
    %55 = tpu.memref_squeeze %54 : memref<1x!tpu.dma_semaphore, #tpu.memory_space<semaphore_mem>> -> memref<!tpu.dma_semaphore, #tpu.memory_space<semaphore_mem>>
    tpu.wait_dma2 semaphore(%55 : memref<!tpu.dma_semaphore, #tpu.memory_space<semaphore_mem>>) src(%52 : memref<1x128xf32, #tpu.memory_space<any>>) dst(%53 : memref<1x128xf32, #tpu.memory_space<vmem>>)
    %c4_i32_40 = arith.constant 4 : i32
    %c0_i32_41 = arith.constant 0 : i32
    %56 = tpu.memref_slice %arg1[%20, %c0_i32_41] : memref<300x128xf32, #tpu.memory_space<any>> -> memref<1x128xf32, #tpu.memory_space<any>>
    %c4_i32_42 = arith.constant 4 : i32
    %c0_i32_43 = arith.constant 0 : i32
    %57 = tpu.memref_slice %arg16[%c4_i32_42, %c0_i32_43] : memref<8x128xf32, #tpu.memory_space<vmem>> -> memref<1x128xf32, #tpu.memory_space<vmem>>
    %58 = tpu.memref_slice %arg17[%c4_i32_40] : memref<8x!tpu.dma_semaphore, #tpu.memory_space<semaphore_mem>> -> memref<1x!tpu.dma_semaphore, #tpu.memory_space<semaphore_mem>>
    %59 = tpu.memref_squeeze %58 : memref<1x!tpu.dma_semaphore, #tpu.memory_space<semaphore_mem>> -> memref<!tpu.dma_semaphore, #tpu.memory_space<semaphore_mem>>
    tpu.wait_dma2 semaphore(%59 : memref<!tpu.dma_semaphore, #tpu.memory_space<semaphore_mem>>) src(%56 : memref<1x128xf32, #tpu.memory_space<any>>) dst(%57 : memref<1x128xf32, #tpu.memory_space<vmem>>)
    %c5_i32_44 = arith.constant 5 : i32
    %c0_i32_45 = arith.constant 0 : i32
    %60 = tpu.memref_slice %arg1[%25, %c0_i32_45] : memref<300x128xf32, #tpu.memory_space<any>> -> memref<1x128xf32, #tpu.memory_space<any>>
    %c5_i32_46 = arith.constant 5 : i32
    %c0_i32_47 = arith.constant 0 : i32
    %61 = tpu.memref_slice %arg16[%c5_i32_46, %c0_i32_47] : memref<8x128xf32, #tpu.memory_space<vmem>> -> memref<1x128xf32, #tpu.memory_space<vmem>>
    %62 = tpu.memref_slice %arg17[%c5_i32_44] : memref<8x!tpu.dma_semaphore, #tpu.memory_space<semaphore_mem>> -> memref<1x!tpu.dma_semaphore, #tpu.memory_space<semaphore_mem>>
    %63 = tpu.memref_squeeze %62 : memref<1x!tpu.dma_semaphore, #tpu.memory_space<semaphore_mem>> -> memref<!tpu.dma_semaphore, #tpu.memory_space<semaphore_mem>>
    tpu.wait_dma2 semaphore(%63 : memref<!tpu.dma_semaphore, #tpu.memory_space<semaphore_mem>>) src(%60 : memref<1x128xf32, #tpu.memory_space<any>>) dst(%61 : memref<1x128xf32, #tpu.memory_space<vmem>>)
    %c6_i32_48 = arith.constant 6 : i32
    %c0_i32_49 = arith.constant 0 : i32
    %64 = tpu.memref_slice %arg1[%30, %c0_i32_49] : memref<300x128xf32, #tpu.memory_space<any>> -> memref<1x128xf32, #tpu.memory_space<any>>
    %c6_i32_50 = arith.constant 6 : i32
    %c0_i32_51 = arith.constant 0 : i32
    %65 = tpu.memref_slice %arg16[%c6_i32_50, %c0_i32_51] : memref<8x128xf32, #tpu.memory_space<vmem>> -> memref<1x128xf32, #tpu.memory_space<vmem>>
    %66 = tpu.memref_slice %arg17[%c6_i32_48] : memref<8x!tpu.dma_semaphore, #tpu.memory_space<semaphore_mem>> -> memref<1x!tpu.dma_semaphore, #tpu.memory_space<semaphore_mem>>
    %67 = tpu.memref_squeeze %66 : memref<1x!tpu.dma_semaphore, #tpu.memory_space<semaphore_mem>> -> memref<!tpu.dma_semaphore, #tpu.memory_space<semaphore_mem>>
    tpu.wait_dma2 semaphore(%67 : memref<!tpu.dma_semaphore, #tpu.memory_space<semaphore_mem>>) src(%64 : memref<1x128xf32, #tpu.memory_space<any>>) dst(%65 : memref<1x128xf32, #tpu.memory_space<vmem>>)
    %c7_i32_52 = arith.constant 7 : i32
    %c0_i32_53 = arith.constant 0 : i32
    %68 = tpu.memref_slice %arg1[%35, %c0_i32_53] : memref<300x128xf32, #tpu.memory_space<any>> -> memref<1x128xf32, #tpu.memory_space<any>>
    %c7_i32_54 = arith.constant 7 : i32
    %c0_i32_55 = arith.constant 0 : i32
    %69 = tpu.memref_slice %arg16[%c7_i32_54, %c0_i32_55] : memref<8x128xf32, #tpu.memory_space<vmem>> -> memref<1x128xf32, #tpu.memory_space<vmem>>
    %70 = tpu.memref_slice %arg17[%c7_i32_52] : memref<8x!tpu.dma_semaphore, #tpu.memory_space<semaphore_mem>> -> memref<1x!tpu.dma_semaphore, #tpu.memory_space<semaphore_mem>>
    %71 = tpu.memref_squeeze %70 : memref<1x!tpu.dma_semaphore, #tpu.memory_space<semaphore_mem>> -> memref<!tpu.dma_semaphore, #tpu.memory_space<semaphore_mem>>
    tpu.wait_dma2 semaphore(%71 : memref<!tpu.dma_semaphore, #tpu.memory_space<semaphore_mem>>) src(%68 : memref<1x128xf32, #tpu.memory_space<any>>) dst(%69 : memref<1x128xf32, #tpu.memory_space<vmem>>)
    %c0_56 = arith.constant 0 : index
    %c0_57 = arith.constant 0 : index
    %72 = vector.load %arg2[%c0_56, %c0_57] : memref<8x128xf32, #tpu.memory_space<vmem>>, vector<8x128xf32>
    %c0_58 = arith.constant 0 : index
    %c0_59 = arith.constant 0 : index
    %73 = vector.load %arg3[%c0_58, %c0_59] : memref<8x128xf32, #tpu.memory_space<vmem>>, vector<8x128xf32>
    %c0_60 = arith.constant 0 : index
    %c0_61 = arith.constant 0 : index
    %74 = vector.load %arg16[%c0_60, %c0_61] : memref<8x128xf32, #tpu.memory_space<vmem>>, vector<8x128xf32>
    %75 = tpu.concatenate %74, %72 in 1 : vector<8x128xf32>, vector<8x128xf32> -> vector<8x256xf32>
    %76 = arith.truncf %75 : vector<8x256xf32> to vector<8x256xbf16>
    %c0_62 = arith.constant 0 : index
    %c0_63 = arith.constant 0 : index
    %77 = vector.load %arg7[%c0_62, %c0_63] : memref<256x512xbf16, #tpu.memory_space<vmem>>, vector<256x512xbf16>
    %cst = arith.constant dense<0.000000e+00> : vector<8x512xf32>
    %78 = tpu.matmul %76, %77, %cst {dimension_numbers = #tpu.dot_dimension_numbers<[1], [0], [0], [1], [0, 0, 1, 1], [], []>} : vector<8x256xbf16>, vector<256x512xbf16>, vector<8x512xf32> -> vector<8x512xf32>
    %c0_64 = arith.constant 0 : index
    %c0_65 = arith.constant 0 : index
    %79 = vector.load %arg8[%c0_64, %c0_65] : memref<1x512xf32, #tpu.memory_space<vmem>>, vector<1x512xf32>
    %80 = vector.broadcast %79 : vector<1x512xf32> to vector<8x512xf32>
    %81 = arith.addf %78, %80 : vector<8x512xf32>
    %82 = vector.extract_strided_slice %81 {offsets = [0, 0], sizes = [8, 128], strides = [1, 1]} : vector<8x512xf32> to vector<8x128xf32>
    %83 = arith.negf %82 : vector<8x128xf32>
    %84 = math.exp %83 : vector<8x128xf32>
    %cst_66 = arith.constant 1.000000e+00 : f32
    %85 = vector.broadcast %cst_66 : f32 to vector<8x128xf32>
    %86 = arith.addf %85, %84 : vector<8x128xf32>
    %87 = arith.divf %85, %86 : vector<8x128xf32>
    %88 = vector.extract_strided_slice %81 {offsets = [0, 128], sizes = [8, 128], strides = [1, 1]} : vector<8x512xf32> to vector<8x128xf32>
    %89 = arith.negf %88 : vector<8x128xf32>
    %90 = math.exp %89 : vector<8x128xf32>
    %cst_67 = arith.constant 1.000000e+00 : f32
    %91 = vector.broadcast %cst_67 : f32 to vector<8x128xf32>
    %92 = arith.addf %91, %90 : vector<8x128xf32>
    %93 = arith.divf %91, %92 : vector<8x128xf32>
    %94 = vector.extract_strided_slice %81 {offsets = [0, 256], sizes = [8, 128], strides = [1, 1]} : vector<8x512xf32> to vector<8x128xf32>
    %95 = math.tanh %94 : vector<8x128xf32>
    %96 = vector.extract_strided_slice %81 {offsets = [0, 384], sizes = [8, 128], strides = [1, 1]} : vector<8x512xf32> to vector<8x128xf32>
    %97 = arith.negf %96 : vector<8x128xf32>
    %98 = math.exp %97 : vector<8x128xf32>
    %cst_68 = arith.constant 1.000000e+00 : f32
    %99 = vector.broadcast %cst_68 : f32 to vector<8x128xf32>
    %100 = arith.addf %99, %98 : vector<8x128xf32>
    %101 = arith.divf %99, %100 : vector<8x128xf32>
    %102 = arith.mulf %93, %73 : vector<8x128xf32>
    %103 = arith.mulf %87, %95 : vector<8x128xf32>
    %104 = arith.addf %102, %103 : vector<8x128xf32>
    %105 = math.tanh %104 : vector<8x128xf32>
    %106 = arith.mulf %101, %105 : vector<8x128xf32>
    %107 = arith.truncf %106 : vector<8x128xf32> to vector<8x128xbf16>
    %c0_69 = arith.constant 0 : index
    %c0_70 = arith.constant 0 : index
    %108 = vector.load %arg9[%c0_69, %c0_70] : memref<128x256xbf16, #tpu.memory_space<vmem>>, vector<128x256xbf16>
    %cst_71 = arith.constant dense<0.000000e+00> : vector<8x256xf32>
    %109 = tpu.matmul %107, %108, %cst_71 {dimension_numbers = #tpu.dot_dimension_numbers<[1], [0], [0], [1], [0, 0, 1, 1], [], []>} : vector<8x128xbf16>, vector<128x256xbf16>, vector<8x256xf32> -> vector<8x256xf32>
    %110 = vector.extract_strided_slice %109 {offsets = [0, 0], sizes = [8, 128], strides = [1, 1]} : vector<8x256xf32> to vector<8x128xf32>
    %111 = vector.extract_strided_slice %109 {offsets = [0, 128], sizes = [8, 128], strides = [1, 1]} : vector<8x256xf32> to vector<8x128xf32>
    %112 = vector.shape_cast %110 : vector<8x128xf32> to vector<8x1x128xf32>
    %c0_72 = arith.constant 0 : index
    %c0_73 = arith.constant 0 : index
    %c0_74 = arith.constant 0 : index
    %113 = vector.load %arg4[%c0_72, %c0_73, %c0_74] : memref<8x8x128xbf16, #tpu.memory_space<vmem>>, vector<8x8x128xbf16>
    %114 = arith.extf %113 : vector<8x8x128xbf16> to vector<8x8x128xf32>
    %115 = vector.broadcast %112 : vector<8x1x128xf32> to vector<8x8x128xf32>
    %116 = arith.addf %115, %114 : vector<8x8x128xf32>
    %117 = math.tanh %116 : vector<8x8x128xf32>
    %c0_75 = arith.constant 0 : index
    %c0_76 = arith.constant 0 : index
    %118 = vector.load %arg10[%c0_75, %c0_76] : memref<1x128xf32, #tpu.memory_space<vmem>>, vector<1x128xf32>
    %119 = vector.shape_cast %118 : vector<1x128xf32> to vector<1x1x128xf32>
    %120 = vector.broadcast %119 : vector<1x1x128xf32> to vector<8x8x128xf32>
    %121 = arith.mulf %117, %120 : vector<8x8x128xf32>
    %cst_77 = arith.constant dense<0.000000e+00> : vector<8x8xf32>
    %122 = vector.multi_reduction <add>, %121, %cst_77 [2] : vector<8x8x128xf32> to vector<8x8xf32>
    %c0_78 = arith.constant 0 : index
    %c0_79 = arith.constant 0 : index
    %123 = vector.load %arg6[%c0_78, %c0_79] : memref<8x8xf32, #tpu.memory_space<vmem>>, vector<8x8xf32>
    %cst_80 = arith.constant 1.000000e+00 : f32
    %124 = vector.broadcast %cst_80 : f32 to vector<8x8xf32>
    %125 = arith.subf %123, %124 : vector<8x8xf32>
    %cst_81 = arith.constant 1.000000e+09 : f32
    %126 = vector.broadcast %cst_81 : f32 to vector<8x8xf32>
    %127 = arith.mulf %125, %126 : vector<8x8xf32>
    %128 = arith.addf %122, %127 : vector<8x8xf32>
    %cst_82 = arith.constant dense<0xFF800000> : vector<8xf32>
    %129 = vector.multi_reduction <maximumf>, %128, %cst_82 [1] : vector<8x8xf32> to vector<8xf32>
    %130 = vector.shape_cast %129 : vector<8xf32> to vector<8x1xf32>
    %131 = vector.broadcast %130 : vector<8x1xf32> to vector<8x8xf32>
    %132 = arith.subf %128, %131 : vector<8x8xf32>
    %133 = math.exp %132 : vector<8x8xf32>
    %134 = arith.mulf %133, %123 : vector<8x8xf32>
    %cst_83 = arith.constant dense<0.000000e+00> : vector<8xf32>
    %135 = vector.multi_reduction <add>, %134, %cst_83 [1] : vector<8x8xf32> to vector<8xf32>
    %136 = vector.shape_cast %135 : vector<8xf32> to vector<8x1xf32>
    %cst_84 = arith.constant 1.000000e-10 : f32
    %137 = vector.broadcast %cst_84 : f32 to vector<8x1xf32>
    %138 = arith.addf %136, %137 : vector<8x1xf32>
    %139 = tpu.reciprocal %138 {approx = true} : vector<8x1xf32> -> vector<8x1xf32>
    %140 = vector.broadcast %139 : vector<8x1xf32> to vector<8x8xf32>
    %141 = arith.mulf %134, %140 : vector<8x8xf32>
    %142 = vector.shape_cast %141 : vector<8x8xf32> to vector<8x1x8xf32>
    %143 = arith.truncf %142 : vector<8x1x8xf32> to vector<8x1x8xbf16>
    %c0_85 = arith.constant 0 : index
    %c0_86 = arith.constant 0 : index
    %c0_87 = arith.constant 0 : index
    %144 = vector.load %arg5[%c0_85, %c0_86, %c0_87] : memref<8x8x128xbf16, #tpu.memory_space<vmem>>, vector<8x8x128xbf16>
    "tpu.trace_start"() <{level = 10 : i32, message = "bqs,bsh->bqh"}> : () -> ()
    %cst_88 = arith.constant dense<0.000000e+00> : vector<8x1x128xf32>
    %145 = tpu.matmul %143, %144, %cst_88 {dimension_numbers = #tpu.dot_dimension_numbers<[2], [1], [1], [2], [0, 0, 0, 1, 1, 2], [0], [0]>} : vector<8x1x8xbf16>, vector<8x8x128xbf16>, vector<8x1x128xf32> -> vector<8x1x128xf32>
    "tpu.trace_stop"() : () -> ()
    %146 = vector.shape_cast %145 : vector<8x1x128xf32> to vector<8x128xf32>
    %147 = arith.truncf %146 : vector<8x128xf32> to vector<8x128xbf16>
    %c0_89 = arith.constant 0 : index
    %c0_90 = arith.constant 0 : index
    %148 = vector.load %arg11[%c0_89, %c0_90] : memref<128x128xbf16, #tpu.memory_space<vmem>>, vector<128x128xbf16>
    %cst_91 = arith.constant dense<0.000000e+00> : vector<8x128xf32>
    %149 = tpu.matmul %147, %148, %cst_91 {dimension_numbers = #tpu.dot_dimension_numbers<[1], [0], [0], [1], [0, 0, 1, 1], [], []>} : vector<8x128xbf16>, vector<128x128xbf16>, vector<8x128xf32> -> vector<8x128xf32>
    %150 = arith.addf %111, %149 : vector<8x128xf32>
    %c0_92 = arith.constant 0 : index
    %c0_93 = arith.constant 0 : index
    %151 = vector.load %arg12[%c0_92, %c0_93] : memref<1x128xf32, #tpu.memory_space<vmem>>, vector<1x128xf32>
    %152 = vector.broadcast %151 : vector<1x128xf32> to vector<8x128xf32>
    %153 = arith.addf %150, %152 : vector<8x128xf32>
    %154 = math.tanh %153 : vector<8x128xf32>
    %c0_94 = arith.constant 0 : index
    %c0_95 = arith.constant 0 : index
    %155 = vector.load %arg13[%c0_94, %c0_95] : memref<8x128xf32, #tpu.memory_space<vmem>>, vector<8x128xf32>
    tpu.vector_store %arg13[%c0_94, %c0_95], %106 {strides = array<i32>} : memref<8x128xf32, #tpu.memory_space<vmem>>, vector<8x128xf32>,
    %c0_96 = arith.constant 0 : index
    %c0_97 = arith.constant 0 : index
    %156 = vector.load %arg14[%c0_96, %c0_97] : memref<8x128xf32, #tpu.memory_space<vmem>>, vector<8x128xf32>
    tpu.vector_store %arg14[%c0_96, %c0_97], %104 {strides = array<i32>} : memref<8x128xf32, #tpu.memory_space<vmem>>, vector<8x128xf32>,
    %157 = arith.truncf %154 : vector<8x128xf32> to vector<8x128xbf16>
    %c0_98 = arith.constant 0 : index
    %c0_99 = arith.constant 0 : index
    %158 = vector.load %arg15[%c0_98, %c0_99] : memref<8x128xbf16, #tpu.memory_space<vmem>>, vector<8x128xbf16>
    tpu.vector_store %arg15[%c0_98, %c0_99], %157 {strides = array<i32>} : memref<8x128xbf16, #tpu.memory_space<vmem>>, vector<8x128xbf16>,
    return
  }
}

module attributes {stable_mosaic.version = 11 : i64} {
  func.func @logits_kernel(%arg0: i32, %arg1: memref<8x128xbf16, #tpu.memory_space<vmem>>, %arg2: memref<128x128xbf16, #tpu.memory_space<vmem>>, %arg3: memref<1x128xf32, #tpu.memory_space<vmem>>, %arg4: memref<8x128xf32, #tpu.memory_space<vmem>>) attributes {dimension_semantics = [#tpu.dimension_semantics<parallel>], iteration_bounds = array<i64: 3>, scalar_prefetch = 0 : i64, scratch_operands = 0 : i64, tpu.core_type = #tpu.core_type<tc>, window_params = [{pipeline_mode = #tpu.pipeline_mode<synchronous>, transform_indices = @transform_0, window_bounds = array<i64: 8, 128>}, {transform_indices = @transform_1, window_bounds = array<i64: 128, 128>}, {transform_indices = @transform_2, window_bounds = array<i64: 1, 128>}, {transform_indices = @transform_3, window_bounds = array<i64: 8, 128>}]} {
    %c0 = arith.constant 0 : index
    %c0_0 = arith.constant 0 : index
    %0 = vector.load %arg1[%c0, %c0_0] : memref<8x128xbf16, #tpu.memory_space<vmem>>, vector<8x128xbf16>
    %c0_1 = arith.constant 0 : index
    %c0_2 = arith.constant 0 : index
    %1 = vector.load %arg2[%c0_1, %c0_2] : memref<128x128xbf16, #tpu.memory_space<vmem>>, vector<128x128xbf16>
    %cst = arith.constant dense<0.000000e+00> : vector<8x128xf32>
    %2 = tpu.matmul %0, %1, %cst {dimension_numbers = #tpu.dot_dimension_numbers<[1], [0], [0], [1], [0, 0, 1, 1], [], []>} : vector<8x128xbf16>, vector<128x128xbf16>, vector<8x128xf32> -> vector<8x128xf32>
    %c0_3 = arith.constant 0 : index
    %c0_4 = arith.constant 0 : index
    %3 = vector.load %arg3[%c0_3, %c0_4] : memref<1x128xf32, #tpu.memory_space<vmem>>, vector<1x128xf32>
    %4 = vector.broadcast %3 : vector<1x128xf32> to vector<8x128xf32>
    %5 = arith.addf %2, %4 : vector<8x128xf32>
    %c0_5 = arith.constant 0 : index
    %c0_6 = arith.constant 0 : index
    %6 = vector.load %arg4[%c0_5, %c0_6] : memref<8x128xf32, #tpu.memory_space<vmem>>, vector<8x128xf32>
    tpu.vector_store %arg4[%c0_5, %c0_6], %5 {strides = array<i32>} : memref<8x128xf32, #tpu.memory_space<vmem>>, vector<8x128xf32>,
    return
  }
  func.func @transform_0(%arg0: i32) -> (i32, i32) {
    %c0_i32 = arith.constant 0 : i32
    %c0_i32_0 = arith.constant 0 : i32
    %c0_i32_1 = arith.constant 0 : i32
    return %c0_i32, %c0_i32_0 : i32, i32
  }
  func.func @transform_1(%arg0: i32) -> (i32, i32) {
    %c0_i32 = arith.constant 0 : i32
    %c0_i32_0 = arith.constant 0 : i32
    return %c0_i32, %arg0 : i32, i32
  }
  func.func @transform_2(%arg0: i32) -> (i32, i32) {
    %c0_i32 = arith.constant 0 : i32
    %c0_i32_0 = arith.constant 0 : i32
    return %c0_i32, %arg0 : i32, i32
  }
  func.func @transform_3(%arg0: i32) -> (i32, i32) {
    %c0_i32 = arith.constant 0 : i32
    %c0_i32_0 = arith.constant 0 : i32
    return %c0_i32, %arg0 : i32, i32
  }
}

</mosaic_0001>

<llo_original>
// kernel: decoder_step.3
$region0: #{decoder_step.3}
  #allocation0 [shape = 'u32[]', space=smem, size = 0x4, offset = 0x4, fixed_abs, tag = 'smem constant byte address 0x4 - core index']
  #allocation1 [shape = 'u32[144,128]{1,0:T(1,128)}', space=vmem, size = 0x12000, scoped, tag = 'internal scratch']
  %s0 = inlined_call_operand.vmem [shape: bf16[8,128], index: 0, kind: input, shape index: {}]
  %s1 = inlined_call_operand.vmem [shape: bf16[128,384], index: 1, kind: input, shape index: {}]
  %s2 = inlined_call_operand.vmem [shape: f32[1,384], index: 2, kind: input, shape index: {}]
  %s3 = inlined_call_operand.vmem [shape: f32[8,384], index: 3, kind: output, shape index: {}]
  %s4 = sld [smem:[#allocation0]]
  $region86: #{decoder_step.3} parent=0
    _
  %s6 = ssub.s32 1, %s4
  %s7 = scalar_select 0, %s6, %s4
  $region1: #{decoder_step.3} parent=0
    #allocation2 [shape = 'u8[65536]{0}', space=vmem, size = 0x10000, scoped, tag = 'input window, operand 1']
    loop: start=0, step=1, limit=5
    $region2: #{decoder_step.3} parent=1 // loop_pre_header
      _
    $region3: #{decoder_step.3} parent=1 // loop_header
      %s9 = sphi 0, %s13
      %p10 = scmp.ge.s32.totalorder %s9, 5
      %s17 = sphi 0, %s17
      %s19 = sphi 0, %s17
      %s20 = sphi 0, %s19
      %s34 = sphi 0, %s20
      %s40 = sphi 0, %s42
      %s43 = sphi 0, %s40
      %s44 = sphi 0, %s43
      %s60 = sphi 0, %s44
      %s66 = sphi 0, %s68
      %s69 = sphi 0, %s66
      %s70 = sphi 0, %s69
      %s86 = sphi 0, %s70
      %s92 = sphi 0, %s94
      %s95 = sphi 0, %s92
      %s96 = sphi 0, %s95
      %s112 = sphi 0, %s96
    $region4: #{decoder_step.3} parent=1 // loop_header_branch
      %12 = sbr.rel (%p10) target = $region8
    $region5: #{decoder_step.3} parent=1 // loop_body
      %s14 = ssub.s32 %s9, 1
      %s15 = ssub.s32 %s9, 2
      %s16 = sadd.s32 %s9, 1
      %s18 = sadd.s32 %s17, 1
      %p21 = scmp.eq.s32.totalorder %s9, 2
      %p22 = scmp.ne.s32.totalorder %s17, %s19
      %p23 = scmp.eq.s32.totalorder %s9, 0
      %p24 = por %p22, %p23
      %p25 = scmp.ne.s32.totalorder %s17, %s19
      %p26 = scmp.eq.s32.totalorder %s14, 2
      %p27 = por %p25, %p26
      %p28 = scmp.ne.s32.totalorder %s19, %s20
      %p29 = scmp.eq.s32.totalorder %s14, 0
      %p30 = por %p28, %p29
      %p31 = scmp.ne.s32.totalorder %s19, %s20
      %p32 = scmp.eq.s32.totalorder %s15, 2
      %p33 = por %p31, %p32
      %p35 = scmp.ne.s32.totalorder %s20, %s34
      %p36 = scmp.eq.s32.totalorder %s15, 0
      %p37 = por %p35, %p36
      %s38 = ssub.s32 %s9, %s16
      %p39 = scmp.eq.s32.totalorder %s38, 0
      %s41 = sadd.s32 %s40, 1
      %s42 = scalar_select %p39, %s40, %s41
      %p45 = pneg %p39
      %p46 = scmp.eq.s32.totalorder %s9, 2
      %p47 = por %p45, %p46
      %p48 = scmp.ne.s32.totalorder %s40, %s43
      %p49 = scmp.eq.s32.totalorder %s9, 0
      %p50 = por %p48, %p49
      %p51 = scmp.ne.s32.totalorder %s40, %s43
      %p52 = scmp.eq.s32.totalorder %s14, 2
      %p53 = por %p51, %p52
      %p54 = scmp.ne.s32.totalorder %s43, %s44
      %p55 = scmp.eq.s32.totalorder %s14, 0
      %p56 = por %p54, %p55
      %p57 = scmp.ne.s32.totalorder %s43, %s44
      %p58 = scmp.eq.s32.totalorder %s15, 2
      %p59 = por %p57, %p58
      %p61 = scmp.ne.s32.totalorder %s44, %s60
      %p62 = scmp.eq.s32.totalorder %s15, 0
      %p63 = por %p61, %p62
      %s64 = ssub.s32 %s9, %s16
      %p65 = scmp.eq.s32.totalorder %s64, 0
      %s67 = sadd.s32 %s66, 1
      %s68 = scalar_select %p65, %s66, %s67
      %p71 = pneg %p65
      %p72 = scmp.eq.s32.totalorder %s9, 2
      %p73 = por %p71, %p72
      %p74 = scmp.ne.s32.totalorder %s66, %s69
      %p75 = scmp.eq.s32.totalorder %s9, 0
      %p76 = por %p74, %p75
      %p77 = scmp.ne.s32.totalorder %s66, %s69
      %p78 = scmp.eq.s32.totalorder %s14, 2
      %p79 = por %p77, %p78
      %p80 = scmp.ne.s32.totalorder %s69, %s70
      %p81 = scmp.eq.s32.totalorder %s14, 0
      %p82 = por %p80, %p81
      %p83 = scmp.ne.s32.totalorder %s69, %s70
      %p84 = scmp.eq.s32.totalorder %s15, 2
      %p85 = por %p83, %p84
      %p87 = scmp.ne.s32.totalorder %s70, %s86
      %p88 = scmp.eq.s32.totalorder %s15, 0
      %p89 = por %p87, %p88
      %s90 = ssub.s32 %s9, %s16
      %p91 = scmp.eq.s32.totalorder %s90, 0
      %s93 = sadd.s32 %s92, 1
      %s94 = scalar_select %p91, %s92, %s93
      %p97 = pneg %p91
      %p98 = scmp.eq.s32.totalorder %s9, 2
      %p99 = por %p97, %p98
      %p100 = scmp.ne.s32.totalorder %s92, %s95
      %p101 = scmp.eq.s32.totalorder %s9, 0
      %p102 = por %p100, %p101
      %p103 = scmp.ne.s32.totalorder %s92, %s95
      %p104 = scmp.eq.s32.totalorder %s14, 2
      %p105 = por %p103, %p104
      %p106 = scmp.ne.s32.totalorder %s95, %s96
      %p107 = scmp.eq.s32.totalorder %s14, 0
      %p108 = por %p106, %p107
      %p109 = scmp.ne.s32.totalorder %s95, %s96
      %p110 = scmp.eq.s32.totalorder %s15, 2
      %p111 = por %p109, %p110
      %p113 = scmp.ne.s32.totalorder %s96, %s112
      %p114 = scmp.eq.s32.totalorder %s15, 0
      %p115 = por %p113, %p114
      %p116 = scmp.le.s32.totalorder 1, %s9
      %p117 = scmp.lt.s32.totalorder %s9, 4
      %p118 = pnand %p116, %p117
      %p119 = pneg %p118
      // Predicated region
      $region9: #{decoder_step.3} parent=5 // pred_check
        _
      $region10: #{decoder_step.3} parent=5 // pred_check_branch
        %121 = sbr.rel (%p118) target = $region12
      $region11: #{decoder_step.3} parent=5 // pred_region
        %s122 = ssub.s32 %s9, 1
        // Predicated region
        $region13: #{decoder_step.3} parent=11 // pred_check
          %p123 = pneg %p30
        $region14: #{decoder_step.3} parent=11 // pred_check_branch
          %125 = sbr.rel (%p123) target = $region16
        $region15: #{decoder_step.3} parent=11 // pred_region
          _
        $region16: #{decoder_step.3} parent=11 // pred_fallthru
          _
      $region12: #{decoder_step.3} parent=5 // pred_fallthru
        _
      %p126 = scmp.lt.s32.totalorder %s9, 3
      // Predicated region
      $region17: #{decoder_step.3} parent=5 // pred_check
        %p127 = pneg %p126
      $region18: #{decoder_step.3} parent=5 // pred_check_branch
        %129 = sbr.rel (%p127) target = $region20
      $region19: #{decoder_step.3} parent=5 // pred_region
        // Predicated region
        $region21: #{decoder_step.3} parent=19 // pred_check
          %p130 = pneg %p50
        $region22: #{decoder_step.3} parent=19 // pred_check_branch
          %132 = sbr.rel (%p130) target = $region24
        $region23: #{decoder_step.3} parent=19 // pred_region
          %s133 = sand.u32 %s40, 1
          %s134 = sand.u32 %s40, 1
          %s135 = smul.addr %s134, 64
          %s136 = scalar_lea.vmem [#allocation2], %s135
          %s137 = smul.addr %s9, 4
          %s138 = scalar_lea.vmem %s1, %s137
          // Predicated region
          $region25: #{decoder_step.3} parent=23 // pred_check
            _
          $region26: #{decoder_step.3} parent=23 // pred_check_branch
            %140 = sbr.rel (0) target = $region28
          $region27: #{decoder_step.3} parent=23 // pred_region
            // Predicated region
            $region29: #{decoder_step.3} parent=27 // pred_check
              _
            $region30: #{decoder_step.3} parent=27 // pred_check_branch
              %142 = sbr.rel target = $region32
            $region31: #{decoder_step.3} parent=27 // pred_region
              // Predicated region
              $region44: #{decoder_step.3} parent=31 // pred_check
                _
              $region45: #{decoder_step.3} parent=31 // pred_check_branch
                %188 = sbr.rel (0) target = $region47
              $region46: #{decoder_step.3} parent=31 // pred_region
                loop: start=0, step=1, limit=1
                $region48: #{decoder_step.3} parent=46 // loop_pre_header
                  _
                $region49: #{decoder_step.3} parent=46 // loop_header
                  %s190 = sphi 0, %s194
                  %p191 = scmp.ge.s32.totalorder %s190, 1
                  %s195 = sphi %s138, %s138
                  %s196 = sphi %s136, %s136
                $region50: #{decoder_step.3} parent=46 // loop_header_branch
                  %193 = sbr.rel (%p191) target = $region54
                $region51: #{decoder_step.3} parent=46 // loop_body
                  _
                $region52: #{decoder_step.3} parent=46 // loop_footer
                  %s194 = sadd.s32 1, %s190
                $region53: #{decoder_step.3} parent=46 // loop_footer_branch
                  %189 = sbr.rel target = $region49
                $region54: #{decoder_step.3} parent=46 // loop_exit
                  _
                %s198 = ssub.s32 16, 1
                loop: start=0, step=1, limit=1
                $region55: #{decoder_step.3} parent=46 // loop_pre_header
                  _
                $region56: #{decoder_step.3} parent=46 // loop_header
                  %s200 = sphi 0, %s204
                  %p201 = scmp.ge.s32.totalorder %s200, 1
                  %s205 = sphi %s138, %s138
                  %s206 = sphi %s136, %s136
                $region57: #{decoder_step.3} parent=46 // loop_header_branch
                  %203 = sbr.rel (%p201) target = $region61
                $region58: #{decoder_step.3} parent=46 // loop_body
                  %v207 = vld [vmem:[%s205] sm:%s198]
                  %208 = vst [vmem:[%s206] sm:%s198] %v207
                  %v209 = vld [vmem:[%s205 + $0xc] sm:%s198]
                  %210 = vst [vmem:[%s206 + $0x4] sm:%s198] %v209
                  %v211 = vld [vmem:[%s205 + $0x18] sm:%s198]
                  %212 = vst [vmem:[%s206 + $0x8] sm:%s198] %v211
                  %v213 = vld [vmem:[%s205 + $0x24] sm:%s198]
                  %214 = vst [vmem:[%s206 + $0xc] sm:%s198] %v213
                  %v215 = vld [vmem:[%s205 + $0x30] sm:%s198]
                  %216 = vst [vmem:[%s206 + $0x10] sm:%s198] %v215
                  %v217 = vld [vmem:[%s205 + $0x3c] sm:%s198]
                  %218 = vst [vmem:[%s206 + $0x14] sm:%s198] %v217
                  %v219 = vld [vmem:[%s205 + $0x48] sm:%s198]
                  %220 = vst [vmem:[%s206 + $0x18] sm:%s198] %v219
                  %v221 = vld [vmem:[%s205 + $0x54] sm:%s198]
                  %222 = vst [vmem:[%s206 + $0x1c] sm:%s198] %v221
                  %v223 = vld [vmem:[%s205 + $0x60] sm:%s198]
                  %224 = vst [vmem:[%s206 + $0x20] sm:%s198] %v223
                  %v225 = vld [vmem:[%s205 + $0x6c] sm:%s198]
                  %226 = vst [vmem:[%s206 + $0x24] sm:%s198] %v225
                  %v227 = vld [vmem:[%s205 + $0x78] sm:%s198]
                  %228 = vst [vmem:[%s206 + $0x28] sm:%s198] %v227
                  %v229 = vld [vmem:[%s205 + $0x84] sm:%s198]
                  %230 = vst [vmem:[%s206 + $0x2c] sm:%s198] %v229
                  %v231 = vld [vmem:[%s205 + $0x90] sm:%s198]
                  %232 = vst [vmem:[%s206 + $0x30] sm:%s198] %v231
                  %v233 = vld [vmem:[%s205 + $0x9c] sm:%s198]
                  %234 = vst [vmem:[%s206 + $0x34] sm:%s198] %v233
                  %v235 = vld [vmem:[%s205 + $0xa8] sm:%s198]
                  %236 = vst [vmem:[%s206 + $0x38] sm:%s198] %v235
                  %v237 = vld [vmem:[%s205 + $0xb4] sm:%s198]
                  %238 = vst [vmem:[%s206 + $0x3c] sm:%s198] %v237
                $region59: #{decoder_step.3} parent=46 // loop_footer
                  %s204 = sadd.s32 1, %s200
                $region60: #{decoder_step.3} parent=46 // loop_footer_branch
                  %199 = sbr.rel target = $region56
                $region61: #{decoder_step.3} parent=46 // loop_exit
                  _
              $region47: #{decoder_step.3} parent=31 // pred_fallthru
                _
            $region32: #{decoder_step.3} parent=27 // pred_fallthru
              _
            // Predicated region
            $region33: #{decoder_step.3} parent=27 // pred_check
              _
            $region34: #{decoder_step.3} parent=27 // pred_check_branch
              %144 = sbr.rel (0) target = $region36
            $region35: #{decoder_step.3} parent=27 // pred_region
              %s146 = ssub.s32 16, 1
              loop: start=0, step=1, limit=1
              $region37: #{decoder_step.3} parent=35 // loop_pre_header
                _
              $region38: #{decoder_step.3} parent=35 // loop_header
                %s148 = sphi 0, %s152
                %p149 = scmp.ge.s32.totalorder %s148, 1
                %s153 = sphi %s138, %s138
                %s154 = sphi %s136, %s136
              $region39: #{decoder_step.3} parent=35 // loop_header_branch
                %151 = sbr.rel (%p149) target = $region43
              $region40: #{decoder_step.3} parent=35 // loop_body
                %v155 = vld [vmem:[%s153] sm:%s146]
                %156 = vst [vmem:[%s154] sm:%s146] %v155
                %v157 = vld [vmem:[%s153 + $0xc] sm:%s146]
                %158 = vst [vmem:[%s154 + $0x4] sm:%s146] %v157
                %v159 = vld [vmem:[%s153 + $0x18] sm:%s146]
                %160 = vst [vmem:[%s154 + $0x8] sm:%s146] %v159
                %v161 = vld [vmem:[%s153 + $0x24] sm:%s146]
                %162 = vst [vmem:[%s154 + $0xc] sm:%s146] %v161
                %v163 = vld [vmem:[%s153 + $0x30] sm:%s146]
                %164 = vst [vmem:[%s154 + $0x10] sm:%s146] %v163
                %v165 = vld [vmem:[%s153 + $0x3c] sm:%s146]
                %166 = vst [vmem:[%s154 + $0x14] sm:%s146] %v165
                %v167 = vld [vmem:[%s153 + $0x48] sm:%s146]
                %168 = vst [vmem:[%s154 + $0x18] sm:%s146] %v167
                %v169 = vld [vmem:[%s153 + $0x54] sm:%s146]
                %170 = vst [vmem:[%s154 + $0x1c] sm:%s146] %v169
                %v171 = vld [vmem:[%s153 + $0x60] sm:%s146]
                %172 = vst [vmem:[%s154 + $0x20] sm:%s146] %v171
                %v173 = vld [vmem:[%s153 + $0x6c] sm:%s146]
                %174 = vst [vmem:[%s154 + $0x24] sm:%s146] %v173
                %v175 = vld [vmem:[%s153 + $0x78] sm:%s146]
                %176 = vst [vmem:[%s154 + $0x28] sm:%s146] %v175
                %v177 = vld [vmem:[%s153 + $0x84] sm:%s146]
                %178 = vst [vmem:[%s154 + $0x2c] sm:%s146] %v177
                %v179 = vld [vmem:[%s153 + $0x90] sm:%s146]
                %180 = vst [vmem:[%s154 + $0x30] sm:%s146] %v179
                %v181 = vld [vmem:[%s153 + $0x9c] sm:%s146]
                %182 = vst [vmem:[%s154 + $0x34] sm:%s146] %v181
                %v183 = vld [vmem:[%s153 + $0xa8] sm:%s146]
                %184 = vst [vmem:[%s154 + $0x38] sm:%s146] %v183
                %v185 = vld [vmem:[%s153 + $0xb4] sm:%s146]
                %186 = vst [vmem:[%s154 + $0x3c] sm:%s146] %v185
              $region41: #{decoder_step.3} parent=35 // loop_footer
                %s152 = sadd.s32 1, %s148
              $region42: #{decoder_step.3} parent=35 // loop_footer_branch
                %147 = sbr.rel target = $region38
              $region43: #{decoder_step.3} parent=35 // loop_exit
                _
            $region36: #{decoder_step.3} parent=27 // pred_fallthru
              _
          $region28: #{decoder_step.3} parent=23 // pred_fallthru
            _
          %239 = vnop
        $region24: #{decoder_step.3} parent=19 // pred_fallthru
          _
        // Predicated region
        $region62: #{decoder_step.3} parent=19 // pred_check
          %p240 = pneg %p76
        $region63: #{decoder_step.3} parent=19 // pred_check_branch
          %242 = sbr.rel (%p240) target = $region65
        $region64: #{decoder_step.3} parent=19 // pred_region
          %p243 = scmp.lt.s32.totalorder %s9, 2
          %s244 = scalar_select %p243, %s9, 2
          %s245 = scalar_lea.vmem %s2, %s244
        $region65: #{decoder_step.3} parent=19 // pred_fallthru
          _
      $region20: #{decoder_step.3} parent=5 // pred_fallthru
        _
      %p246 = scmp.le.s32.totalorder 1, %s9
      %p247 = scmp.lt.s32.totalorder %s9, 4
      %p248 = pnand %p246, %p247
      %p249 = pneg %p248
      // Predicated region
      $region66: #{decoder_step.3} parent=5 // pred_check
        _
      $region67: #{decoder_step.3} parent=5 // pred_check_branch
        %251 = sbr.rel (%p248) target = $region69
      $region68: #{decoder_step.3} parent=5 // pred_region
        %s252 = ssub.s32 %s9, 1
        %s253 = sand.u32 %s43, 1
        %s254 = sand.u32 %s43, 1
        %s255 = smul.addr %s254, 64
        %s256 = scalar_lea.vmem [#allocation2], %s255
        // Predicated region
        $region70: #{decoder_step.3} parent=68 // pred_check
          %p257 = pneg %p56
        $region71: #{decoder_step.3} parent=68 // pred_check_branch
          %259 = sbr.rel (%p257) target = $region73
        $region72: #{decoder_step.3} parent=68 // pred_region
          _
        $region73: #{decoder_step.3} parent=68 // pred_fallthru
          _
        %p260 = pneg %p30
        %p261 = pneg %p27
        %s262 = sand.u32 %s43, 1
        %s263 = sand.u32 %s43, 1
        %s264 = smul.addr %s263, 64
        %s265 = scalar_lea.vmem [#allocation2], %s264
        %p266 = pneg %p56
        %p267 = pneg %p53
        %p268 = scmp.lt.s32.totalorder %s14, 2
        %s269 = scalar_select %p268, %s14, 2
        %s270 = scalar_lea.vmem %s2, %s269
        %p271 = pneg %p82
        %p272 = pneg %p79
        %p273 = pneg %p108
        %p274 = pneg %p105
        %p275 = scmp.lt.s32.totalorder %s14, 2
        %s276 = scalar_select %p275, %s14, 2
        %s277 = smul.addr %s276, 8
        %s278 = scalar_lea.vmem %s3, %s277
        %p279 = scmp.lt.s32.totalorder %s14, 2
        %s280 = scalar_select %p279, %s14, 2
        %s281 = scalar_lea.vmem %s2, %s280
        %p282 = scmp.lt.s32.totalorder %s14, 2
        %s283 = scalar_select %p282, %s14, 2
        %s284 = smul.addr %s283, 8
        %s285 = scalar_lea.vmem %s3, %s284
        %v287 = vld [vmem:[%s0] sm:$0xf]
        %v288 = vld [vmem:[%s256] sm:$0xf]
        %v289 = vld [vmem:[%s256 + $0x4] sm:$0xf]
        %v290 = vld [vmem:[%s256 + $0x8] sm:$0xf]
        %v291 = vld [vmem:[%s256 + $0xc] sm:$0xf]
        %v292 = vld [vmem:[%s256 + $0x10] sm:$0xf]
        %v293 = vld [vmem:[%s256 + $0x14] sm:$0xf]
        %v294 = vld [vmem:[%s256 + $0x18] sm:$0xf]
        %v295 = vld [vmem:[%s256 + $0x1c] sm:$0xf]
        %v296 = vld [vmem:[%s256 + $0x20] sm:$0xf]
        %v297 = vld [vmem:[%s256 + $0x24] sm:$0xf]
        %v298 = vld [vmem:[%s256 + $0x28] sm:$0xf]
        %v299 = vld [vmem:[%s256 + $0x2c] sm:$0xf]
        %v300 = vld [vmem:[%s256 + $0x30] sm:$0xf]
        %v301 = vld [vmem:[%s256 + $0x34] sm:$0xf]
        %v302 = vld [vmem:[%s256 + $0x38] sm:$0xf]
        %v303 = vld [vmem:[%s256 + $0x3c] sm:$0xf]
        %v304 = vld [vmem:[%s281] sm:$0x1]
        %v306 = vlaneseq
        %v307 = vshrl.u32 %v306, 7
        %v308 = vsub.s32 0, %v307
        %v309 = vrot.slane %v304, %v308
        %v327 = vunpack.c.l.b16 %v288
        %v328 = vunpack.c.l.b16 %v289
        %v329 = vunpack.c.l.b16 %v290
        %v330 = vunpack.c.l.b16 %v291
        %v331 = vunpack.c.l.b16 %v292
        %v332 = vunpack.c.l.b16 %v293
        %v333 = vunpack.c.l.b16 %v294
        %v334 = vunpack.c.l.b16 %v295
        %v335 = vunpack.c.l.b16 %v296
        %v336 = vunpack.c.l.b16 %v297
        %v337 = vunpack.c.l.b16 %v298
        %v338 = vunpack.c.l.b16 %v299
        %v339 = vunpack.c.l.b16 %v300
        %v340 = vunpack.c.l.b16 %v301
        %v341 = vunpack.c.l.b16 %v302
        %v342 = vunpack.c.l.b16 %v303
        %v343 = vpack.c.b16 %v328, %v327
        %v344 = vpack.c.b16 %v330, %v329
        %v345 = vpack.c.b16 %v332, %v331
        %v346 = vpack.c.b16 %v334, %v333
        %v347 = vpack.c.b16 %v336, %v335
        %v348 = vpack.c.b16 %v338, %v337
        %v349 = vpack.c.b16 %v340, %v339
        %v350 = vpack.c.b16 %v342, %v341
        %359 = vmatprep.subr.bf16.mxu0 0
        %360 = vmatpush1.bf16.msra.mxu0 %v350
        %361 = vmatprep.subr.bf16.mxu0 0
        %362 = vmatpush1.bf16.msra.mxu0 %v349
        %363 = vmatprep.subr.bf16.mxu0 0
        %364 = vmatpush1.bf16.msra.mxu0 %v348
        %365 = vmatprep.subr.bf16.mxu0 0
        %366 = vmatpush1.bf16.msra.mxu0 %v347
        %367 = vmatprep.subr.bf16.mxu0 0
        %368 = vmatpush1.bf16.msra.mxu0 %v346
        %369 = vmatprep.subr.bf16.mxu0 0
        %370 = vmatpush1.bf16.msra.mxu0 %v345
        %371 = vmatprep.subr.bf16.mxu0 0
        %372 = vmatpush1.bf16.msra.mxu0 %v344
        %373 = vmatprep.subr.bf16.mxu0 0
        %374 = vmatpush1.bf16.msra.mxu0 %v343
        %375 = vmatprep.subr.bf16.mxu0 0
        %376 = vmatpush2.bf16.msra.mxu0 0
        %377 = vmatprep.subr.bf16.mxu0 0
        %378 = vmatpush2.bf16.msra.mxu0 0
        %379 = vmatprep.subr.bf16.mxu0 0
        %380 = vmatpush2.bf16.msra.mxu0 0
        %381 = vmatprep.subr.bf16.mxu0 0
        %382 = vmatpush2.bf16.msra.mxu0 0
        %383 = vmatprep.subr.bf16.mxu0 0
        %384 = vmatpush2.bf16.msra.mxu0 0
        %385 = vmatprep.subr.bf16.mxu0 0
        %386 = vmatpush2.bf16.msra.mxu0 0
        %387 = vmatprep.subr.bf16.mxu0 0
        %388 = vmatpush2.bf16.msra.mxu0 0
        %389 = vmatprep.subr.bf16.mxu0 0
        %390 = vmatpush2.bf16.msra.mxu0 0
        %391 = vmatprep.mubr.bf16.mxu0 0
        %392 = vmatmul.mubr.bf16.gmra.mxu0 %v287
        %v393 = vpop.f32.mrf.mxu0
        %v394 = vadd.f32 %v309, %v393
        %v395 = vpop.f32.mrf.mxu0
        %v396 = vpop.f32.mrf.mxu0
        %v397 = vpop.f32.mrf.mxu0
        %398 = vdwg.mxu0
        %399 = vst [vmem:[%s285] sm:$0xff] %v394
        %p400 = scmp.lt.s32.totalorder %s14, 2
        %s401 = scalar_select %p400, %s14, 2
        %s402 = smul.addr %s401, 8
        %s403 = scalar_lea.vmem %s3, %s402
        // Predicated region
        $region74: #{decoder_step.3} parent=68 // pred_check
          %p404 = pneg %p105
        $region75: #{decoder_step.3} parent=68 // pred_check_branch
          %406 = sbr.rel (%p404) target = $region77
        $region76: #{decoder_step.3} parent=68 // pred_region
          _
        $region77: #{decoder_step.3} parent=68 // pred_fallthru
          _
      $region69: #{decoder_step.3} parent=5 // pred_fallthru
        _
      %p407 = scmp.le.s32.totalorder 2, %s9
      // Predicated region
      $region78: #{decoder_step.3} parent=5 // pred_check
        %p408 = pneg %p407
      $region79: #{decoder_step.3} parent=5 // pred_check_branch
        %410 = sbr.rel (%p408) target = $region81
      $region80: #{decoder_step.3} parent=5 // pred_region
        %s411 = ssub.s32 %s9, 2
        // Predicated region
        $region82: #{decoder_step.3} parent=80 // pred_check
          %p412 = pneg %p111
        $region83: #{decoder_step.3} parent=80 // pred_check_branch
          %414 = sbr.rel (%p412) target = $region85
        $region84: #{decoder_step.3} parent=80 // pred_region
          %p415 = scmp.lt.s32.totalorder %s15, 2
          %s416 = scalar_select %p415, %s15, 2
          %s417 = smul.addr %s416, 8
          %s418 = scalar_lea.vmem %s3, %s417
        $region85: #{decoder_step.3} parent=80 // pred_fallthru
          _
      $region81: #{decoder_step.3} parent=5 // pred_fallthru
        _
    $region6: #{decoder_step.3} parent=1 // loop_footer
      %s13 = sadd.s32 1, %s9
    $region7: #{decoder_step.3} parent=1 // loop_footer_branch
      %8 = sbr.rel target = $region3
    $region8: #{decoder_step.3} parent=1 // loop_exit
      _

// kernel: decoder_step.2
$region0: #{decoder_step.2}
  #allocation0 [shape = 'u32[]', space=smem, size = 0x4, offset = 0x4, fixed_abs, tag = 'smem constant byte address 0x4 - core index']
  #allocation1 [shape = 'u32[144,128]{1,0:T(1,128)}', space=vmem, size = 0x12000, scoped, tag = 'internal scratch']
  #allocation2 [shape = 'f32[8,128]{1,0:T(8,128)}', space=vmem, size = 0x1000, scoped, tag = 'scratch operand']
  #allocation3 [shape = 's32[8]{0}', space=sflag, size = 0x20, scoped, tag = 'scratch operand']
  #allocation14 [shape = 's32[]', space=sflag, size = 0x4, offset = 0, fixed_abs, tag = 'sflag constant byte address 0x0 - dummy sync flag']
  #allocation15 [shape = 's32[]', space=sflag, size = 0x4, offset = 0, fixed_abs, tag = 'sflag constant byte address 0x0 - dummy sync flag']
  #allocation16 [shape = 'u32[]', space=smem, size = 0x4, offset = 0x44, fixed_abs, tag = 'smem constant byte address 0x44 - assertion arg 0']
  #allocation17 [shape = 'u32[]', space=smem, size = 0x4, offset = 0x48, fixed_abs, tag = 'smem constant byte address 0x48 - assertion arg 1']
  #allocation18 [shape = 's32[]', space=sflag, size = 0x4, offset = 0, fixed_abs, tag = 'sflag constant byte address 0x0 - dummy sync flag']
  #allocation19 [shape = 's32[]', space=sflag, size = 0x4, offset = 0, fixed_abs, tag = 'sflag constant byte address 0x0 - dummy sync flag']
  #allocation20 [shape = 's32[]', space=sflag, size = 0x4, offset = 0, fixed_abs, tag = 'sflag constant byte address 0x0 - dummy sync flag']
  #allocation21 [shape = 's32[]', space=sflag, size = 0x4, offset = 0, fixed_abs, tag = 'sflag constant byte address 0x0 - dummy sync flag']
  #allocation22 [shape = 's32[]', space=sflag, size = 0x4, offset = 0, fixed_abs, tag = 'sflag constant byte address 0x0 - dummy sync flag']
  #allocation23 [shape = 's32[]', space=sflag, size = 0x4, offset = 0, fixed_abs, tag = 'sflag constant byte address 0x0 - dummy sync flag']
  #allocation24 [shape = 's32[]', space=sflag, size = 0x4, offset = 0, fixed_abs, tag = 'sflag constant byte address 0x0 - dummy sync flag']
  #allocation25 [shape = 's32[]', space=sflag, size = 0x4, offset = 0, fixed_abs, tag = 'sflag constant byte address 0x0 - dummy sync flag']
  #allocation26 [shape = 's32[]', space=sflag, size = 0x4, offset = 0, fixed_abs, tag = 'sflag constant byte address 0x0 - dummy sync flag']
  #allocation27 [shape = 's32[]', space=sflag, size = 0x4, offset = 0, fixed_abs, tag = 'sflag constant byte address 0x0 - dummy sync flag']
  #allocation28 [shape = 's32[]', space=sflag, size = 0x4, offset = 0, fixed_abs, tag = 'sflag constant byte address 0x0 - dummy sync flag']
  #allocation29 [shape = 's32[]', space=sflag, size = 0x4, offset = 0, fixed_abs, tag = 'sflag constant byte address 0x0 - dummy sync flag']
  #allocation30 [shape = 's32[]', space=sflag, size = 0x4, offset = 0, fixed_abs, tag = 'sflag constant byte address 0x0 - dummy sync flag']
  #allocation31 [shape = 's32[]', space=sflag, size = 0x4, offset = 0, fixed_abs, tag = 'sflag constant byte address 0x0 - dummy sync flag']
  %s0 = inlined_call_operand.vmem [shape: s32[8], index: 0, kind: input, shape index: {}]
  %s1 = inlined_call_operand.hbm [shape: f32[300,128], index: 1, kind: input, shape index: {}]
  %s2 = inlined_call_operand.vmem [shape: f32[8,128], index: 2, kind: input, shape index: {}, may-alias: {2,13}]
  %s3 = inlined_call_operand.vmem [shape: f32[8,128], index: 3, kind: input, shape index: {}, may-alias: {3,14}]
  %s4 = inlined_call_operand.vmem [shape: bf16[8,8,128], index: 4, kind: input, shape index: {}]
  %s5 = inlined_call_operand.hbm [shape: bf16[8,8,128], index: 5, kind: input, shape index: {}]
  %s6 = inlined_call_operand.hbm [shape: f32[8,8], index: 6, kind: input, shape index: {}]
  %s7 = inlined_call_operand.hbm [shape: bf16[256,512], index: 7, kind: input, shape index: {}]
  %s8 = inlined_call_operand.vmem [shape: f32[1,512], index: 8, kind: input, shape index: {}]
  %s9 = inlined_call_operand.hbm [shape: bf16[128,256], index: 9, kind: input, shape index: {}]
  %s10 = inlined_call_operand.vmem [shape: f32[1,128], index: 10, kind: input, shape index: {}]
  %s11 = inlined_call_operand.hbm [shape: bf16[128,128], index: 11, kind: input, shape index: {}]
  %s12 = inlined_call_operand.vmem [shape: f32[1,128], index: 12, kind: input, shape index: {}]
  %s13 = inlined_call_operand.vmem [shape: f32[8,128], index: 13, kind: output, shape index: {0}, may-alias: {2,13}]
  %s14 = inlined_call_operand.vmem [shape: f32[8,128], index: 14, kind: output, shape index: {1}, may-alias: {3,14}]
  %s15 = inlined_call_operand.vmem [shape: bf16[8,128], index: 15, kind: output, shape index: {2}]
  %16 = xla_tuple %s13, %s14, %s15
  %s17 = sld [smem:[#allocation0]]
  $region130: #{decoder_step.2} parent=0
    _
  %s19 = ssub.s32 1, %s17
  %s20 = scalar_select 0, %s19, %s17
  $region1: #{decoder_step.2} parent=0
    #allocation4 [shape = 'u8[512]{0}', space=smem, size = 0x200, scoped, tag = 'input window, operand 0, single buffered']
    #allocation5 [shape = 's32[1]{0}', space=sflag, size = 0x4, scoped, tag = 'scoped memory for decoder_step.2']
    #allocation6 [shape = 's32[1]{0}', space=sflag, size = 0x4, scoped, tag = 'scoped memory for decoder_step.2']
    #allocation7 [shape = 'u8[16384]{0}', space=vmem, size = 0x4000, scoped, tag = 'input window, operand 5, single buffered']
    #allocation8 [shape = 'u8[4096]{0}', space=vmem, size = 0x1000, scoped, tag = 'input window, operand 6, single buffered']
    #allocation9 [shape = 's32[1]{0}', space=sflag, size = 0x4, scoped, tag = 'scoped memory for decoder_step.2']
    #allocation10 [shape = 'u8[262144]{0}', space=vmem, size = 0x40000, scoped, tag = 'input window, operand 7, single buffered']
    #allocation11 [shape = 'u8[65536]{0}', space=vmem, size = 0x10000, scoped, tag = 'input window, operand 9, single buffered']
    #allocation12 [shape = 's32[1]{0}', space=sflag, size = 0x4, scoped, tag = 'scoped memory for decoder_step.2']
    #allocation13 [shape = 'u8[32768]{0}', space=vmem, size = 0x8000, scoped, tag = 'input window, operand 11, single buffered']
    %21 = vsyncpa [#allocation6], 0
    %22 = vsyncpa [#allocation5], 0
    %23 = vsyncpa [#allocation9], 0
    %24 = vsyncpa [#allocation12], 0
    // Predicated region
    $region2: #{decoder_step.2} parent=1 // pred_check
      _
    $region3: #{decoder_step.2} parent=1 // pred_check_branch
      %26 = sbr.rel (0) target = $region5
    $region4: #{decoder_step.2} parent=1 // pred_region
      %s28 = ssub.s32 16, 16
      %29 = vsyncadd [#allocation6], %s28
      %s31 = sshll.u32 %s0, 4
      %s32 = int_to_ptr.vmem [resolvable:$true] %s31
      %34 = dma.vmem_to_smem %s32, 16, [#allocation4], [#allocation6]
    $region5: #{decoder_step.2} parent=1 // pred_fallthru
      _
    // Predicated region
    $region6: #{decoder_step.2} parent=1 // pred_check
      _
    $region7: #{decoder_step.2} parent=1 // pred_check_branch
      %36 = sbr.rel (0) target = $region9
    $region8: #{decoder_step.2} parent=1 // pred_region
      _
    $region9: #{decoder_step.2} parent=1 // pred_fallthru
      _
    // Predicated region
    $region10: #{decoder_step.2} parent=1 // pred_check
      _
    $region11: #{decoder_step.2} parent=1 // pred_check_branch
      %38 = sbr.rel (0) target = $region13
    $region12: #{decoder_step.2} parent=1 // pred_region
      _
    $region13: #{decoder_step.2} parent=1 // pred_fallthru
      _
    // Predicated region
    $region14: #{decoder_step.2} parent=1 // pred_check
      _
    $region15: #{decoder_step.2} parent=1 // pred_check_branch
      %40 = sbr.rel (0) target = $region17
    $region16: #{decoder_step.2} parent=1 // pred_region
      _
    $region17: #{decoder_step.2} parent=1 // pred_fallthru
      _
    // Predicated region
    $region18: #{decoder_step.2} parent=1 // pred_check
      _
    $region19: #{decoder_step.2} parent=1 // pred_check_branch
      %42 = sbr.rel (0) target = $region21
    $region20: #{decoder_step.2} parent=1 // pred_region
      %s44 = ssub.s32 512, 512
      %45 = vsyncadd [#allocation5], %s44
      %s46 = sshll.u32 [#allocation7], 4
      %s47 = int_to_ptr.vmem [resolvable:$true] %s46
      %52 = dma.hbm_to_vmem [thread:$0]  %s5, 512, %s47, [#allocation5], 64, 64, 4
    $region21: #{decoder_step.2} parent=1 // pred_fallthru
      _
    // Predicated region
    $region22: #{decoder_step.2} parent=1 // pred_check
      _
    $region23: #{decoder_step.2} parent=1 // pred_check_branch
      %54 = sbr.rel (0) target = $region25
    $region24: #{decoder_step.2} parent=1 // pred_region
      %s56 = ssub.s32 128, 128
      %57 = vsyncadd [#allocation9], %s56
      %s59 = sshll.u32 [#allocation8], 4
      %s60 = int_to_ptr.vmem [resolvable:$true] %s59
      %62 = dma.hbm_to_vmem [thread:$0]  %s6, 128, %s60, [#allocation9]
    $region25: #{decoder_step.2} parent=1 // pred_fallthru
      _
    // Predicated region
    $region26: #{decoder_step.2} parent=1 // pred_check
      _
    $region27: #{decoder_step.2} parent=1 // pred_check_branch
      %64 = sbr.rel (0) target = $region29
    $region28: #{decoder_step.2} parent=1 // pred_region
      %s66 = ssub.s32 8192, 8192
      %67 = vsyncadd [#allocation9], %s66
      %s68 = sshll.u32 [#allocation10], 4
      %s69 = int_to_ptr.vmem [resolvable:$true] %s68
      %74 = dma.hbm_to_vmem [thread:$0]  %s7, 8192, %s69, [#allocation9], 256, 256, 16
    $region29: #{decoder_step.2} parent=1 // pred_fallthru
      _
    // Predicated region
    $region30: #{decoder_step.2} parent=1 // pred_check
      _
    $region31: #{decoder_step.2} parent=1 // pred_check_branch
      %76 = sbr.rel (0) target = $region33
    $region32: #{decoder_step.2} parent=1 // pred_region
      _
    $region33: #{decoder_step.2} parent=1 // pred_fallthru
      _
    // Predicated region
    $region34: #{decoder_step.2} parent=1 // pred_check
      _
    $region35: #{decoder_step.2} parent=1 // pred_check_branch
      %78 = sbr.rel (0) target = $region37
    $region36: #{decoder_step.2} parent=1 // pred_region
      %s80 = ssub.s32 2048, 2048
      %81 = vsyncadd [#allocation12], %s80
      %s82 = sshll.u32 [#allocation11], 4
      %s83 = int_to_ptr.vmem [resolvable:$true] %s82
      %88 = dma.hbm_to_vmem [thread:$0]  %s9, 2048, %s83, [#allocation12], 128, 128, 8
    $region37: #{decoder_step.2} parent=1 // pred_fallthru
      _
    // Predicated region
    $region38: #{decoder_step.2} parent=1 // pred_check
      _
    $region39: #{decoder_step.2} parent=1 // pred_check_branch
      %90 = sbr.rel (0) target = $region41
    $region40: #{decoder_step.2} parent=1 // pred_region
      _
    $region41: #{decoder_step.2} parent=1 // pred_fallthru
      _
    // Predicated region
    $region42: #{decoder_step.2} parent=1 // pred_check
      _
    $region43: #{decoder_step.2} parent=1 // pred_check_branch
      %92 = sbr.rel (0) target = $region45
    $region44: #{decoder_step.2} parent=1 // pred_region
      %s94 = ssub.s32 1024, 1024
      %95 = vsyncadd [#allocation12], %s94
      %s96 = sshll.u32 [#allocation13], 4
      %s97 = int_to_ptr.vmem [resolvable:$true] %s96
      %102 = dma.hbm_to_vmem [thread:$0]  %s11, 1024, %s97, [#allocation12], 64, 64, 4
    $region45: #{decoder_step.2} parent=1 // pred_fallthru
      _
    // Predicated region
    $region46: #{decoder_step.2} parent=1 // pred_check
      _
    $region47: #{decoder_step.2} parent=1 // pred_check_branch
      %104 = sbr.rel (0) target = $region49
    $region48: #{decoder_step.2} parent=1 // pred_region
      _
    $region49: #{decoder_step.2} parent=1 // pred_fallthru
      _
    // Predicated region
    $region50: #{decoder_step.2} parent=1 // pred_check
      _
    $region51: #{decoder_step.2} parent=1 // pred_check_branch
      %106 = sbr.rel (0) target = $region53
    $region52: #{decoder_step.2} parent=1 // pred_region
      %107 = dma.done [#allocation6], 16
    $region53: #{decoder_step.2} parent=1 // pred_fallthru
      _
    // Predicated region
    $region54: #{decoder_step.2} parent=1 // pred_check
      _
    $region55: #{decoder_step.2} parent=1 // pred_check_branch
      %109 = sbr.rel (0) target = $region57
    $region56: #{decoder_step.2} parent=1 // pred_region
      %110 = dma.done [#allocation5], 512
    $region57: #{decoder_step.2} parent=1 // pred_fallthru
      _
    // Predicated region
    $region58: #{decoder_step.2} parent=1 // pred_check
      _
    $region59: #{decoder_step.2} parent=1 // pred_check_branch
      %112 = sbr.rel (0) target = $region61
    $region60: #{decoder_step.2} parent=1 // pred_region
      %113 = dma.done [#allocation9], 128
    $region61: #{decoder_step.2} parent=1 // pred_fallthru
      _
    // Predicated region
    $region62: #{decoder_step.2} parent=1 // pred_check
      _
    $region63: #{decoder_step.2} parent=1 // pred_check_branch
      %115 = sbr.rel (0) target = $region65
    $region64: #{decoder_step.2} parent=1 // pred_region
      %116 = dma.done [#allocation9], 8192
    $region65: #{decoder_step.2} parent=1 // pred_fallthru
      _
    // Predicated region
    $region66: #{decoder_step.2} parent=1 // pred_check
      _
    $region67: #{decoder_step.2} parent=1 // pred_check_branch
      %118 = sbr.rel (0) target = $region69
    $region68: #{decoder_step.2} parent=1 // pred_region
      %119 = dma.done [#allocation12], 2048
    $region69: #{decoder_step.2} parent=1 // pred_fallthru
      _
    // Predicated region
    $region70: #{decoder_step.2} parent=1 // pred_check
      _
    $region71: #{decoder_step.2} parent=1 // pred_check_branch
      %121 = sbr.rel (0) target = $region73
    $region72: #{decoder_step.2} parent=1 // pred_region
      %122 = dma.done [#allocation12], 1024
    $region73: #{decoder_step.2} parent=1 // pred_fallthru
      _
    %123 = sfence
    %s125 = sld [smem:[#allocation4]]
    %s126 = smul.addr %s125, 16
    %s127 = scalar_lea.hbm %s1, %s126
    // Predicated region
    $region74: #{decoder_step.2} parent=1 // pred_check
      _
    $region75: #{decoder_step.2} parent=1 // pred_check_branch
      %129 = sbr.rel target = $region77
    $region76: #{decoder_step.2} parent=1 // pred_region
      %130 = sst [smem:[#allocation16]] [#allocation15]
      %131 = sst [smem:[#allocation17]] [#allocation14]
    $region77: #{decoder_step.2} parent=1 // pred_fallthru
      _
    %133 = shalt.err (0)
    %s135 = sshll.u32 [#allocation2], 4
    %s136 = int_to_ptr.vmem [resolvable:$true] %s135
    %138 = dma.hbm_to_vmem [thread:$0]  %s127, 16, %s136, [#allocation3]
    %s139 = sld [smem:[#allocation4 + $0x1]]
    %s140 = smul.addr %s139, 16
    %s141 = scalar_lea.hbm %s1, %s140
    %s142 = scalar_lea.vmem [#allocation2], 1
    %s143 = scalar_lea.sflag [#allocation3], 1
    // Predicated region
    $region78: #{decoder_step.2} parent=1 // pred_check
      _
    $region79: #{decoder_step.2} parent=1 // pred_check_branch
      %145 = sbr.rel target = $region81
    $region80: #{decoder_step.2} parent=1 // pred_region
      %146 = sst [smem:[#allocation16]] [#allocation19]
      %147 = sst [smem:[#allocation17]] [#allocation18]
    $region81: #{decoder_step.2} parent=1 // pred_fallthru
      _
    %149 = shalt.err (0)
    %s151 = sshll.u32 %s142, 4
    %s152 = int_to_ptr.vmem [resolvable:$true] %s151
    %154 = dma.hbm_to_vmem [thread:$0]  %s141, 16, %s152, %s143
    %s155 = sld [smem:[#allocation4 + $0x2]]
    %s156 = smul.addr %s155, 16
    %s157 = scalar_lea.hbm %s1, %s156
    %s158 = scalar_lea.vmem [#allocation2], 2
    %s159 = scalar_lea.sflag [#allocation3], 2
    // Predicated region
    $region82: #{decoder_step.2} parent=1 // pred_check
      _
    $region83: #{decoder_step.2} parent=1 // pred_check_branch
      %161 = sbr.rel target = $region85
    $region84: #{decoder_step.2} parent=1 // pred_region
      %162 = sst [smem:[#allocation16]] [#allocation21]
      %163 = sst [smem:[#allocation17]] [#allocation20]
    $region85: #{decoder_step.2} parent=1 // pred_fallthru
      _
    %165 = shalt.err (0)
    %s167 = sshll.u32 %s158, 4
    %s168 = int_to_ptr.vmem [resolvable:$true] %s167
    %170 = dma.hbm_to_vmem [thread:$0]  %s157, 16, %s168, %s159
    %s171 = sld [smem:[#allocation4 + $0x3]]
    %s172 = smul.addr %s171, 16
    %s173 = scalar_lea.hbm %s1, %s172
    %s174 = scalar_lea.vmem [#allocation2], 3
    %s175 = scalar_lea.sflag [#allocation3], 3
    // Predicated region
    $region86: #{decoder_step.2} parent=1 // pred_check
      _
    $region87: #{decoder_step.2} parent=1 // pred_check_branch
      %177 = sbr.rel target = $region89
    $region88: #{decoder_step.2} parent=1 // pred_region
      %178 = sst [smem:[#allocation16]] [#allocation23]
      %179 = sst [smem:[#allocation17]] [#allocation22]
    $region89: #{decoder_step.2} parent=1 // pred_fallthru
      _
    %181 = shalt.err (0)
    %s183 = sshll.u32 %s174, 4
    %s184 = int_to_ptr.vmem [resolvable:$true] %s183
    %186 = dma.hbm_to_vmem [thread:$0]  %s173, 16, %s184, %s175
    %s187 = sld [smem:[#allocation4 + $0x4]]
    %s188 = smul.addr %s187, 16
    %s189 = scalar_lea.hbm %s1, %s188
    %s190 = scalar_lea.vmem [#allocation2], 4
    %s191 = scalar_lea.sflag [#allocation3], 4
    // Predicated region
    $region90: #{decoder_step.2} parent=1 // pred_check
      _
    $region91: #{decoder_step.2} parent=1 // pred_check_branch
      %193 = sbr.rel target = $region93
    $region92: #{decoder_step.2} parent=1 // pred_region
      %194 = sst [smem:[#allocation16]] [#allocation25]
      %195 = sst [smem:[#allocation17]] [#allocation24]
    $region93: #{decoder_step.2} parent=1 // pred_fallthru
      _
    %197 = shalt.err (0)
    %s199 = sshll.u32 %s190, 4
    %s200 = int_to_ptr.vmem [resolvable:$true] %s199
    %202 = dma.hbm_to_vmem [thread:$0]  %s189, 16, %s200, %s191
    %s203 = sld [smem:[#allocation4 + $0x5]]
    %s204 = smul.addr %s203, 16
    %s205 = scalar_lea.hbm %s1, %s204
    %s206 = scalar_lea.vmem [#allocation2], 5
    %s207 = scalar_lea.sflag [#allocation3], 5
    // Predicated region
    $region94: #{decoder_step.2} parent=1 // pred_check
      _
    $region95: #{decoder_step.2} parent=1 // pred_check_branch
      %209 = sbr.rel target = $region97
    $region96: #{decoder_step.2} parent=1 // pred_region
      %210 = sst [smem:[#allocation16]] [#allocation27]
      %211 = sst [smem:[#allocation17]] [#allocation26]
    $region97: #{decoder_step.2} parent=1 // pred_fallthru
      _
    %213 = shalt.err (0)
    %s215 = sshll.u32 %s206, 4
    %s216 = int_to_ptr.vmem [resolvable:$true] %s215
    %218 = dma.hbm_to_vmem [thread:$0]  %s205, 16, %s216, %s207
    %s219 = sld [smem:[#allocation4 + $0x6]]
    %s220 = smul.addr %s219, 16
    %s221 = scalar_lea.hbm %s1, %s220
    %s222 = scalar_lea.vmem [#allocation2], 6
    %s223 = scalar_lea.sflag [#allocation3], 6
    // Predicated region
    $region98: #{decoder_step.2} parent=1 // pred_check
      _
    $region99: #{decoder_step.2} parent=1 // pred_check_branch
      %225 = sbr.rel target = $region101
    $region100: #{decoder_step.2} parent=1 // pred_region
      %226 = sst [smem:[#allocation16]] [#allocation29]
      %227 = sst [smem:[#allocation17]] [#allocation28]
    $region101: #{decoder_step.2} parent=1 // pred_fallthru
      _
    %229 = shalt.err (0)
    %s231 = sshll.u32 %s222, 4
    %s232 = int_to_ptr.vmem [resolvable:$true] %s231
    %234 = dma.hbm_to_vmem [thread:$0]  %s221, 16, %s232, %s223
    %s235 = sld [smem:[#allocation4 + $0x7]]
    %s236 = smul.addr %s235, 16
    %s237 = scalar_lea.hbm %s1, %s236
    %s238 = scalar_lea.vmem [#allocation2], 7
    %s239 = scalar_lea.sflag [#allocation3], 7
    // Predicated region
    $region102: #{decoder_step.2} parent=1 // pred_check
      _
    $region103: #{decoder_step.2} parent=1 // pred_check_branch
      %241 = sbr.rel target = $region105
    $region104: #{decoder_step.2} parent=1 // pred_region
      %242 = sst [smem:[#allocation16]] [#allocation31]
      %243 = sst [smem:[#allocation17]] [#allocation30]
    $region105: #{decoder_step.2} parent=1 // pred_fallthru
      _
    %245 = shalt.err (0)
    %s247 = sshll.u32 %s238, 4
    %s248 = int_to_ptr.vmem [resolvable:$true] %s247
    %250 = dma.hbm_to_vmem [thread:$0]  %s237, 16, %s248, %s239
    %s251 = smul.u32 1, 1
    %s252 = sshll.u32 %s251, 4
    %253 = dma.done [#allocation3], %s252
    %s254 = sshll.u32 %s251, 4
    %255 = dma.done %s143, %s254
    %s256 = sshll.u32 %s251, 4
    %257 = dma.done %s159, %s256
    %s258 = sshll.u32 %s251, 4
    %259 = dma.done %s175, %s258
    %s260 = sshll.u32 %s251, 4
    %261 = dma.done %s191, %s260
    %s262 = sshll.u32 %s251, 4
    %263 = dma.done %s207, %s262
    %s264 = sshll.u32 %s251, 4
    %265 = dma.done %s223, %s264
    %s266 = sshll.u32 %s251, 4
    %267 = dma.done %s239, %s266
    %v268 = vld [vmem:[%s2] sm:$0xff]
    %v269 = vld [vmem:[%s3] sm:$0xff]
    %v270 = vld [vmem:[#allocation2] sm:$0xff]
    %v271 = vpack.c.bf16 %v270, %v270
    %v272 = vpack.c.bf16 %v268, %v268
    %v273 = vld [vmem:[#allocation10] sm:$0xff]
    %v274 = vld [vmem:[#allocation10 + $0x8] sm:$0xff]
    %v275 = vld [vmem:[#allocation10 + $0x10] sm:$0xff]
    %v276 = vld [vmem:[#allocation10 + $0x18] sm:$0xff]
    %v277 = vld [vmem:[#allocation10 + $0x20] sm:$0xff]
    %v278 = vld [vmem:[#allocation10 + $0x28] sm:$0xff]
    %v279 = vld [vmem:[#allocation10 + $0x30] sm:$0xff]
    %v280 = vld [vmem:[#allocation10 + $0x38] sm:$0xff]
    %v281 = vld [vmem:[#allocation10 + $0x40] sm:$0xff]
    %v282 = vld [vmem:[#allocation10 + $0x48] sm:$0xff]
    %v283 = vld [vmem:[#allocation10 + $0x50] sm:$0xff]
    %v284 = vld [vmem:[#allocation10 + $0x58] sm:$0xff]
    %v285 = vld [vmem:[#allocation10 + $0x60] sm:$0xff]
    %v286 = vld [vmem:[#allocation10 + $0x68] sm:$0xff]
    %v287 = vld [vmem:[#allocation10 + $0x70] sm:$0xff]
    %v288 = vld [vmem:[#allocation10 + $0x78] sm:$0xff]
    %v289 = vld [vmem:[#allocation10 + $0x80] sm:$0xff]
    %v290 = vld [vmem:[#allocation10 + $0x88] sm:$0xff]
    %v291 = vld [vmem:[#allocation10 + $0x90] sm:$0xff]
    %v292 = vld [vmem:[#allocation10 + $0x98] sm:$0xff]
    %v293 = vld [vmem:[#allocation10 + $0xa0] sm:$0xff]
    %v294 = vld [vmem:[#allocation10 + $0xa8] sm:$0xff]
    %v295 = vld [vmem:[#allocation10 + $0xb0] sm:$0xff]
    %v296 = vld [vmem:[#allocation10 + $0xb8] sm:$0xff]
    %v297 = vld [vmem:[#allocation10 + $0xc0] sm:$0xff]
    %v298 = vld [vmem:[#allocation10 + $0xc8] sm:$0xff]
    %v299 = vld [vmem:[#allocation10 + $0xd0] sm:$0xff]
    %v300 = vld [vmem:[#allocation10 + $0xd8] sm:$0xff]
    %v301 = vld [vmem:[#allocation10 + $0xe0] sm:$0xff]
    %v302 = vld [vmem:[#allocation10 + $0xe8] sm:$0xff]
    %v303 = vld [vmem:[#allocation10 + $0xf0] sm:$0xff]
    %v304 = vld [vmem:[#allocation10 + $0xf8] sm:$0xff]
    %v305 = vld [vmem:[#allocation10 + $0x100] sm:$0xff]
    %v306 = vld [vmem:[#allocation10 + $0x108] sm:$0xff]
    %v307 = vld [vmem:[#allocation10 + $0x110] sm:$0xff]
    %v308 = vld [vmem:[#allocation10 + $0x118] sm:$0xff]
    %v309 = vld [vmem:[#allocation10 + $0x120] sm:$0xff]
    %v310 = vld [vmem:[#allocation10 + $0x128] sm:$0xff]
    %v311 = vld [vmem:[#allocation10 + $0x130] sm:$0xff]
    %v312 = vld [vmem:[#allocation10 + $0x138] sm:$0xff]
    %v313 = vld [vmem:[#allocation10 + $0x140] sm:$0xff]
    %v314 = vld [vmem:[#allocation10 + $0x148] sm:$0xff]
    %v315 = vld [vmem:[#allocation10 + $0x150] sm:$0xff]
    %v316 = vld [vmem:[#allocation10 + $0x158] sm:$0xff]
    %v317 = vld [vmem:[#allocation10 + $0x160] sm:$0xff]
    %v318 = vld [vmem:[#allocation10 + $0x168] sm:$0xff]
    %v319 = vld [vmem:[#allocation10 + $0x170] sm:$0xff]
    %v320 = vld [vmem:[#allocation10 + $0x178] sm:$0xff]
    %v321 = vld [vmem:[#allocation10 + $0x180] sm:$0xff]
    %v322 = vld [vmem:[#allocation10 + $0x188] sm:$0xff]
    %v323 = vld [vmem:[#allocation10 + $0x190] sm:$0xff]
    %v324 = vld [vmem:[#allocation10 + $0x198] sm:$0xff]
    %v325 = vld [vmem:[#allocation10 + $0x1a0] sm:$0xff]
    %v326 = vld [vmem:[#allocation10 + $0x1a8] sm:$0xff]
    %v327 = vld [vmem:[#allocation10 + $0x1b0] sm:$0xff]
    %v328 = vld [vmem:[#allocation10 + $0x1b8] sm:$0xff]
    %v329 = vld [vmem:[#allocation10 + $0x1c0] sm:$0xff]
    %v330 = vld [vmem:[#allocation10 + $0x1c8] sm:$0xff]
    %v331 = vld [vmem:[#allocation10 + $0x1d0] sm:$0xff]
    %v332 = vld [vmem:[#allocation10 + $0x1d8] sm:$0xff]
    %v333 = vld [vmem:[#allocation10 + $0x1e0] sm:$0xff]
    %v334 = vld [vmem:[#allocation10 + $0x1e8] sm:$0xff]
    %v335 = vld [vmem:[#allocation10 + $0x1f0] sm:$0xff]
    %v336 = vld [vmem:[#allocation10 + $0x1f8] sm:$0xff]
    %v337 = vld [vmem:[%s8] sm:$0xf]
    %v339 = vlaneseq
    %v340 = vshrl.u32 %v339, 7
    %v341 = vsub.s32 0, %v340
    %v342 = vrot.slane %v337, %v341
    %v343 = vlaneseq
    %v344 = vshrl.u32 %v343, 7
    %v345 = vsub.s32 1, %v344
    %v346 = vrot.slane %v337, %v345
    %v347 = vlaneseq
    %v348 = vshrl.u32 %v347, 7
    %v349 = vsub.s32 2, %v348
    %v350 = vrot.slane %v337, %v349
    %v351 = vlaneseq
    %v352 = vshrl.u32 %v351, 7
    %v353 = vsub.s32 3, %v352
    %v354 = vrot.slane %v337, %v353
    %v423 = vunpack.c.l.b16 %v273
    %v424 = vunpack.c.h.b16 %v273
    %v425 = vunpack.c.l.b16 %v274
    %v426 = vunpack.c.h.b16 %v274
    %v427 = vunpack.c.l.b16 %v275
    %v428 = vunpack.c.h.b16 %v275
    %v429 = vunpack.c.l.b16 %v276
    %v430 = vunpack.c.h.b16 %v276
    %v431 = vunpack.c.l.b16 %v277
    %v432 = vunpack.c.h.b16 %v277
    %v433 = vunpack.c.l.b16 %v278
    %v434 = vunpack.c.h.b16 %v278
    %v435 = vunpack.c.l.b16 %v279
    %v436 = vunpack.c.h.b16 %v279
    %v437 = vunpack.c.l.b16 %v280
    %v438 = vunpack.c.h.b16 %v280
    %v439 = vunpack.c.l.b16 %v281
    %v440 = vunpack.c.h.b16 %v281
    %v441 = vunpack.c.l.b16 %v282
    %v442 = vunpack.c.h.b16 %v282
    %v443 = vunpack.c.l.b16 %v283
    %v444 = vunpack.c.h.b16 %v283
    %v445 = vunpack.c.l.b16 %v284
    %v446 = vunpack.c.h.b16 %v284
    %v447 = vunpack.c.l.b16 %v285
    %v448 = vunpack.c.h.b16 %v285
    %v449 = vunpack.c.l.b16 %v286
    %v450 = vunpack.c.h.b16 %v286
    %v451 = vunpack.c.l.b16 %v287
    %v452 = vunpack.c.h.b16 %v287
    %v453 = vunpack.c.l.b16 %v288
    %v454 = vunpack.c.h.b16 %v288
    %v455 = vunpack.c.l.b16 %v289
    %v456 = vunpack.c.h.b16 %v289
    %v457 = vunpack.c.l.b16 %v290
    %v458 = vunpack.c.h.b16 %v290
    %v459 = vunpack.c.l.b16 %v291
    %v460 = vunpack.c.h.b16 %v291
    %v461 = vunpack.c.l.b16 %v292
    %v462 = vunpack.c.h.b16 %v292
    %v463 = vunpack.c.l.b16 %v293
    %v464 = vunpack.c.h.b16 %v293
    %v465 = vunpack.c.l.b16 %v294
    %v466 = vunpack.c.h.b16 %v294
    %v467 = vunpack.c.l.b16 %v295
    %v468 = vunpack.c.h.b16 %v295
    %v469 = vunpack.c.l.b16 %v296
    %v470 = vunpack.c.h.b16 %v296
    %v471 = vunpack.c.l.b16 %v297
    %v472 = vunpack.c.h.b16 %v297
    %v473 = vunpack.c.l.b16 %v298
    %v474 = vunpack.c.h.b16 %v298
    %v475 = vunpack.c.l.b16 %v299
    %v476 = vunpack.c.h.b16 %v299
    %v477 = vunpack.c.l.b16 %v300
    %v478 = vunpack.c.h.b16 %v300
    %v479 = vunpack.c.l.b16 %v301
    %v480 = vunpack.c.h.b16 %v301
    %v481 = vunpack.c.l.b16 %v302
    %v482 = vunpack.c.h.b16 %v302
    %v483 = vunpack.c.l.b16 %v303
    %v484 = vunpack.c.h.b16 %v303
    %v485 = vunpack.c.l.b16 %v304
    %v486 = vunpack.c.h.b16 %v304
    %v487 = vunpack.c.l.b16 %v305
    %v488 = vunpack.c.h.b16 %v305
    %v489 = vunpack.c.l.b16 %v306
    %v490 = vunpack.c.h.b16 %v306
    %v491 = vunpack.c.l.b16 %v307
    %v492 = vunpack.c.h.b16 %v307
    %v493 = vunpack.c.l.b16 %v308
    %v494 = vunpack.c.h.b16 %v308
    %v495 = vunpack.c.l.b16 %v309
    %v496 = vunpack.c.h.b16 %v309
    %v497 = vunpack.c.l.b16 %v310
    %v498 = vunpack.c.h.b16 %v310
    %v499 = vunpack.c.l.b16 %v311
    %v500 = vunpack.c.h.b16 %v311
    %v501 = vunpack.c.l.b16 %v312
    %v502 = vunpack.c.h.b16 %v312
    %v503 = vunpack.c.l.b16 %v313
    %v504 = vunpack.c.h.b16 %v313
    %v505 = vunpack.c.l.b16 %v314
    %v506 = vunpack.c.h.b16 %v314
    %v507 = vunpack.c.l.b16 %v315
    %v508 = vunpack.c.h.b16 %v315
    %v509 = vunpack.c.l.b16 %v316
    %v510 = vunpack.c.h.b16 %v316
    %v511 = vunpack.c.l.b16 %v317
    %v512 = vunpack.c.h.b16 %v317
    %v513 = vunpack.c.l.b16 %v318
    %v514 = vunpack.c.h.b16 %v318
    %v515 = vunpack.c.l.b16 %v319
    %v516 = vunpack.c.h.b16 %v319
    %v517 = vunpack.c.l.b16 %v320
    %v518 = vunpack.c.h.b16 %v320
    %v519 = vunpack.c.l.b16 %v321
    %v520 = vunpack.c.h.b16 %v321
    %v521 = vunpack.c.l.b16 %v322
    %v522 = vunpack.c.h.b16 %v322
    %v523 = vunpack.c.l.b16 %v323
    %v524 = vunpack.c.h.b16 %v323
    %v525 = vunpack.c.l.b16 %v324
    %v526 = vunpack.c.h.b16 %v324
    %v527 = vunpack.c.l.b16 %v325
    %v528 = vunpack.c.h.b16 %v325
    %v529 = vunpack.c.l.b16 %v326
    %v530 = vunpack.c.h.b16 %v326
    %v531 = vunpack.c.l.b16 %v327
    %v532 = vunpack.c.h.b16 %v327
    %v533 = vunpack.c.l.b16 %v328
    %v534 = vunpack.c.h.b16 %v328
    %v535 = vunpack.c.l.b16 %v329
    %v536 = vunpack.c.h.b16 %v329
    %v537 = vunpack.c.l.b16 %v330
    %v538 = vunpack.c.h.b16 %v330
    %v539 = vunpack.c.l.b16 %v331
    %v540 = vunpack.c.h.b16 %v331
    %v541 = vunpack.c.l.b16 %v332
    %v542 = vunpack.c.h.b16 %v332
    %v543 = vunpack.c.l.b16 %v333
    %v544 = vunpack.c.h.b16 %v333
    %v545 = vunpack.c.l.b16 %v334
    %v546 = vunpack.c.h.b16 %v334
    %v547 = vunpack.c.l.b16 %v335
    %v548 = vunpack.c.h.b16 %v335
    %v549 = vunpack.c.l.b16 %v336
    %v550 = vunpack.c.h.b16 %v336
    %v551 = vpack.c.b16 %v427, %v423
    %v552 = vpack.c.b16 %v428, %v424
    %v553 = vpack.c.b16 %v429, %v425
    %v554 = vpack.c.b16 %v430, %v426
    %v555 = vpack.c.b16 %v435, %v431
    %v556 = vpack.c.b16 %v436, %v432
    %v557 = vpack.c.b16 %v437, %v433
    %v558 = vpack.c.b16 %v438, %v434
    %v559 = vpack.c.b16 %v443, %v439
    %v560 = vpack.c.b16 %v444, %v440
    %v561 = vpack.c.b16 %v445, %v441
    %v562 = vpack.c.b16 %v446, %v442
    %v563 = vpack.c.b16 %v451, %v447
    %v564 = vpack.c.b16 %v452, %v448
    %v565 = vpack.c.b16 %v453, %v449
    %v566 = vpack.c.b16 %v454, %v450
    %v567 = vpack.c.b16 %v459, %v455
    %v568 = vpack.c.b16 %v460, %v456
    %v569 = vpack.c.b16 %v461, %v457
    %v570 = vpack.c.b16 %v462, %v458
    %v571 = vpack.c.b16 %v467, %v463
    %v572 = vpack.c.b16 %v468, %v464
    %v573 = vpack.c.b16 %v469, %v465
    %v574 = vpack.c.b16 %v470, %v466
    %v575 = vpack.c.b16 %v475, %v471
    %v576 = vpack.c.b16 %v476, %v472
    %v577 = vpack.c.b16 %v477, %v473
    %v578 = vpack.c.b16 %v478, %v474
    %v579 = vpack.c.b16 %v483, %v479
    %v580 = vpack.c.b16 %v484, %v480
    %v581 = vpack.c.b16 %v485, %v481
    %v582 = vpack.c.b16 %v486, %v482
    %v583 = vpack.c.b16 %v491, %v487
    %v584 = vpack.c.b16 %v492, %v488
    %v585 = vpack.c.b16 %v493, %v489
    %v586 = vpack.c.b16 %v494, %v490
    %v587 = vpack.c.b16 %v499, %v495
    %v588 = vpack.c.b16 %v500, %v496
    %v589 = vpack.c.b16 %v501, %v497
    %v590 = vpack.c.b16 %v502, %v498
    %v591 = vpack.c.b16 %v507, %v503
    %v592 = vpack.c.b16 %v508, %v504
    %v593 = vpack.c.b16 %v509, %v505
    %v594 = vpack.c.b16 %v510, %v506
    %v595 = vpack.c.b16 %v515, %v511
    %v596 = vpack.c.b16 %v516, %v512
    %v597 = vpack.c.b16 %v517, %v513
    %v598 = vpack.c.b16 %v518, %v514
    %v599 = vpack.c.b16 %v523, %v519
    %v600 = vpack.c.b16 %v524, %v520
    %v601 = vpack.c.b16 %v525, %v521
    %v602 = vpack.c.b16 %v526, %v522
    %v603 = vpack.c.b16 %v531, %v527
    %v604 = vpack.c.b16 %v532, %v528
    %v605 = vpack.c.b16 %v533, %v529
    %v606 = vpack.c.b16 %v534, %v530
    %v607 = vpack.c.b16 %v539, %v535
    %v608 = vpack.c.b16 %v540, %v536
    %v609 = vpack.c.b16 %v541, %v537
    %v610 = vpack.c.b16 %v542, %v538
    %v611 = vpack.c.b16 %v547, %v543
    %v612 = vpack.c.b16 %v548, %v544
    %v613 = vpack.c.b16 %v549, %v545
    %v614 = vpack.c.b16 %v550, %v546
    %679 = vmatprep.subr.bf16.mxu0 %v580
    %680 = vmatpush1.bf16.msra.mxu0 %v579
    %681 = vmatprep.subr.bf16.mxu0 %v576
    %682 = vmatpush1.bf16.msra.mxu0 %v575
    %683 = vmatprep.subr.bf16.mxu0 %v572
    %684 = vmatpush1.bf16.msra.mxu0 %v571
    %685 = vmatprep.subr.bf16.mxu0 %v568
    %686 = vmatpush1.bf16.msra.mxu0 %v567
    %687 = vmatprep.subr.bf16.mxu0 %v564
    %688 = vmatpush1.bf16.msra.mxu0 %v563
    %689 = vmatprep.subr.bf16.mxu0 %v560
    %690 = vmatpush1.bf16.msra.mxu0 %v559
    %691 = vmatprep.subr.bf16.mxu0 %v556
    %692 = vmatpush1.bf16.msra.mxu0 %v555
    %693 = vmatprep.subr.bf16.mxu0 %v552
    %694 = vmatpush1.bf16.msra.mxu0 %v551
    %695 = vmatprep.subr.bf16.mxu0 %v612
    %696 = vmatpush2.bf16.msra.mxu0 %v611
    %697 = vmatprep.subr.bf16.mxu0 %v608
    %698 = vmatpush2.bf16.msra.mxu0 %v607
    %699 = vmatprep.subr.bf16.mxu0 %v604
    %700 = vmatpush2.bf16.msra.mxu0 %v603
    %701 = vmatprep.subr.bf16.mxu0 %v600
    %702 = vmatpush2.bf16.msra.mxu0 %v599
    %703 = vmatprep.subr.bf16.mxu0 %v596
    %704 = vmatpush2.bf16.msra.mxu0 %v595
    %705 = vmatprep.subr.bf16.mxu0 %v592
    %706 = vmatpush2.bf16.msra.mxu0 %v591
    %707 = vmatprep.subr.bf16.mxu0 %v588
    %708 = vmatpush2.bf16.msra.mxu0 %v587
    %709 = vmatprep.subr.bf16.mxu0 %v584
    %710 = vmatpush2.bf16.msra.mxu0 %v583
    %711 = vmatprep.mubr.bf16.mxu0 %v272
    %712 = vmatmul.mubr.bf16.gmra.mxu0 %v271
    %v713 = vpop.f32.mrf.mxu0
    %v714 = vadd.f32 %v342, %v713
    %v715 = vpop.f32.mrf.mxu0
    %v716 = vadd.f32 %v346, %v715
    %v717 = vpop.f32.mrf.mxu0
    %v718 = vpop.f32.mrf.mxu0
    %719 = vdwg.mxu0
    %720 = vmatprep.subr.bf16.mxu0 %v582
    %721 = vmatpush1.bf16.msra.mxu0 %v581
    %722 = vmatprep.subr.bf16.mxu0 %v578
    %723 = vmatpush1.bf16.msra.mxu0 %v577
    %724 = vmatprep.subr.bf16.mxu0 %v574
    %725 = vmatpush1.bf16.msra.mxu0 %v573
    %726 = vmatprep.subr.bf16.mxu0 %v570
    %727 = vmatpush1.bf16.msra.mxu0 %v569
    %728 = vmatprep.subr.bf16.mxu0 %v566
    %729 = vmatpush1.bf16.msra.mxu0 %v565
    %730 = vmatprep.subr.bf16.mxu0 %v562
    %731 = vmatpush1.bf16.msra.mxu0 %v561
    %732 = vmatprep.subr.bf16.mxu0 %v558
    %733 = vmatpush1.bf16.msra.mxu0 %v557
    %734 = vmatprep.subr.bf16.mxu0 %v554
    %735 = vmatpush1.bf16.msra.mxu0 %v553
    %736 = vmatprep.subr.bf16.mxu0 %v614
    %737 = vmatpush2.bf16.msra.mxu0 %v613
    %738 = vmatprep.subr.bf16.mxu0 %v610
    %739 = vmatpush2.bf16.msra.mxu0 %v609
    %740 = vmatprep.subr.bf16.mxu0 %v606
    %741 = vmatpush2.bf16.msra.mxu0 %v605
    %742 = vmatprep.subr.bf16.mxu0 %v602
    %743 = vmatpush2.bf16.msra.mxu0 %v601
    %744 = vmatprep.subr.bf16.mxu0 %v598
    %745 = vmatpush2.bf16.msra.mxu0 %v597
    %746 = vmatprep.subr.bf16.mxu0 %v594
    %747 = vmatpush2.bf16.msra.mxu0 %v593
    %748 = vmatprep.subr.bf16.mxu0 %v590
    %749 = vmatpush2.bf16.msra.mxu0 %v589
    %750 = vmatprep.subr.bf16.mxu0 %v586
    %751 = vmatpush2.bf16.msra.mxu0 %v585
    %752 = vmatprep.mubr.bf16.mxu0 %v272
    %753 = vmatmul.mubr.bf16.gmra.mxu0 %v271
    %v754 = vpop.f32.mrf.mxu0
    %v755 = vadd.f32 %v350, %v754
    %v756 = vpop.f32.mrf.mxu0
    %v757 = vadd.f32 %v354, %v756
    %v758 = vpop.f32.mrf.mxu0
    %v759 = vpop.f32.mrf.mxu0
    %760 = vdwg.mxu0
    %v761 = vxor.u32 %v714, 2147483648
    %v762 = vmul.f32 %v761, 1.442695
    %v763 = vpow.pop %v762
    %v764 = vadd.f32 %v763, 1.0
    %v765 = vrcp.pop %v764
    %v766 = vmul.f32 1.0, %v765
    %v767 = vxor.u32 %v716, 2147483648
    %v768 = vmul.f32 %v767, 1.442695
    %v769 = vpow.pop %v768
    %v770 = vadd.f32 %v769, 1.0
    %v771 = vrcp.pop %v770
    %v772 = vmul.f32 1.0, %v771
    %v773 = vtanh.pop %v755
    %v774 = vxor.u32 %v757, 2147483648
    %v775 = vmul.f32 %v774, 1.442695
    %v776 = vpow.pop %v775
    %v777 = vadd.f32 %v776, 1.0
    %v778 = vrcp.pop %v777
    %v779 = vmul.f32 1.0, %v778
    %v780 = vmul.f32 %v772, %v269
    %v781 = vmul.f32 %v766, %v773
    %v782 = vadd.f32 %v780, %v781
    %v783 = vtanh.pop %v782
    %v784 = vmul.f32 %v779, %v783
    %v785 = vpack.c.bf16 %v784, %v784
    %v786 = vld [vmem:[#allocation11] sm:$0xff]
    %v787 = vld [vmem:[#allocation11 + $0x8] sm:$0xff]
    %v788 = vld [vmem:[#allocation11 + $0x10] sm:$0xff]
    %v789 = vld [vmem:[#allocation11 + $0x18] sm:$0xff]
    %v790 = vld [vmem:[#allocation11 + $0x20] sm:$0xff]
    %v791 = vld [vmem:[#allocation11 + $0x28] sm:$0xff]
    %v792 = vld [vmem:[#allocation11 + $0x30] sm:$0xff]
    %v793 = vld [vmem:[#allocation11 + $0x38] sm:$0xff]
    %v794 = vld [vmem:[#allocation11 + $0x40] sm:$0xff]
    %v795 = vld [vmem:[#allocation11 + $0x48] sm:$0xff]
    %v796 = vld [vmem:[#allocation11 + $0x50] sm:$0xff]
    %v797 = vld [vmem:[#allocation11 + $0x58] sm:$0xff]
    %v798 = vld [vmem:[#allocation11 + $0x60] sm:$0xff]
    %v799 = vld [vmem:[#allocation11 + $0x68] sm:$0xff]
    %v800 = vld [vmem:[#allocation11 + $0x70] sm:$0xff]
    %v801 = vld [vmem:[#allocation11 + $0x78] sm:$0xff]
    %v818 = vunpack.c.l.b16 %v786
    %v819 = vunpack.c.h.b16 %v786
    %v820 = vunpack.c.l.b16 %v787
    %v821 = vunpack.c.h.b16 %v787
    %v822 = vunpack.c.l.b16 %v788
    %v823 = vunpack.c.h.b16 %v788
    %v824 = vunpack.c.l.b16 %v789
    %v825 = vunpack.c.h.b16 %v789
    %v826 = vunpack.c.l.b16 %v790
    %v827 = vunpack.c.h.b16 %v790
    %v828 = vunpack.c.l.b16 %v791
    %v829 = vunpack.c.h.b16 %v791
    %v830 = vunpack.c.l.b16 %v792
    %v831 = vunpack.c.h.b16 %v792
    %v832 = vunpack.c.l.b16 %v793
    %v833 = vunpack.c.h.b16 %v793
    %v834 = vunpack.c.l.b16 %v794
    %v835 = vunpack.c.h.b16 %v794
    %v836 = vunpack.c.l.b16 %v795
    %v837 = vunpack.c.h.b16 %v795
    %v838 = vunpack.c.l.b16 %v796
    %v839 = vunpack.c.h.b16 %v796
    %v840 = vunpack.c.l.b16 %v797
    %v841 = vunpack.c.h.b16 %v797
    %v842 = vunpack.c.l.b16 %v798
    %v843 = vunpack.c.h.b16 %v798
    %v844 = vunpack.c.l.b16 %v799
    %v845 = vunpack.c.h.b16 %v799
    %v846 = vunpack.c.l.b16 %v800
    %v847 = vunpack.c.h.b16 %v800
    %v848 = vunpack.c.l.b16 %v801
    %v849 = vunpack.c.h.b16 %v801
    %v850 = vpack.c.b16 %v820, %v818
    %v851 = vpack.c.b16 %v821, %v819
    %v852 = vpack.c.b16 %v824, %v822
    %v853 = vpack.c.b16 %v825, %v823
    %v854 = vpack.c.b16 %v828, %v826
    %v855 = vpack.c.b16 %v829, %v827
    %v856 = vpack.c.b16 %v832, %v830
    %v857 = vpack.c.b16 %v833, %v831
    %v858 = vpack.c.b16 %v836, %v834
    %v859 = vpack.c.b16 %v837, %v835
    %v860 = vpack.c.b16 %v840, %v838
    %v861 = vpack.c.b16 %v841, %v839
    %v862 = vpack.c.b16 %v844, %v842
    %v863 = vpack.c.b16 %v845, %v843
    %v864 = vpack.c.b16 %v848, %v846
    %v865 = vpack.c.b16 %v849, %v847
    %882 = vmatprep.subr.bf16.mxu0 %v865
    %883 = vmatpush1.bf16.msra.mxu0 %v864
    %884 = vmatprep.subr.bf16.mxu0 %v863
    %885 = vmatpush1.bf16.msra.mxu0 %v862
    %886 = vmatprep.subr.bf16.mxu0 %v861
    %887 = vmatpush1.bf16.msra.mxu0 %v860
    %888 = vmatprep.subr.bf16.mxu0 %v859
    %889 = vmatpush1.bf16.msra.mxu0 %v858
    %890 = vmatprep.subr.bf16.mxu0 %v857
    %891 = vmatpush1.bf16.msra.mxu0 %v856
    %892 = vmatprep.subr.bf16.mxu0 %v855
    %893 = vmatpush1.bf16.msra.mxu0 %v854
    %894 = vmatprep.subr.bf16.mxu0 %v853
    %895 = vmatpush1.bf16.msra.mxu0 %v852
    %896 = vmatprep.subr.bf16.mxu0 %v851
    %897 = vmatpush1.bf16.msra.mxu0 %v850
    %898 = vmatprep.subr.bf16.mxu0 0
    %899 = vmatpush2.bf16.msra.mxu0 0
    %900 = vmatprep.subr.bf16.mxu0 0
    %901 = vmatpush2.bf16.msra.mxu0 0
    %902 = vmatprep.subr.bf16.mxu0 0
    %903 = vmatpush2.bf16.msra.mxu0 0
    %904 = vmatprep.subr.bf16.mxu0 0
    %905 = vmatpush2.bf16.msra.mxu0 0
    %906 = vmatprep.subr.bf16.mxu0 0
    %907 = vmatpush2.bf16.msra.mxu0 0
    %908 = vmatprep.subr.bf16.mxu0 0
    %909 = vmatpush2.bf16.msra.mxu0 0
    %910 = vmatprep.subr.bf16.mxu0 0
    %911 = vmatpush2.bf16.msra.mxu0 0
    %912 = vmatprep.subr.bf16.mxu0 0
    %913 = vmatpush2.bf16.msra.mxu0 0
    %914 = vmatprep.mubr.bf16.mxu0 0
    %915 = vmatmul.mubr.bf16.gmra.mxu0 %v785
    %v916 = vpop.f32.mrf.mxu0
    %v917 = vadd.f32 0.0, %v916
    %v918 = vpop.f32.mrf.mxu0
    %v919 = vadd.f32 0.0, %v918
    %v920 = vpop.f32.mrf.mxu0
    %v921 = vpop.f32.mrf.mxu0
    %922 = vdwg.mxu0
    %v924 = vcombine.high %v917, %v917
    %v926 = vunpack.c.l.s4 1966171168
    %v927 = vunpack.c.0.s8 %v926
    %v928 = vlaneseq
    %v929 = vshrl.u32 %v928, 7
    %v930 = vsub.s32 %v927, %v929
    %v931 = vrot.slane %v917, %v930
    %v933 = vunpack.c.l.s4 1966171168
    %v934 = vunpack.c.0.s8 %v933
    %v935 = vlaneseq
    %v936 = vshrl.u32 %v935, 7
    %v937 = vsub.s32 %v934, %v936
    %v938 = vrot.slane %v924, %v937
    %v939 = vcombine.high %v931, %v931
    %v940 = vcombine.high %v938, %v938
    %v942 = vunpack.c.l.s4 1966171168
    %v943 = vunpack.c.0.s8 %v942
    %v944 = vlaneseq
    %v945 = vshrl.u32 %v944, 7
    %v946 = vsub.s32 %v943, %v945
    %v947 = vrot.slane %v931, %v946
    %v949 = vunpack.c.l.s4 1966171168
    %v950 = vunpack.c.0.s8 %v949
    %v951 = vlaneseq
    %v952 = vshrl.u32 %v951, 7
    %v953 = vsub.s32 %v950, %v952
    %v954 = vrot.slane %v938, %v953
    %v956 = vunpack.c.l.s4 1966171168
    %v957 = vunpack.c.0.s8 %v956
    %v958 = vlaneseq
    %v959 = vshrl.u32 %v958, 7
    %v960 = vsub.s32 %v957, %v959
    %v961 = vrot.slane %v939, %v960
    %v963 = vunpack.c.l.s4 1966171168
    %v964 = vunpack.c.0.s8 %v963
    %v965 = vlaneseq
    %v966 = vshrl.u32 %v965, 7
    %v967 = vsub.s32 %v964, %v966
    %v968 = vrot.slane %v940, %v967
    %v969 = vcombine.high %v947, %v947
    %v970 = vcombine.high %v954, %v954
    %v971 = vcombine.high %v961, %v961
    %v972 = vcombine.high %v968, %v968
    %v973 = vld [vmem:[%s4] sm:$0xf]
    %v974 = vld [vmem:[%s4 + $0x4] sm:$0xf]
    %v975 = vld [vmem:[%s4 + $0x8] sm:$0xf]
    %v976 = vld [vmem:[%s4 + $0xc] sm:$0xf]
    %v977 = vld [vmem:[%s4 + $0x10] sm:$0xf]
    %v978 = vld [vmem:[%s4 + $0x14] sm:$0xf]
    %v979 = vld [vmem:[%s4 + $0x18] sm:$0xf]
    %v980 = vld [vmem:[%s4 + $0x1c] sm:$0xf]
    %v981 = vunpack.c.l.bf16 %v973
    %v982 = vunpack.c.l.bf16 %v974
    %v983 = vunpack.c.l.bf16 %v975
    %v984 = vunpack.c.l.bf16 %v976
    %v985 = vunpack.c.l.bf16 %v977
    %v986 = vunpack.c.l.bf16 %v978
    %v987 = vunpack.c.l.bf16 %v979
    %v988 = vunpack.c.l.bf16 %v980
    %v989 = vlaneseq
    %v990 = vshrl.u32 %v989, 7
    %v991 = vsub.s32 0, %v990
    %v992 = vrot.slane %v947, %v991
    %v993 = vlaneseq
    %v994 = vshrl.u32 %v993, 7
    %v995 = vsub.s32 0, %v994
    %v996 = vrot.slane %v961, %v995
    %v997 = vlaneseq
    %v998 = vshrl.u32 %v997, 7
    %v999 = vsub.s32 0, %v998
    %v1000 = vrot.slane %v969, %v999
    %v1001 = vlaneseq
    %v1002 = vshrl.u32 %v1001, 7
    %v1003 = vsub.s32 0, %v1002
    %v1004 = vrot.slane %v971, %v1003
    %v1005 = vlaneseq
    %v1006 = vshrl.u32 %v1005, 7
    %v1007 = vsub.s32 0, %v1006
    %v1008 = vrot.slane %v954, %v1007
    %v1009 = vlaneseq
    %v1010 = vshrl.u32 %v1009, 7
    %v1011 = vsub.s32 0, %v1010
    %v1012 = vrot.slane %v968, %v1011
    %v1013 = vlaneseq
    %v1014 = vshrl.u32 %v1013, 7
    %v1015 = vsub.s32 0, %v1014
    %v1016 = vrot.slane %v970, %v1015
    %v1017 = vlaneseq
    %v1018 = vshrl.u32 %v1017, 7
    %v1019 = vsub.s32 0, %v1018
    %v1020 = vrot.slane %v972, %v1019
    %v1029 = vadd.f32 %v992, %v981
    %v1030 = vadd.f32 %v996, %v982
    %v1031 = vadd.f32 %v1000, %v983
    %v1032 = vadd.f32 %v1004, %v984
    %v1033 = vadd.f32 %v1008, %v985
    %v1034 = vadd.f32 %v1012, %v986
    %v1035 = vadd.f32 %v1016, %v987
    %v1036 = vadd.f32 %v1020, %v988
    %v1037 = vtanh.pop %v1029
    %v1038 = vtanh.pop %v1030
    %v1039 = vtanh.pop %v1031
    %v1040 = vtanh.pop %v1032
    %v1041 = vtanh.pop %v1033
    %v1042 = vtanh.pop %v1034
    %v1043 = vtanh.pop %v1035
    %v1044 = vtanh.pop %v1036
    %v1045 = vld [vmem:[%s10] sm:$0x1]
    %v1047 = vlaneseq
    %v1048 = vshrl.u32 %v1047, 7
    %v1049 = vsub.s32 0, %v1048
    %v1050 = vrot.slane %v1045, %v1049
    %v1052 = vmul.f32 %v1037, %v1050
    %v1053 = vmul.f32 %v1038, %v1050
    %v1054 = vmul.f32 %v1039, %v1050
    %v1055 = vmul.f32 %v1040, %v1050
    %v1056 = vmul.f32 %v1041, %v1050
    %v1057 = vmul.f32 %v1042, %v1050
    %v1058 = vmul.f32 %v1043, %v1050
    %v1059 = vmul.f32 %v1044, %v1050
    %1060 = vadd.xlane.f32.xlu0 %v1052
    %v1061 = vpop.xlane.xlu0 %1060
    %1062 = vadd.xlane.f32.xlu0 %v1053
    %v1063 = vpop.xlane.xlu0 %1062
    %1064 = vadd.xlane.f32.xlu0 %v1054
    %v1065 = vpop.xlane.xlu0 %1064
    %1066 = vadd.xlane.f32.xlu0 %v1055
    %v1067 = vpop.xlane.xlu0 %1066
    %1068 = vadd.xlane.f32.xlu0 %v1056
    %v1069 = vpop.xlane.xlu0 %1068
    %1070 = vadd.xlane.f32.xlu0 %v1057
    %v1071 = vpop.xlane.xlu0 %1070
    %1072 = vadd.xlane.f32.xlu0 %v1058
    %v1073 = vpop.xlane.xlu0 %1072
    %1074 = vadd.xlane.f32.xlu0 %v1059
    %v1075 = vpop.xlane.xlu0 %1074
    %v1076 = vld [vmem:[#allocation8] sm:$0xff]
    %v1077 = vsub.f32 %v1076, 1.0
    %v1078 = vmul.f32 %v1077, 1e+09
    %v1080 = vlaneseq
    %v1081 = vshrl.u32 %v1080, 7
    %v1082 = vsub.s32 0, %v1081
    %v1083 = vrot.slane %v1078, %v1082
    %1085 = vbcast.lane.b32.xlu0 %v1083, 256
    %v1086 = vpop.permute.xlu0 %1085
    %v1087 = vlaneseq
    %v1088 = vshrl.u32 %v1087, 7
    %v1089 = vsub.s32 1, %v1088
    %v1090 = vrot.slane %v1078, %v1089
    %1092 = vbcast.lane.b32.xlu0 %v1090, 256
    %v1093 = vpop.permute.xlu0 %1092
    %v1094 = vlaneseq
    %v1095 = vshrl.u32 %v1094, 7
    %v1096 = vsub.s32 2, %v1095
    %v1097 = vrot.slane %v1078, %v1096
    %1099 = vbcast.lane.b32.xlu0 %v1097, 256
    %v1100 = vpop.permute.xlu0 %1099
    %v1101 = vlaneseq
    %v1102 = vshrl.u32 %v1101, 7
    %v1103 = vsub.s32 3, %v1102
    %v1104 = vrot.slane %v1078, %v1103
    %1106 = vbcast.lane.b32.xlu0 %v1104, 256
    %v1107 = vpop.permute.xlu0 %1106
    %v1108 = vlaneseq
    %v1109 = vshrl.u32 %v1108, 7
    %v1110 = vsub.s32 4, %v1109
    %v1111 = vrot.slane %v1078, %v1110
    %1113 = vbcast.lane.b32.xlu0 %v1111, 256
    %v1114 = vpop.permute.xlu0 %1113
    %v1115 = vlaneseq
    %v1116 = vshrl.u32 %v1115, 7
    %v1117 = vsub.s32 5, %v1116
    %v1118 = vrot.slane %v1078, %v1117
    %1120 = vbcast.lane.b32.xlu0 %v1118, 256
    %v1121 = vpop.permute.xlu0 %1120
    %v1122 = vlaneseq
    %v1123 = vshrl.u32 %v1122, 7
    %v1124 = vsub.s32 6, %v1123
    %v1125 = vrot.slane %v1078, %v1124
    %1127 = vbcast.lane.b32.xlu0 %v1125, 256
    %v1128 = vpop.permute.xlu0 %1127
    %v1129 = vlaneseq
    %v1130 = vshrl.u32 %v1129, 7
    %v1131 = vsub.s32 7, %v1130
    %v1132 = vrot.slane %v1078, %v1131
    %1134 = vbcast.lane.b32.xlu0 %v1132, 256
    %v1135 = vpop.permute.xlu0 %1134
    %v1144 = vadd.f32 %v1061, %v1086
    %v1145 = vadd.f32 %v1063, %v1093
    %v1146 = vadd.f32 %v1065, %v1100
    %v1147 = vadd.f32 %v1067, %v1107
    %v1148 = vadd.f32 %v1069, %v1114
    %v1149 = vadd.f32 %v1071, %v1121
    %v1150 = vadd.f32 %v1073, %v1128
    %v1151 = vadd.f32 %v1075, %v1135
    %1160 = vset.pattern.permute.xlu0 0
    %1161 = vperm.xlu0 %1160, %v1144
    %v1162 = vpop.permute.xlu0 %1161
    %1163 = vset.pattern.permute.xlu0 0
    %1164 = vperm.xlu0 %1163, %v1145
    %v1165 = vpop.permute.xlu0 %1164
    %1166 = vset.pattern.permute.xlu0 0
    %1167 = vperm.xlu0 %1166, %v1146
    %v1168 = vpop.permute.xlu0 %1167
    %1169 = vset.pattern.permute.xlu0 0
    %1170 = vperm.xlu0 %1169, %v1147
    %v1171 = vpop.permute.xlu0 %1170
    %1172 = vset.pattern.permute.xlu0 0
    %1173 = vperm.xlu0 %1172, %v1148
    %v1174 = vpop.permute.xlu0 %1173
    %1175 = vset.pattern.permute.xlu0 0
    %1176 = vperm.xlu0 %1175, %v1149
    %v1177 = vpop.permute.xlu0 %1176
    %1178 = vset.pattern.permute.xlu0 0
    %1179 = vperm.xlu0 %1178, %v1150
    %v1180 = vpop.permute.xlu0 %1179
    %1181 = vset.pattern.permute.xlu0 0
    %1182 = vperm.xlu0 %1181, %v1151
    %v1183 = vpop.permute.xlu0 %1182
    %v1184 = vlaneseq
    %v1185 = vand.u32 %v1184, 127
    %v1186 = vlaneseq
    %v1187 = vshrl.u32 %v1186, 7
    %v1188 = vsub.s32 %v1185, %v1187
    %v1189 = vrot.slane %v1162, %v1188
    %v1190 = vlaneseq
    %v1191 = vshrl.u32 %v1190, 7
    %v1192 = vsub.s32 %v1185, %v1191
    %v1193 = vrot.slane %v1165, %v1192
    %v1194 = vlaneseq
    %v1195 = vshrl.u32 %v1194, 7
    %v1196 = vsub.s32 %v1185, %v1195
    %v1197 = vrot.slane %v1168, %v1196
    %v1198 = vlaneseq
    %v1199 = vshrl.u32 %v1198, 7
    %v1200 = vsub.s32 %v1185, %v1199
    %v1201 = vrot.slane %v1171, %v1200
    %v1202 = vlaneseq
    %v1203 = vshrl.u32 %v1202, 7
    %v1204 = vsub.s32 %v1185, %v1203
    %v1205 = vrot.slane %v1174, %v1204
    %v1206 = vlaneseq
    %v1207 = vshrl.u32 %v1206, 7
    %v1208 = vsub.s32 %v1185, %v1207
    %v1209 = vrot.slane %v1177, %v1208
    %v1210 = vlaneseq
    %v1211 = vshrl.u32 %v1210, 7
    %v1212 = vsub.s32 %v1185, %v1211
    %v1213 = vrot.slane %v1180, %v1212
    %v1214 = vlaneseq
    %v1215 = vshrl.u32 %v1214, 7
    %v1216 = vsub.s32 %v1185, %v1215
    %v1217 = vrot.slane %v1183, %v1216
    %vm1218 = vcmask 1041409
    %v1219 = vsel %vm1218, %v1193, %v1189
    %vm1220 = vcmask 1042434
    %v1221 = vsel %vm1220, %v1197, %v1219
    %vm1222 = vcmask 1043459
    %v1223 = vsel %vm1222, %v1201, %v1221
    %vm1224 = vcmask 1044484
    %v1225 = vsel %vm1224, %v1205, %v1223
    %vm1226 = vcmask 1045509
    %v1227 = vsel %vm1226, %v1209, %v1225
    %vm1228 = vcmask 1046534
    %v1229 = vsel %vm1228, %v1213, %v1227
    %vm1230 = vcmask 1047559
    %v1231 = vsel %vm1230, %v1217, %v1229
    %vm1233 = vcmask 64512
    %v1234 = vsel %vm1233, %v1231, -inf
    %1235 = vmax.xlane.f32.xlu0 %v1234
    %v1236 = vpop.xlane.xlu0 %1235
    %v1238 = vlaneseq
    %v1239 = vshrl.u32 %v1238, 7
    %v1240 = vsub.s32 0, %v1239
    %v1241 = vrot.slane %v1236, %v1240
    %v1242 = vlaneseq
    %v1243 = vshrl.u32 %v1242, 7
    %v1244 = vsub.s32 1, %v1243
    %v1245 = vrot.slane %v1236, %v1244
    %v1246 = vlaneseq
    %v1247 = vshrl.u32 %v1246, 7
    %v1248 = vsub.s32 2, %v1247
    %v1249 = vrot.slane %v1236, %v1248
    %v1250 = vlaneseq
    %v1251 = vshrl.u32 %v1250, 7
    %v1252 = vsub.s32 3, %v1251
    %v1253 = vrot.slane %v1236, %v1252
    %v1254 = vlaneseq
    %v1255 = vshrl.u32 %v1254, 7
    %v1256 = vsub.s32 4, %v1255
    %v1257 = vrot.slane %v1236, %v1256
    %v1258 = vlaneseq
    %v1259 = vshrl.u32 %v1258, 7
    %v1260 = vsub.s32 5, %v1259
    %v1261 = vrot.slane %v1236, %v1260
    %v1262 = vlaneseq
    %v1263 = vshrl.u32 %v1262, 7
    %v1264 = vsub.s32 6, %v1263
    %v1265 = vrot.slane %v1236, %v1264
    %v1266 = vlaneseq
    %v1267 = vshrl.u32 %v1266, 7
    %v1268 = vsub.s32 7, %v1267
    %v1269 = vrot.slane %v1236, %v1268
    %v1278 = vsub.f32 %v1144, %v1241
    %v1279 = vsub.f32 %v1145, %v1245
    %v1280 = vsub.f32 %v1146, %v1249
    %v1281 = vsub.f32 %v1147, %v1253
    %v1282 = vsub.f32 %v1148, %v1257
    %v1283 = vsub.f32 %v1149, %v1261
    %v1284 = vsub.f32 %v1150, %v1265
    %v1285 = vsub.f32 %v1151, %v1269
    %v1286 = vmul.f32 %v1278, 1.442695
    %v1287 = vpow.pop %v1286
    %v1288 = vmul.f32 %v1279, 1.442695
    %v1289 = vpow.pop %v1288
    %v1290 = vmul.f32 %v1280, 1.442695
    %v1291 = vpow.pop %v1290
    %v1292 = vmul.f32 %v1281, 1.442695
    %v1293 = vpow.pop %v1292
    %v1294 = vmul.f32 %v1282, 1.442695
    %v1295 = vpow.pop %v1294
    %v1296 = vmul.f32 %v1283, 1.442695
    %v1297 = vpow.pop %v1296
    %v1298 = vmul.f32 %v1284, 1.442695
    %v1299 = vpow.pop %v1298
    %v1300 = vmul.f32 %v1285, 1.442695
    %v1301 = vpow.pop %v1300
    %v1303 = vlaneseq
    %v1304 = vshrl.u32 %v1303, 7
    %v1305 = vsub.s32 0, %v1304
    %v1306 = vrot.slane %v1076, %v1305
    %1308 = vbcast.lane.b32.xlu0 %v1306, 256
    %v1309 = vpop.permute.xlu0 %1308
    %v1310 = vlaneseq
    %v1311 = vshrl.u32 %v1310, 7
    %v1312 = vsub.s32 1, %v1311
    %v1313 = vrot.slane %v1076, %v1312
    %1315 = vbcast.lane.b32.xlu0 %v1313, 256
    %v1316 = vpop.permute.xlu0 %1315
    %v1317 = vlaneseq
    %v1318 = vshrl.u32 %v1317, 7
    %v1319 = vsub.s32 2, %v1318
    %v1320 = vrot.slane %v1076, %v1319
    %1322 = vbcast.lane.b32.xlu0 %v1320, 256
    %v1323 = vpop.permute.xlu0 %1322
    %v1324 = vlaneseq
    %v1325 = vshrl.u32 %v1324, 7
    %v1326 = vsub.s32 3, %v1325
    %v1327 = vrot.slane %v1076, %v1326
    %1329 = vbcast.lane.b32.xlu0 %v1327, 256
    %v1330 = vpop.permute.xlu0 %1329
    %v1331 = vlaneseq
    %v1332 = vshrl.u32 %v1331, 7
    %v1333 = vsub.s32 4, %v1332
    %v1334 = vrot.slane %v1076, %v1333
    %1336 = vbcast.lane.b32.xlu0 %v1334, 256
    %v1337 = vpop.permute.xlu0 %1336
    %v1338 = vlaneseq
    %v1339 = vshrl.u32 %v1338, 7
    %v1340 = vsub.s32 5, %v1339
    %v1341 = vrot.slane %v1076, %v1340
    %1343 = vbcast.lane.b32.xlu0 %v1341, 256
    %v1344 = vpop.permute.xlu0 %1343
    %v1345 = vlaneseq
    %v1346 = vshrl.u32 %v1345, 7
    %v1347 = vsub.s32 6, %v1346
    %v1348 = vrot.slane %v1076, %v1347
    %1350 = vbcast.lane.b32.xlu0 %v1348, 256
    %v1351 = vpop.permute.xlu0 %1350
    %v1352 = vlaneseq
    %v1353 = vshrl.u32 %v1352, 7
    %v1354 = vsub.s32 7, %v1353
    %v1355 = vrot.slane %v1076, %v1354
    %1357 = vbcast.lane.b32.xlu0 %v1355, 256
    %v1358 = vpop.permute.xlu0 %1357
    %v1367 = vmul.f32 %v1287, %v1309
    %v1368 = vmul.f32 %v1289, %v1316
    %v1369 = vmul.f32 %v1291, %v1323
    %v1370 = vmul.f32 %v1293, %v1330
    %v1371 = vmul.f32 %v1295, %v1337
    %v1372 = vmul.f32 %v1297, %v1344
    %v1373 = vmul.f32 %v1299, %v1351
    %v1374 = vmul.f32 %v1301, %v1358
    %1383 = vset.pattern.permute.xlu0 0
    %1384 = vperm.xlu0 %1383, %v1367
    %v1385 = vpop.permute.xlu0 %1384
    %1386 = vset.pattern.permute.xlu0 0
    %1387 = vperm.xlu0 %1386, %v1368
    %v1388 = vpop.permute.xlu0 %1387
    %1389 = vset.pattern.permute.xlu0 0
    %1390 = vperm.xlu0 %1389, %v1369
    %v1391 = vpop.permute.xlu0 %1390
    %1392 = vset.pattern.permute.xlu0 0
    %1393 = vperm.xlu0 %1392, %v1370
    %v1394 = vpop.permute.xlu0 %1393
    %1395 = vset.pattern.permute.xlu0 0
    %1396 = vperm.xlu0 %1395, %v1371
    %v1397 = vpop.permute.xlu0 %1396
    %1398 = vset.pattern.permute.xlu0 0
    %1399 = vperm.xlu0 %1398, %v1372
    %v1400 = vpop.permute.xlu0 %1399
    %1401 = vset.pattern.permute.xlu0 0
    %1402 = vperm.xlu0 %1401, %v1373
    %v1403 = vpop.permute.xlu0 %1402
    %1404 = vset.pattern.permute.xlu0 0
    %1405 = vperm.xlu0 %1404, %v1374
    %v1406 = vpop.permute.xlu0 %1405
    %v1407 = vlaneseq
    %v1408 = vshrl.u32 %v1407, 7
    %v1409 = vsub.s32 %v1185, %v1408
    %v1410 = vrot.slane %v1385, %v1409
    %v1411 = vlaneseq
    %v1412 = vshrl.u32 %v1411, 7
    %v1413 = vsub.s32 %v1185, %v1412
    %v1414 = vrot.slane %v1388, %v1413
    %v1415 = vlaneseq
    %v1416 = vshrl.u32 %v1415, 7
    %v1417 = vsub.s32 %v1185, %v1416
    %v1418 = vrot.slane %v1391, %v1417
    %v1419 = vlaneseq
    %v1420 = vshrl.u32 %v1419, 7
    %v1421 = vsub.s32 %v1185, %v1420
    %v1422 = vrot.slane %v1394, %v1421
    %v1423 = vlaneseq
    %v1424 = vshrl.u32 %v1423, 7
    %v1425 = vsub.s32 %v1185, %v1424
    %v1426 = vrot.slane %v1397, %v1425
    %v1427 = vlaneseq
    %v1428 = vshrl.u32 %v1427, 7
    %v1429 = vsub.s32 %v1185, %v1428
    %v1430 = vrot.slane %v1400, %v1429
    %v1431 = vlaneseq
    %v1432 = vshrl.u32 %v1431, 7
    %v1433 = vsub.s32 %v1185, %v1432
    %v1434 = vrot.slane %v1403, %v1433
    %v1435 = vlaneseq
    %v1436 = vshrl.u32 %v1435, 7
    %v1437 = vsub.s32 %v1185, %v1436
    %v1438 = vrot.slane %v1406, %v1437
    %v1439 = vsel %vm1218, %v1414, %v1410
    %v1440 = vsel %vm1220, %v1418, %v1439
    %v1441 = vsel %vm1222, %v1422, %v1440
    %v1442 = vsel %vm1224, %v1426, %v1441
    %v1443 = vsel %vm1226, %v1430, %v1442
    %v1444 = vsel %vm1228, %v1434, %v1443
    %v1445 = vsel %vm1230, %v1438, %v1444
    %v1447 = vsel %vm1233, %v1445, 0.0
    %1448 = vadd.xlane.f32.xlu0 %v1447
    %v1449 = vpop.xlane.xlu0 %1448
    %v1450 = vadd.f32 %v1449, 1e-10
    %v1451 = vrcp.pop %v1450
    %v1453 = vlaneseq
    %v1454 = vshrl.u32 %v1453, 7
    %v1455 = vsub.s32 0, %v1454
    %v1456 = vrot.slane %v1451, %v1455
    %v1457 = vlaneseq
    %v1458 = vshrl.u32 %v1457, 7
    %v1459 = vsub.s32 1, %v1458
    %v1460 = vrot.slane %v1451, %v1459
    %v1461 = vlaneseq
    %v1462 = vshrl.u32 %v1461, 7
    %v1463 = vsub.s32 2, %v1462
    %v1464 = vrot.slane %v1451, %v1463
    %v1465 = vlaneseq
    %v1466 = vshrl.u32 %v1465, 7
    %v1467 = vsub.s32 3, %v1466
    %v1468 = vrot.slane %v1451, %v1467
    %v1469 = vlaneseq
    %v1470 = vshrl.u32 %v1469, 7
    %v1471 = vsub.s32 4, %v1470
    %v1472 = vrot.slane %v1451, %v1471
    %v1473 = vlaneseq
    %v1474 = vshrl.u32 %v1473, 7
    %v1475 = vsub.s32 5, %v1474
    %v1476 = vrot.slane %v1451, %v1475
    %v1477 = vlaneseq
    %v1478 = vshrl.u32 %v1477, 7
    %v1479 = vsub.s32 6, %v1478
    %v1480 = vrot.slane %v1451, %v1479
    %v1481 = vlaneseq
    %v1482 = vshrl.u32 %v1481, 7
    %v1483 = vsub.s32 7, %v1482
    %v1484 = vrot.slane %v1451, %v1483
    %v1493 = vmul.f32 %v1367, %v1456
    %v1494 = vmul.f32 %v1368, %v1460
    %v1495 = vmul.f32 %v1369, %v1464
    %v1496 = vmul.f32 %v1370, %v1468
    %v1497 = vmul.f32 %v1371, %v1472
    %v1498 = vmul.f32 %v1372, %v1476
    %v1499 = vmul.f32 %v1373, %v1480
    %v1500 = vmul.f32 %v1374, %v1484
    %v1501 = vpack.c.bf16 %v1493, %v1493
    %v1502 = vpack.c.bf16 %v1494, %v1494
    %v1503 = vpack.c.bf16 %v1495, %v1495
    %v1504 = vpack.c.bf16 %v1496, %v1496
    %v1505 = vpack.c.bf16 %v1497, %v1497
    %v1506 = vpack.c.bf16 %v1498, %v1498
    %v1507 = vpack.c.bf16 %v1499, %v1499
    %v1508 = vpack.c.bf16 %v1500, %v1500
    %v1509 = vld [vmem:[#allocation7] sm:$0xf]
    %v1510 = vld [vmem:[#allocation7 + $0x4] sm:$0xf]
    %v1511 = vld [vmem:[#allocation7 + $0x8] sm:$0xf]
    %v1512 = vld [vmem:[#allocation7 + $0xc] sm:$0xf]
    %v1513 = vld [vmem:[#allocation7 + $0x10] sm:$0xf]
    %v1514 = vld [vmem:[#allocation7 + $0x14] sm:$0xf]
    %v1515 = vld [vmem:[#allocation7 + $0x18] sm:$0xf]
    %v1516 = vld [vmem:[#allocation7 + $0x1c] sm:$0xf]
    %v1518 = vunpack.c.l.b16 %v1501
    %1519 = vset.pattern.permute.xlu0 0
    %1520 = vperm.xlu0 %1519, %v1518
    %v1521 = vpop.permute.xlu0 %1520
    %v1522 = vlaneseq
    %v1523 = vshrl.u32 %v1522, 7
    %v1524 = vsub.s32 %v1185, %v1523
    %v1525 = vrot.slane %v1521, %v1524
    %v1526 = vpack.c.b16 %v1525, %v1525
    %v1528 = vsel %vm1233, %v1526, 0
    %vm1530 = vcmask 1043456
    %v1532 = vsel %vm1530, %v1509, 0
    %1534 = vmatprep.subr.bf16.mxu0 0
    %1535 = vmatpush1.bf16.msra.mxu0 0
    %1536 = vmatprep.subr.bf16.mxu0 0
    %1537 = vmatpush1.bf16.msra.mxu0 0
    %1538 = vmatprep.subr.bf16.mxu0 0
    %1539 = vmatpush1.bf16.msra.mxu0 0
    %1540 = vmatprep.subr.bf16.mxu0 0
    %1541 = vmatpush1.bf16.msra.mxu0 0
    %1542 = vmatprep.subr.bf16.mxu0 0
    %1543 = vmatpush1.bf16.msra.mxu0 0
    %1544 = vmatprep.subr.bf16.mxu0 0
    %1545 = vmatpush1.bf16.msra.mxu0 0
    %1546 = vmatprep.subr.bf16.mxu0 0
    %1547 = vmatpush1.bf16.msra.mxu0 0
    %1548 = vmatprep.subr.bf16.mxu0 0
    %1549 = vmatpush1.bf16.msra.mxu0 %v1532
    %1550 = vmatprep.subr.bf16.mxu0 0
    %1551 = vmatpush2.bf16.msra.mxu0 0
    %1552 = vmatprep.subr.bf16.mxu0 0
    %1553 = vmatpush2.bf16.msra.mxu0 0
    %1554 = vmatprep.subr.bf16.mxu0 0
    %1555 = vmatpush2.bf16.msra.mxu0 0
    %1556 = vmatprep.subr.bf16.mxu0 0
    %1557 = vmatpush2.bf16.msra.mxu0 0
    %1558 = vmatprep.subr.bf16.mxu0 0
    %1559 = vmatpush2.bf16.msra.mxu0 0
    %1560 = vmatprep.subr.bf16.mxu0 0
    %1561 = vmatpush2.bf16.msra.mxu0 0
    %1562 = vmatprep.subr.bf16.mxu0 0
    %1563 = vmatpush2.bf16.msra.mxu0 0
    %1564 = vmatprep.subr.bf16.mxu0 0
    %1565 = vmatpush2.bf16.msra.mxu0 0
    %1566 = vmatprep.mubr.bf16.mxu0 0
    %1567 = vmatmul.mubr.bf16.gmra.mxu0 %v1528
    %v1568 = vpop.f32.mrf.mxu0
    %v1569 = vadd.f32 0.0, %v1568
    %v1570 = vpop.f32.mrf.mxu0
    %v1571 = vpop.f32.mrf.mxu0
    %v1572 = vpop.f32.mrf.mxu0
    %1573 = vdwg.mxu0
    %v1575 = vunpack.c.l.b16 %v1502
    %1576 = vset.pattern.permute.xlu0 0
    %1577 = vperm.xlu0 %1576, %v1575
    %v1578 = vpop.permute.xlu0 %1577
    %v1579 = vlaneseq
    %v1580 = vshrl.u32 %v1579, 7
    %v1581 = vsub.s32 %v1185, %v1580
    %v1582 = vrot.slane %v1578, %v1581
    %v1583 = vpack.c.b16 %v1582, %v1582
    %v1585 = vsel %vm1233, %v1583, 0
    %v1588 = vsel %vm1530, %v1510, 0
    %1590 = vmatprep.subr.bf16.mxu0 0
    %1591 = vmatpush1.bf16.msra.mxu0 0
    %1592 = vmatprep.subr.bf16.mxu0 0
    %1593 = vmatpush1.bf16.msra.mxu0 0
    %1594 = vmatprep.subr.bf16.mxu0 0
    %1595 = vmatpush1.bf16.msra.mxu0 0
    %1596 = vmatprep.subr.bf16.mxu0 0
    %1597 = vmatpush1.bf16.msra.mxu0 0
    %1598 = vmatprep.subr.bf16.mxu0 0
    %1599 = vmatpush1.bf16.msra.mxu0 0
    %1600 = vmatprep.subr.bf16.mxu0 0
    %1601 = vmatpush1.bf16.msra.mxu0 0
    %1602 = vmatprep.subr.bf16.mxu0 0
    %1603 = vmatpush1.bf16.msra.mxu0 0
    %1604 = vmatprep.subr.bf16.mxu0 0
    %1605 = vmatpush1.bf16.msra.mxu0 %v1588
    %1606 = vmatprep.subr.bf16.mxu0 0
    %1607 = vmatpush2.bf16.msra.mxu0 0
    %1608 = vmatprep.subr.bf16.mxu0 0
    %1609 = vmatpush2.bf16.msra.mxu0 0
    %1610 = vmatprep.subr.bf16.mxu0 0
    %1611 = vmatpush2.bf16.msra.mxu0 0
    %1612 = vmatprep.subr.bf16.mxu0 0
    %1613 = vmatpush2.bf16.msra.mxu0 0
    %1614 = vmatprep.subr.bf16.mxu0 0
    %1615 = vmatpush2.bf16.msra.mxu0 0
    %1616 = vmatprep.subr.bf16.mxu0 0
    %1617 = vmatpush2.bf16.msra.mxu0 0
    %1618 = vmatprep.subr.bf16.mxu0 0
    %1619 = vmatpush2.bf16.msra.mxu0 0
    %1620 = vmatprep.subr.bf16.mxu0 0
    %1621 = vmatpush2.bf16.msra.mxu0 0
    %1622 = vmatprep.mubr.bf16.mxu0 0
    %1623 = vmatmul.mubr.bf16.gmra.mxu0 %v1585
    %v1624 = vpop.f32.mrf.mxu0
    %v1625 = vadd.f32 0.0, %v1624
    %v1626 = vpop.f32.mrf.mxu0
    %v1627 = vpop.f32.mrf.mxu0
    %v1628 = vpop.f32.mrf.mxu0
    %1629 = vdwg.mxu0
    %v1631 = vunpack.c.l.b16 %v1503
    %1632 = vset.pattern.permute.xlu0 0
    %1633 = vperm.xlu0 %1632, %v1631
    %v1634 = vpop.permute.xlu0 %1633
    %v1635 = vlaneseq
    %v1636 = vshrl.u32 %v1635, 7
    %v1637 = vsub.s32 %v1185, %v1636
    %v1638 = vrot.slane %v1634, %v1637
    %v1639 = vpack.c.b16 %v1638, %v1638
    %v1641 = vsel %vm1233, %v1639, 0
    %v1644 = vsel %vm1530, %v1511, 0
    %1646 = vmatprep.subr.bf16.mxu0 0
    %1647 = vmatpush1.bf16.msra.mxu0 0
    %1648 = vmatprep.subr.bf16.mxu0 0
    %1649 = vmatpush1.bf16.msra.mxu0 0
    %1650 = vmatprep.subr.bf16.mxu0 0
    %1651 = vmatpush1.bf16.msra.mxu0 0
    %1652 = vmatprep.subr.bf16.mxu0 0
    %1653 = vmatpush1.bf16.msra.mxu0 0
    %1654 = vmatprep.subr.bf16.mxu0 0
    %1655 = vmatpush1.bf16.msra.mxu0 0
    %1656 = vmatprep.subr.bf16.mxu0 0
    %1657 = vmatpush1.bf16.msra.mxu0 0
    %1658 = vmatprep.subr.bf16.mxu0 0
    %1659 = vmatpush1.bf16.msra.mxu0 0
    %1660 = vmatprep.subr.bf16.mxu0 0
    %1661 = vmatpush1.bf16.msra.mxu0 %v1644
    %1662 = vmatprep.subr.bf16.mxu0 0
    %1663 = vmatpush2.bf16.msra.mxu0 0
    %1664 = vmatprep.subr.bf16.mxu0 0
    %1665 = vmatpush2.bf16.msra.mxu0 0
    %1666 = vmatprep.subr.bf16.mxu0 0
    %1667 = vmatpush2.bf16.msra.mxu0 0
    %1668 = vmatprep.subr.bf16.mxu0 0
    %1669 = vmatpush2.bf16.msra.mxu0 0
    %1670 = vmatprep.subr.bf16.mxu0 0
    %1671 = vmatpush2.bf16.msra.mxu0 0
    %1672 = vmatprep.subr.bf16.mxu0 0
    %1673 = vmatpush2.bf16.msra.mxu0 0
    %1674 = vmatprep.subr.bf16.mxu0 0
    %1675 = vmatpush2.bf16.msra.mxu0 0
    %1676 = vmatprep.subr.bf16.mxu0 0
    %1677 = vmatpush2.bf16.msra.mxu0 0
    %1678 = vmatprep.mubr.bf16.mxu0 0
    %1679 = vmatmul.mubr.bf16.gmra.mxu0 %v1641
    %v1680 = vpop.f32.mrf.mxu0
    %v1681 = vadd.f32 0.0, %v1680
    %v1682 = vpop.f32.mrf.mxu0
    %v1683 = vpop.f32.mrf.mxu0
    %v1684 = vpop.f32.mrf.mxu0
    %1685 = vdwg.mxu0
    %v1687 = vunpack.c.l.b16 %v1504
    %1688 = vset.pattern.permute.xlu0 0
    %1689 = vperm.xlu0 %1688, %v1687
    %v1690 = vpop.permute.xlu0 %1689
    %v1691 = vlaneseq
    %v1692 = vshrl.u32 %v1691, 7
    %v1693 = vsub.s32 %v1185, %v1692
    %v1694 = vrot.slane %v1690, %v1693
    %v1695 = vpack.c.b16 %v1694, %v1694
    %v1697 = vsel %vm1233, %v1695, 0
    %v1700 = vsel %vm1530, %v1512, 0
    %1702 = vmatprep.subr.bf16.mxu0 0
    %1703 = vmatpush1.bf16.msra.mxu0 0
    %1704 = vmatprep.subr.bf16.mxu0 0
    %1705 = vmatpush1.bf16.msra.mxu0 0
    %1706 = vmatprep.subr.bf16.mxu0 0
    %1707 = vmatpush1.bf16.msra.mxu0 0
    %1708 = vmatprep.subr.bf16.mxu0 0
    %1709 = vmatpush1.bf16.msra.mxu0 0
    %1710 = vmatprep.subr.bf16.mxu0 0
    %1711 = vmatpush1.bf16.msra.mxu0 0
    %1712 = vmatprep.subr.bf16.mxu0 0
    %1713 = vmatpush1.bf16.msra.mxu0 0
    %1714 = vmatprep.subr.bf16.mxu0 0
    %1715 = vmatpush1.bf16.msra.mxu0 0
    %1716 = vmatprep.subr.bf16.mxu0 0
    %1717 = vmatpush1.bf16.msra.mxu0 %v1700
    %1718 = vmatprep.subr.bf16.mxu0 0
    %1719 = vmatpush2.bf16.msra.mxu0 0
    %1720 = vmatprep.subr.bf16.mxu0 0
    %1721 = vmatpush2.bf16.msra.mxu0 0
    %1722 = vmatprep.subr.bf16.mxu0 0
    %1723 = vmatpush2.bf16.msra.mxu0 0
    %1724 = vmatprep.subr.bf16.mxu0 0
    %1725 = vmatpush2.bf16.msra.mxu0 0
    %1726 = vmatprep.subr.bf16.mxu0 0
    %1727 = vmatpush2.bf16.msra.mxu0 0
    %1728 = vmatprep.subr.bf16.mxu0 0
    %1729 = vmatpush2.bf16.msra.mxu0 0
    %1730 = vmatprep.subr.bf16.mxu0 0
    %1731 = vmatpush2.bf16.msra.mxu0 0
    %1732 = vmatprep.subr.bf16.mxu0 0
    %1733 = vmatpush2.bf16.msra.mxu0 0
    %1734 = vmatprep.mubr.bf16.mxu0 0
    %1735 = vmatmul.mubr.bf16.gmra.mxu0 %v1697
    %v1736 = vpop.f32.mrf.mxu0
    %v1737 = vadd.f32 0.0, %v1736
    %v1738 = vpop.f32.mrf.mxu0
    %v1739 = vpop.f32.mrf.mxu0
    %v1740 = vpop.f32.mrf.mxu0
    %1741 = vdwg.mxu0
    %v1743 = vunpack.c.l.b16 %v1505
    %1744 = vset.pattern.permute.xlu0 0
    %1745 = vperm.xlu0 %1744, %v1743
    %v1746 = vpop.permute.xlu0 %1745
    %v1747 = vlaneseq
    %v1748 = vshrl.u32 %v1747, 7
    %v1749 = vsub.s32 %v1185, %v1748
    %v1750 = vrot.slane %v1746, %v1749
    %v1751 = vpack.c.b16 %v1750, %v1750
    %v1753 = vsel %vm1233, %v1751, 0
    %v1756 = vsel %vm1530, %v1513, 0
    %1758 = vmatprep.subr.bf16.mxu0 0
    %1759 = vmatpush1.bf16.msra.mxu0 0
    %1760 = vmatprep.subr.bf16.mxu0 0
    %1761 = vmatpush1.bf16.msra.mxu0 0
    %1762 = vmatprep.subr.bf16.mxu0 0
    %1763 = vmatpush1.bf16.msra.mxu0 0
    %1764 = vmatprep.subr.bf16.mxu0 0
    %1765 = vmatpush1.bf16.msra.mxu0 0
    %1766 = vmatprep.subr.bf16.mxu0 0
    %1767 = vmatpush1.bf16.msra.mxu0 0
    %1768 = vmatprep.subr.bf16.mxu0 0
    %1769 = vmatpush1.bf16.msra.mxu0 0
    %1770 = vmatprep.subr.bf16.mxu0 0
    %1771 = vmatpush1.bf16.msra.mxu0 0
    %1772 = vmatprep.subr.bf16.mxu0 0
    %1773 = vmatpush1.bf16.msra.mxu0 %v1756
    %1774 = vmatprep.subr.bf16.mxu0 0
    %1775 = vmatpush2.bf16.msra.mxu0 0
    %1776 = vmatprep.subr.bf16.mxu0 0
    %1777 = vmatpush2.bf16.msra.mxu0 0
    %1778 = vmatprep.subr.bf16.mxu0 0
    %1779 = vmatpush2.bf16.msra.mxu0 0
    %1780 = vmatprep.subr.bf16.mxu0 0
    %1781 = vmatpush2.bf16.msra.mxu0 0
    %1782 = vmatprep.subr.bf16.mxu0 0
    %1783 = vmatpush2.bf16.msra.mxu0 0
    %1784 = vmatprep.subr.bf16.mxu0 0
    %1785 = vmatpush2.bf16.msra.mxu0 0
    %1786 = vmatprep.subr.bf16.mxu0 0
    %1787 = vmatpush2.bf16.msra.mxu0 0
    %1788 = vmatprep.subr.bf16.mxu0 0
    %1789 = vmatpush2.bf16.msra.mxu0 0
    %1790 = vmatprep.mubr.bf16.mxu0 0
    %1791 = vmatmul.mubr.bf16.gmra.mxu0 %v1753
    %v1792 = vpop.f32.mrf.mxu0
    %v1793 = vadd.f32 0.0, %v1792
    %v1794 = vpop.f32.mrf.mxu0
    %v1795 = vpop.f32.mrf.mxu0
    %v1796 = vpop.f32.mrf.mxu0
    %1797 = vdwg.mxu0
    %v1799 = vunpack.c.l.b16 %v1506
    %1800 = vset.pattern.permute.xlu0 0
    %1801 = vperm.xlu0 %1800, %v1799
    %v1802 = vpop.permute.xlu0 %1801
    %v1803 = vlaneseq
    %v1804 = vshrl.u32 %v1803, 7
    %v1805 = vsub.s32 %v1185, %v1804
    %v1806 = vrot.slane %v1802, %v1805
    %v1807 = vpack.c.b16 %v1806, %v1806
    %v1809 = vsel %vm1233, %v1807, 0
    %v1812 = vsel %vm1530, %v1514, 0
    %1814 = vmatprep.subr.bf16.mxu0 0
    %1815 = vmatpush1.bf16.msra.mxu0 0
    %1816 = vmatprep.subr.bf16.mxu0 0
    %1817 = vmatpush1.bf16.msra.mxu0 0
    %1818 = vmatprep.subr.bf16.mxu0 0
    %1819 = vmatpush1.bf16.msra.mxu0 0
    %1820 = vmatprep.subr.bf16.mxu0 0
    %1821 = vmatpush1.bf16.msra.mxu0 0
    %1822 = vmatprep.subr.bf16.mxu0 0
    %1823 = vmatpush1.bf16.msra.mxu0 0
    %1824 = vmatprep.subr.bf16.mxu0 0
    %1825 = vmatpush1.bf16.msra.mxu0 0
    %1826 = vmatprep.subr.bf16.mxu0 0
    %1827 = vmatpush1.bf16.msra.mxu0 0
    %1828 = vmatprep.subr.bf16.mxu0 0
    %1829 = vmatpush1.bf16.msra.mxu0 %v1812
    %1830 = vmatprep.subr.bf16.mxu0 0
    %1831 = vmatpush2.bf16.msra.mxu0 0
    %1832 = vmatprep.subr.bf16.mxu0 0
    %1833 = vmatpush2.bf16.msra.mxu0 0
    %1834 = vmatprep.subr.bf16.mxu0 0
    %1835 = vmatpush2.bf16.msra.mxu0 0
    %1836 = vmatprep.subr.bf16.mxu0 0
    %1837 = vmatpush2.bf16.msra.mxu0 0
    %1838 = vmatprep.subr.bf16.mxu0 0
    %1839 = vmatpush2.bf16.msra.mxu0 0
    %1840 = vmatprep.subr.bf16.mxu0 0
    %1841 = vmatpush2.bf16.msra.mxu0 0
    %1842 = vmatprep.subr.bf16.mxu0 0
    %1843 = vmatpush2.bf16.msra.mxu0 0
    %1844 = vmatprep.subr.bf16.mxu0 0
    %1845 = vmatpush2.bf16.msra.mxu0 0
    %1846 = vmatprep.mubr.bf16.mxu0 0
    %1847 = vmatmul.mubr.bf16.gmra.mxu0 %v1809
    %v1848 = vpop.f32.mrf.mxu0
    %v1849 = vadd.f32 0.0, %v1848
    %v1850 = vpop.f32.mrf.mxu0
    %v1851 = vpop.f32.mrf.mxu0
    %v1852 = vpop.f32.mrf.mxu0
    %1853 = vdwg.mxu0
    %v1855 = vunpack.c.l.b16 %v1507
    %1856 = vset.pattern.permute.xlu0 0
    %1857 = vperm.xlu0 %1856, %v1855
    %v1858 = vpop.permute.xlu0 %1857
    %v1859 = vlaneseq
    %v1860 = vshrl.u32 %v1859, 7
    %v1861 = vsub.s32 %v1185, %v1860
    %v1862 = vrot.slane %v1858, %v1861
    %v1863 = vpack.c.b16 %v1862, %v1862
    %v1865 = vsel %vm1233, %v1863, 0
    %v1868 = vsel %vm1530, %v1515, 0
    %1870 = vmatprep.subr.bf16.mxu0 0
    %1871 = vmatpush1.bf16.msra.mxu0 0
    %1872 = vmatprep.subr.bf16.mxu0 0
    %1873 = vmatpush1.bf16.msra.mxu0 0
    %1874 = vmatprep.subr.bf16.mxu0 0
    %1875 = vmatpush1.bf16.msra.mxu0 0
    %1876 = vmatprep.subr.bf16.mxu0 0
    %1877 = vmatpush1.bf16.msra.mxu0 0
    %1878 = vmatprep.subr.bf16.mxu0 0
    %1879 = vmatpush1.bf16.msra.mxu0 0
    %1880 = vmatprep.subr.bf16.mxu0 0
    %1881 = vmatpush1.bf16.msra.mxu0 0
    %1882 = vmatprep.subr.bf16.mxu0 0
    %1883 = vmatpush1.bf16.msra.mxu0 0
    %1884 = vmatprep.subr.bf16.mxu0 0
    %1885 = vmatpush1.bf16.msra.mxu0 %v1868
    %1886 = vmatprep.subr.bf16.mxu0 0
    %1887 = vmatpush2.bf16.msra.mxu0 0
    %1888 = vmatprep.subr.bf16.mxu0 0
    %1889 = vmatpush2.bf16.msra.mxu0 0
    %1890 = vmatprep.subr.bf16.mxu0 0
    %1891 = vmatpush2.bf16.msra.mxu0 0
    %1892 = vmatprep.subr.bf16.mxu0 0
    %1893 = vmatpush2.bf16.msra.mxu0 0
    %1894 = vmatprep.subr.bf16.mxu0 0
    %1895 = vmatpush2.bf16.msra.mxu0 0
    %1896 = vmatprep.subr.bf16.mxu0 0
    %1897 = vmatpush2.bf16.msra.mxu0 0
    %1898 = vmatprep.subr.bf16.mxu0 0
    %1899 = vmatpush2.bf16.msra.mxu0 0
    %1900 = vmatprep.subr.bf16.mxu0 0
    %1901 = vmatpush2.bf16.msra.mxu0 0
    %1902 = vmatprep.mubr.bf16.mxu0 0
    %1903 = vmatmul.mubr.bf16.gmra.mxu0 %v1865
    %v1904 = vpop.f32.mrf.mxu0
    %v1905 = vadd.f32 0.0, %v1904
    %v1906 = vpop.f32.mrf.mxu0
    %v1907 = vpop.f32.mrf.mxu0
    %v1908 = vpop.f32.mrf.mxu0
    %1909 = vdwg.mxu0
    %v1911 = vunpack.c.l.b16 %v1508
    %1912 = vset.pattern.permute.xlu0 0
    %1913 = vperm.xlu0 %1912, %v1911
    %v1914 = vpop.permute.xlu0 %1913
    %v1915 = vlaneseq
    %v1916 = vshrl.u32 %v1915, 7
    %v1917 = vsub.s32 %v1185, %v1916
    %v1918 = vrot.slane %v1914, %v1917
    %v1919 = vpack.c.b16 %v1918, %v1918
    %v1921 = vsel %vm1233, %v1919, 0
    %v1924 = vsel %vm1530, %v1516, 0
    %1926 = vmatprep.subr.bf16.mxu0 0
    %1927 = vmatpush1.bf16.msra.mxu0 0
    %1928 = vmatprep.subr.bf16.mxu0 0
    %1929 = vmatpush1.bf16.msra.mxu0 0
    %1930 = vmatprep.subr.bf16.mxu0 0
    %1931 = vmatpush1.bf16.msra.mxu0 0
    %1932 = vmatprep.subr.bf16.mxu0 0
    %1933 = vmatpush1.bf16.msra.mxu0 0
    %1934 = vmatprep.subr.bf16.mxu0 0
    %1935 = vmatpush1.bf16.msra.mxu0 0
    %1936 = vmatprep.subr.bf16.mxu0 0
    %1937 = vmatpush1.bf16.msra.mxu0 0
    %1938 = vmatprep.subr.bf16.mxu0 0
    %1939 = vmatpush1.bf16.msra.mxu0 0
    %1940 = vmatprep.subr.bf16.mxu0 0
    %1941 = vmatpush1.bf16.msra.mxu0 %v1924
    %1942 = vmatprep.subr.bf16.mxu0 0
    %1943 = vmatpush2.bf16.msra.mxu0 0
    %1944 = vmatprep.subr.bf16.mxu0 0
    %1945 = vmatpush2.bf16.msra.mxu0 0
    %1946 = vmatprep.subr.bf16.mxu0 0
    %1947 = vmatpush2.bf16.msra.mxu0 0
    %1948 = vmatprep.subr.bf16.mxu0 0
    %1949 = vmatpush2.bf16.msra.mxu0 0
    %1950 = vmatprep.subr.bf16.mxu0 0
    %1951 = vmatpush2.bf16.msra.mxu0 0
    %1952 = vmatprep.subr.bf16.mxu0 0
    %1953 = vmatpush2.bf16.msra.mxu0 0
    %1954 = vmatprep.subr.bf16.mxu0 0
    %1955 = vmatpush2.bf16.msra.mxu0 0
    %1956 = vmatprep.subr.bf16.mxu0 0
    %1957 = vmatpush2.bf16.msra.mxu0 0
    %1958 = vmatprep.mubr.bf16.mxu0 0
    %1959 = vmatmul.mubr.bf16.gmra.mxu0 %v1921
    %v1960 = vpop.f32.mrf.mxu0
    %v1961 = vadd.f32 0.0, %v1960
    %v1962 = vpop.f32.mrf.mxu0
    %v1963 = vpop.f32.mrf.mxu0
    %v1964 = vpop.f32.mrf.mxu0
    %1965 = vdwg.mxu0
    %v1966 = vpack.c.bf16 %v1569, %v1569
    %v1967 = vpack.c.bf16 %v1625, %v1625
    %v1968 = vpack.c.bf16 %v1681, %v1681
    %v1969 = vpack.c.bf16 %v1737, %v1737
    %v1970 = vpack.c.bf16 %v1793, %v1793
    %v1971 = vpack.c.bf16 %v1849, %v1849
    %v1972 = vpack.c.bf16 %v1905, %v1905
    %v1973 = vpack.c.bf16 %v1961, %v1961
    %v1974 = vld [vmem:[#allocation13] sm:$0xf]
    %v1975 = vld [vmem:[#allocation13 + $0x4] sm:$0xf]
    %v1976 = vld [vmem:[#allocation13 + $0x8] sm:$0xf]
    %v1977 = vld [vmem:[#allocation13 + $0xc] sm:$0xf]
    %v1978 = vld [vmem:[#allocation13 + $0x10] sm:$0xf]
    %v1979 = vld [vmem:[#allocation13 + $0x14] sm:$0xf]
    %v1980 = vld [vmem:[#allocation13 + $0x18] sm:$0xf]
    %v1981 = vld [vmem:[#allocation13 + $0x1c] sm:$0xf]
    %v1982 = vld [vmem:[#allocation13 + $0x20] sm:$0xf]
    %v1983 = vld [vmem:[#allocation13 + $0x24] sm:$0xf]
    %v1984 = vld [vmem:[#allocation13 + $0x28] sm:$0xf]
    %v1985 = vld [vmem:[#allocation13 + $0x2c] sm:$0xf]
    %v1986 = vld [vmem:[#allocation13 + $0x30] sm:$0xf]
    %v1987 = vld [vmem:[#allocation13 + $0x34] sm:$0xf]
    %v1988 = vld [vmem:[#allocation13 + $0x38] sm:$0xf]
    %v1989 = vld [vmem:[#allocation13 + $0x3c] sm:$0xf]
    %v1998 = vunpack.c.l.b16 %v1966
    %v1999 = vunpack.c.l.b16 %v1967
    %v2000 = vunpack.c.l.b16 %v1968
    %v2001 = vunpack.c.l.b16 %v1969
    %v2002 = vunpack.c.l.b16 %v1970
    %v2003 = vunpack.c.l.b16 %v1971
    %v2004 = vunpack.c.l.b16 %v1972
    %v2005 = vunpack.c.l.b16 %v1973
    %v2006 = vrot.slane %v1999, 7
    %v2007 = vsel %vm1218, %v2006, %v1998
    %v2008 = vrot.slane %v2000, 6
    %v2009 = vsel %vm1220, %v2008, %v2007
    %v2010 = vrot.slane %v2001, 5
    %v2011 = vsel %vm1222, %v2010, %v2009
    %v2012 = vrot.slane %v2002, 4
    %v2013 = vsel %vm1224, %v2012, %v2011
    %v2014 = vrot.slane %v2003, 3
    %v2015 = vsel %vm1226, %v2014, %v2013
    %v2016 = vrot.slane %v2004, 2
    %v2017 = vsel %vm1228, %v2016, %v2015
    %v2018 = vrot.slane %v2005, 1
    %v2019 = vsel %vm1230, %v2018, %v2017
    %v2020 = vpack.c.b16 %v2019, %v2019
    %v2038 = vunpack.c.l.b16 %v1974
    %v2039 = vunpack.c.l.b16 %v1975
    %v2040 = vunpack.c.l.b16 %v1976
    %v2041 = vunpack.c.l.b16 %v1977
    %v2042 = vunpack.c.l.b16 %v1978
    %v2043 = vunpack.c.l.b16 %v1979
    %v2044 = vunpack.c.l.b16 %v1980
    %v2045 = vunpack.c.l.b16 %v1981
    %v2046 = vunpack.c.l.b16 %v1982
    %v2047 = vunpack.c.l.b16 %v1983
    %v2048 = vunpack.c.l.b16 %v1984
    %v2049 = vunpack.c.l.b16 %v1985
    %v2050 = vunpack.c.l.b16 %v1986
    %v2051 = vunpack.c.l.b16 %v1987
    %v2052 = vunpack.c.l.b16 %v1988
    %v2053 = vunpack.c.l.b16 %v1989
    %v2054 = vpack.c.b16 %v2039, %v2038
    %v2055 = vpack.c.b16 %v2041, %v2040
    %v2056 = vpack.c.b16 %v2043, %v2042
    %v2057 = vpack.c.b16 %v2045, %v2044
    %v2058 = vpack.c.b16 %v2047, %v2046
    %v2059 = vpack.c.b16 %v2049, %v2048
    %v2060 = vpack.c.b16 %v2051, %v2050
    %v2061 = vpack.c.b16 %v2053, %v2052
    %2070 = vmatprep.subr.bf16.mxu0 0
    %2071 = vmatpush1.bf16.msra.mxu0 %v2061
    %2072 = vmatprep.subr.bf16.mxu0 0
    %2073 = vmatpush1.bf16.msra.mxu0 %v2060
    %2074 = vmatprep.subr.bf16.mxu0 0
    %2075 = vmatpush1.bf16.msra.mxu0 %v2059
    %2076 = vmatprep.subr.bf16.mxu0 0
    %2077 = vmatpush1.bf16.msra.mxu0 %v2058
    %2078 = vmatprep.subr.bf16.mxu0 0
    %2079 = vmatpush1.bf16.msra.mxu0 %v2057
    %2080 = vmatprep.subr.bf16.mxu0 0
    %2081 = vmatpush1.bf16.msra.mxu0 %v2056
    %2082 = vmatprep.subr.bf16.mxu0 0
    %2083 = vmatpush1.bf16.msra.mxu0 %v2055
    %2084 = vmatprep.subr.bf16.mxu0 0
    %2085 = vmatpush1.bf16.msra.mxu0 %v2054
    %2086 = vmatprep.subr.bf16.mxu0 0
    %2087 = vmatpush2.bf16.msra.mxu0 0
    %2088 = vmatprep.subr.bf16.mxu0 0
    %2089 = vmatpush2.bf16.msra.mxu0 0
    %2090 = vmatprep.subr.bf16.mxu0 0
    %2091 = vmatpush2.bf16.msra.mxu0 0
    %2092 = vmatprep.subr.bf16.mxu0 0
    %2093 = vmatpush2.bf16.msra.mxu0 0
    %2094 = vmatprep.subr.bf16.mxu0 0
    %2095 = vmatpush2.bf16.msra.mxu0 0
    %2096 = vmatprep.subr.bf16.mxu0 0
    %2097 = vmatpush2.bf16.msra.mxu0 0
    %2098 = vmatprep.subr.bf16.mxu0 0
    %2099 = vmatpush2.bf16.msra.mxu0 0
    %2100 = vmatprep.subr.bf16.mxu0 0
    %2101 = vmatpush2.bf16.msra.mxu0 0
    %2102 = vmatprep.mubr.bf16.mxu0 0
    %2103 = vmatmul.mubr.bf16.gmra.mxu0 %v2020
    %v2104 = vpop.f32.mrf.mxu0
    %v2105 = vadd.f32 0.0, %v2104
    %v2106 = vpop.f32.mrf.mxu0
    %v2107 = vpop.f32.mrf.mxu0
    %v2108 = vpop.f32.mrf.mxu0
    %2109 = vdwg.mxu0
    %v2110 = vadd.f32 %v919, %v2105
    %v2111 = vld [vmem:[%s12] sm:$0x1]
    %v2113 = vlaneseq
    %v2114 = vshrl.u32 %v2113, 7
    %v2115 = vsub.s32 0, %v2114
    %v2116 = vrot.slane %v2111, %v2115
    %v2118 = vadd.f32 %v2110, %v2116
    %v2119 = vtanh.pop %v2118
    %2120 = vst [vmem:[%s13] sm:$0xff] %v784
    %2121 = vst [vmem:[%s14] sm:$0xff] %v782
    %v2122 = vpack.c.bf16 %v2119, %v2119
    %2123 = vst [vmem:[%s15] sm:$0xf] %v2122
    // Predicated region
    $region106: #{decoder_step.2} parent=1 // pred_check
      _
    $region107: #{decoder_step.2} parent=1 // pred_check_branch
      %2125 = sbr.rel (0) target = $region109
    $region108: #{decoder_step.2} parent=1 // pred_region
      _
    $region109: #{decoder_step.2} parent=1 // pred_fallthru
      _
    // Predicated region
    $region110: #{decoder_step.2} parent=1 // pred_check
      _
    $region111: #{decoder_step.2} parent=1 // pred_check_branch
      %2127 = sbr.rel (0) target = $region113
    $region112: #{decoder_step.2} parent=1 // pred_region
      _
    $region113: #{decoder_step.2} parent=1 // pred_fallthru
      _
    // Predicated region
    $region114: #{decoder_step.2} parent=1 // pred_check
      _
    $region115: #{decoder_step.2} parent=1 // pred_check_branch
      %2129 = sbr.rel (0) target = $region117
    $region116: #{decoder_step.2} parent=1 // pred_region
      _
    $region117: #{decoder_step.2} parent=1 // pred_fallthru
      _
    // Predicated region
    $region118: #{decoder_step.2} parent=1 // pred_check
      _
    $region119: #{decoder_step.2} parent=1 // pred_check_branch
      %2131 = sbr.rel (0) target = $region121
    $region120: #{decoder_step.2} parent=1 // pred_region
      _
    $region121: #{decoder_step.2} parent=1 // pred_fallthru
      _
    // Predicated region
    $region122: #{decoder_step.2} parent=1 // pred_check
      _
    $region123: #{decoder_step.2} parent=1 // pred_check_branch
      %2133 = sbr.rel (0) target = $region125
    $region124: #{decoder_step.2} parent=1 // pred_region
      _
    $region125: #{decoder_step.2} parent=1 // pred_fallthru
      _
    // Predicated region
    $region126: #{decoder_step.2} parent=1 // pred_check
      _
    $region127: #{decoder_step.2} parent=1 // pred_check_branch
      %2135 = sbr.rel (0) target = $region129
    $region128: #{decoder_step.2} parent=1 // pred_region
      _
    $region129: #{decoder_step.2} parent=1 // pred_fallthru
      _
    %2136 = vsyncpa [#allocation5], 1
    %2137 = vsyncpa [#allocation9], 1
    %2138 = vsyncpa [#allocation12], 1
    %2139 = vsyncpa [#allocation6], 1
  %2140 = vsyncmov [#allocation3]
  %s2141 = vpop.sfrf %2140
  %p2142 = scmp.eq.s32.totalorder %s2141, 0
  %p2143 = pneg %p2142
  %2145 = shalt.err (%p2143)
  %s2146 = scalar_lea.sflag [#allocation3], 1
  %2147 = vsyncmov %s2146
  %s2148 = vpop.sfrf %2147
  %p2149 = scmp.eq.s32.totalorder %s2148, 0
  %p2150 = pneg %p2149
  %2152 = shalt.err (%p2150)
  %s2153 = scalar_lea.sflag [#allocation3], 2
  %2154 = vsyncmov %s2153
  %s2155 = vpop.sfrf %2154
  %p2156 = scmp.eq.s32.totalorder %s2155, 0
  %p2157 = pneg %p2156
  %2159 = shalt.err (%p2157)
  %s2160 = scalar_lea.sflag [#allocation3], 3
  %2161 = vsyncmov %s2160
  %s2162 = vpop.sfrf %2161
  %p2163 = scmp.eq.s32.totalorder %s2162, 0
  %p2164 = pneg %p2163
  %2166 = shalt.err (%p2164)
  %s2167 = scalar_lea.sflag [#allocation3], 4
  %2168 = vsyncmov %s2167
  %s2169 = vpop.sfrf %2168
  %p2170 = scmp.eq.s32.totalorder %s2169, 0
  %p2171 = pneg %p2170
  %2173 = shalt.err (%p2171)
  %s2174 = scalar_lea.sflag [#allocation3], 5
  %2175 = vsyncmov %s2174
  %s2176 = vpop.sfrf %2175
  %p2177 = scmp.eq.s32.totalorder %s2176, 0
  %p2178 = pneg %p2177
  %2180 = shalt.err (%p2178)
  %s2181 = scalar_lea.sflag [#allocation3], 6
  %2182 = vsyncmov %s2181
  %s2183 = vpop.sfrf %2182
  %p2184 = scmp.eq.s32.totalorder %s2183, 0
  %p2185 = pneg %p2184
  %2187 = shalt.err (%p2185)
  %s2188 = scalar_lea.sflag [#allocation3], 7
  %2189 = vsyncmov %s2188
  %s2190 = vpop.sfrf %2189
  %p2191 = scmp.eq.s32.totalorder %s2190, 0
  %p2192 = pneg %p2191
  %2194 = shalt.err (%p2192)

</llo_original>
